<compile_context>
chip_gen: v6e
topology: v6e:2x2x1
jax: 0.10.0
libtpu: 0.0.40
codegen_flags: <defaults>
</compile_context>

<pallas_src>
import jax
import jax.numpy as jnp
from jax import lax
from jax.experimental import pallas as pl
from jax.experimental.pallas import tpu as pltpu

_K = 3            # ConvTranspose3d kernel size
_S = 2            # ConvTranspose3d stride
_EPS = 1e-5       # InstanceNorm3d default eps


def _round_up(a, b):
    return (a + b - 1) // b * b


# --------------------------------------------------------------------------
# Generation-aware VMEM budgeting
# --------------------------------------------------------------------------
_VMEM_BUDGET_CACHE = []


def _vmem_budget():
    if not _VMEM_BUDGET_CACHE:
        phys = 64 << 20                       # assume v7x (smallest VMEM) if unknown
        try:
            info = pltpu.get_tpu_info()
            cap = getattr(info, "vmem_capacity_bytes", None)
            if cap:
                phys = int(cap)
        except Exception:
            pass
        _VMEM_BUDGET_CACHE.append(min(phys * 3 // 4, 100 << 20))
    return _VMEM_BUDGET_CACHE[0]


def _choose_ct(c8):
    """Output-channel tile: full extent if small, else a 128-multiple divisor."""
    if c8 <= 512:
        return c8
    for tc in (512, 384, 256, 128):
        if c8 % tc == 0:
            return tc
    return c8


def _choose_tile(m, k8, tc, budget):
    """M rows per tile, accounting for everything resident in VMEM."""
    fixed = 2 * k8 * tc * 2 + 16 * tc + (4 << 20)   # weight x2 (bf16) + bias/stats + margin
    per_row = 2 * 2 * k8 + 2 * 2 * tc + 4 * tc      # taps x2, z x2 (bf16), f32 acc
    avail = max(budget - fixed, 1 << 20)
    tm_cap = 1024 if budget >= (80 << 20) else 512  # larger tiles on 128 MiB parts
    tm = min(tm_cap, max(16, avail // per_row))
    if tm >= 256:
        tm = tm // 256 * 256
    else:
        tm = max(16, tm // 16 * 16)
    m16 = _round_up(m, 16)
    if m16 <= tm:
        return m16, m16
    return tm, _round_up(m, tm)


# --------------------------------------------------------------------------
# Pallas kernels.  grid = (N, M_tiles, C_tiles); single matmul per step.
# --------------------------------------------------------------------------
def _deconv_in_stats_kernel(tap_ref, w_ref, b_ref, z_ref, stats_ref):
    """taps @ folded-weight + bias; emit z (bf16) and per-tile sum / sum-of-sq
    for InstanceNorm (f32, from the pre-cast accumulator)."""
    z = jnp.dot(tap_ref[...], w_ref[...],
                preferred_element_type=jnp.float32) + b_ref[...]
    z_ref[...] = z.astype(z_ref.dtype)
    stats_ref[0:1, :] = jnp.sum(z, axis=0, keepdims=True)
    stats_ref[1:2, :] = jnp.sum(z * z, axis=0, keepdims=True)


def _deconv_tanh_kernel(tap_ref, w_ref, b_ref, o_ref):
    """Last stage: taps @ folded-weight + bias, fused tanh."""
    z = jnp.dot(tap_ref[...], w_ref[...],
                preferred_element_type=jnp.float32) + b_ref[...]
    o_ref[...] = jnp.tanh(z).astype(o_ref.dtype)


# --------------------------------------------------------------------------
# Host-side weight folding and tap (window) construction
# --------------------------------------------------------------------------
def _fold_weights(wct, bct, w1, b1, pad):
    """Fold ConvTranspose3d(k=3,s=2,pad) + Conv3d(1x1) into one sub-pixel
    weight of shape (8*Cin, 8*Cout).  Rows ordered (td,th,tw,ci) over the
    2x2x2 input window, columns ordered (pd,ph,pw,co) over output parities."""
    Cin, Cct = wct.shape[0], wct.shape[1]
    Cout = w1.shape[0]
    w1m = jnp.transpose(w1.reshape(Cout, Cct), (1, 0)).astype(jnp.float32)
    d0 = tuple(-1 if p == 0 else 0 for p in pad)      # base input shift per dim
    wb = jnp.zeros((2, 2, 2, Cin, 2, 2, 2, Cct), jnp.float32)
    for td in range(2):
        for pd in range(2):
            kd = pd + pad[0] - 2 * (d0[0] + td)
            if not 0 <= kd < _K:
                continue
            for th in range(2):
                for ph in range(2):
                    kh = ph + pad[1] - 2 * (d0[1] + th)
                    if not 0 <= kh < _K:
                        continue
                    for tw in range(2):
                        for pw in range(2):
                            kw = pw + pad[2] - 2 * (d0[2] + tw)
                            if not 0 <= kw < _K:
                                continue
                            wb = wb.at[td, th, tw, :, pd, ph, pw, :].set(
                                wct[:, :, kd, kh, kw].astype(jnp.float32))
    wb = wb.reshape(8 * Cin, 8, Cct)
    wf = jnp.einsum('kpc,co->kpo', wb, w1m).reshape(8 * Cin, 8 * Cout)
    bfold = (bct.reshape(1, Cct).astype(jnp.float32) @ w1m
             + b1.reshape(1, Cout).astype(jnp.float32))            # (1, Cout)
    b8 = jnp.tile(bfold, (1, 8))                                   # (1, 8*Cout)
    return wf, b8, bfold.reshape(Cout), d0


def _build_taps(x, d0, qd, qh, qw):
    """All 8 shifted 2x2x2 windows of the zero-padded input, stacked into the
    matmul K dimension: (N, qd*qh*qw, 8*Cin), window-major / channel-minor."""
    n = x.shape[0]
    cin = x.shape[-1]
    xpad = jnp.pad(x, ((0, 0), (1, 1), (1, 1), (1, 1), (0, 0)))
    wins = []
    for td in range(2):
        sd = 1 + d0[0] + td
        for th in range(2):
            sh = 1 + d0[1] + th
            for tw in range(2):
                sw = 1 + d0[2] + tw
                wins.append(xpad[:, sd:sd + qd, sh:sh + qh, sw:sw + qw, :])
    taps = jnp.stack(wins, axis=-2)                   # (N, qd, qh, qw, 8, Cin)
    return taps.reshape(n, qd * qh * qw, 8 * cin)


# --------------------------------------------------------------------------
# One decoder stage
# --------------------------------------------------------------------------
def decoder_stage(x, params, pad, outpad, last):
    """x: (N, D, H, W, Cin) channels-last.  Returns (N, Do, Ho, Wo, Cout)."""
    wct, bct, w1, b1 = params
    N, D, H, W, Cin = x.shape
    Cout = w1.shape[0]
    Do = _S * D + 1 - 2 * pad[0] + outpad[0]
    Ho = _S * H + 1 - 2 * pad[1] + outpad[1]
    Wo = _S * W + 1 - 2 * pad[2] + outpad[2]
    Qd, Qh, Qw = (Do + 1) // 2, (Ho + 1) // 2, (Wo + 1) // 2
    M = Qd * Qh * Qw
    M_total = Do * Ho * Wo
    K8, C8 = 8 * Cin, 8 * Cout

    wf, b8, bfold, d0 = _fold_weights(wct, bct, w1, b1, pad)
    taps = _build_taps(x.astype(jnp.bfloat16), d0, Qd, Qh, Qw)

    budget = _vmem_budget()
    TC = _choose_ct(C8)
    CT = C8 // TC
    TM, Mp = _choose_tile(M, K8, TC, budget)
    MT = Mp // TM
    if Mp != M:
        taps = jnp.pad(taps, ((0, 0), (0, Mp - M), (0, 0)))

    grid = (N, MT, CT)
    compiler_params = pltpu.CompilerParams(
        dimension_semantics=("parallel", "parallel", "arbitrary"),
        vmem_limit_bytes=budget)

    tap_spec = pl.BlockSpec((None, TM, K8), lambda n, m, c: (n, m, 0))
    w_spec = pl.BlockSpec((K8, TC), lambda n, m, c: (0, c))
    b_spec = pl.BlockSpec((1, TC), lambda n, m, c: (0, c))
    z_spec = pl.BlockSpec((None, TM, TC), lambda n, m, c: (n, m, c))

    if last:
        out = pl.pallas_call(
            _deconv_tanh_kernel,
            out_shape=jax.ShapeDtypeStruct((N, Mp, C8), jnp.float32),
            grid_spec=pltpu.PrefetchScalarGridSpec(
                num_scalar_prefetch=0, grid=grid,
                in_specs=[tap_spec, w_spec, b_spec],
                out_specs=z_spec),
            compiler_params=compiler_params,
        )(taps, wf.astype(jnp.bfloat16), b8)
        zq = out[:, :M, :].reshape(N, Qd, Qh, Qw, 2, 2, 2, Cout)
    else:
        st_spec = pl.BlockSpec((None, None, 2, TC), lambda n, m, c: (n, m, 0, c))
        z, stats = pl.pallas_call(
            _deconv_in_stats_kernel,
            out_shape=(jax.ShapeDtypeStruct((N, Mp, C8), jnp.bfloat16),
                       jax.ShapeDtypeStruct((N, MT, 2, C8), jnp.float32)),
            grid_spec=pltpu.PrefetchScalarGridSpec(
                num_scalar_prefetch=0, grid=grid,
                in_specs=[tap_spec, w_spec, b_spec],
                out_specs=(z_spec, st_spec)),
            compiler_params=compiler_params,
        )(taps, wf.astype(jnp.bfloat16), b8)
        # InstanceNorm from in-kernel partial sums.  Tile-padding and parity
        # "phantom" rows have exactly-zero taps -> z == bias exactly, so their
        # contribution is removed analytically (no mask input needed).
        s = jnp.sum(stats, axis=1).reshape(N, 2, 8, Cout).sum(axis=2)  # (N,2,Cout)
        n_pad = 8 * Mp - M_total
        ssum = s[:, 0, :] - n_pad * bfold[None, :]
        ssq = s[:, 1, :] - n_pad * (bfold * bfold)[None, :]
        mean = ssum / M_total
        var = jnp.maximum(ssq / M_total - mean * mean, 0.0)   # clamp >= 0 (no NaN)
        scale = lax.rsqrt(var + _EPS)
        shift = -mean * scale
        zq = z[:, :M, :].astype(jnp.float32).reshape(N, Qd, Qh, Qw, 8, Cout)
        zq = jnp.maximum(zq * scale[:, None, None, None, None, :]
                         + shift[:, None, None, None, None, :], 0.0)
        zq = zq.reshape(N, Qd, Qh, Qw, 2, 2, 2, Cout).astype(jnp.bfloat16)

    # Pixel-shuffle interleave of the 8 parity classes: one transpose+reshape
    # (replaces the previous 8 strided scatters); phantom rows are sliced off.
    y = jnp.transpose(zq, (0, 1, 4, 2, 5, 3, 6, 7)).reshape(
        N, 2 * Qd, 2 * Qh, 2 * Qw, Cout)
    return y[:, :Do, :Ho, :Wo, :]


# --------------------------------------------------------------------------
# Decoder (parameter setup + forward)
# --------------------------------------------------------------------------
def _layer_pad_cfg(i, n_layers):
    if i == n_layers - 1:
        return (0, 0, 0), (0, 0, 0)
    if i == 0:
        return (0, 0, 0), (0, 0, 0)
    if i == 1:
        return (0, 1, 0), (0, 1, 0)
    return (1, 1, 1), (1, 1, 1)


def init_decoder_params(key, out_channels, features):
    params = []
    n = len(features)
    for i, f in enumerate(features):
        cout = out_channels if i == n - 1 else features[i + 1]
        key, k1, k2, k3, k4 = jax.random.split(key, 5)
        wct = jax.random.normal(k1, (f, f, _K, _K, _K), jnp.float32) / jnp.sqrt(f * 27.0)
        bct = 0.1 * jax.random.normal(k2, (f,), jnp.float32)
        w1 = jax.random.normal(k3, (cout, f, 1, 1, 1), jnp.float32) / jnp.sqrt(1.0 * f)
        b1 = 0.1 * jax.random.normal(k4, (cout,), jnp.float32)
        params.append((wct, bct, w1, b1))
    return params


def decoder_forward(x_ncdhw, params):
    # PyTorch NCDHW in/out; internal compute is NDHWC (channels-last).
    x = jnp.transpose(x_ncdhw, (0, 2, 3, 4, 1))
    n = len(params)
    for i, p in enumerate(params):
        pad, outpad = _layer_pad_cfg(i, n)
        x = decoder_stage(x, p, pad, outpad, last=(i == n - 1))
    return jnp.transpose(x, (0, 4, 1, 2, 3))


# --------------------------------------------------------------------------
# Pure-JAX reference (for numerical verification)
# --------------------------------------------------------------------------
def reference_forward(x_ncdhw, params):
    x = jnp.transpose(x_ncdhw, (0, 2, 3, 4, 1))
    n = len(params)
    for i, (wct, bct, w1, b1) in enumerate(params):
        pad, outpad = _layer_pad_cfg(i, n)
        wf = jnp.transpose(jnp.flip(wct, (2, 3, 4)), (2, 3, 4, 0, 1))
        pcfg = [(_K - 1 - p, _K - 1 - p + op) for p, op in zip(pad, outpad)]
        y = lax.conv_general_dilated(
            x, wf, window_strides=(1, 1, 1), padding=pcfg,
            lhs_dilation=(_S, _S, _S),
            dimension_numbers=('NDHWC', 'DHWIO', 'NDHWC'))
        y = y + bct.reshape(1, 1, 1, 1, -1)
        cout = w1.shape[0]
        z = jnp.einsum('ndhwc,oc->ndhwo', y, w1.reshape(cout, -1)) \
            + b1.reshape(1, 1, 1, 1, -1)
        if i == n - 1:
            x = jnp.tanh(z)
        else:
            mu = z.mean(axis=(1, 2, 3), keepdims=True)
            var = z.var(axis=(1, 2, 3), keepdims=True)
            x = jnp.maximum((z - mu) * lax.rsqrt(var + _EPS), 0.0)
    return jnp.transpose(x, (0, 4, 1, 2, 3))


# --------------------------------------------------------------------------
if __name__ == "__main__":
    key = jax.random.PRNGKey(0)
    kp, kx = jax.random.split(key)

    out_channels = 1
    # small stand-in for the default list(reversed([64, 128, 256, 512, 512]))
    features = [16, 16, 8, 8, 4]
    params = init_decoder_params(kp, out_channels, features)

    N, D0, H0, W0 = 2, 1, 2, 1
    x = jax.random.normal(kx, (N, features[0], D0, H0, W0), jnp.float32)  # NCDHW

    fwd = jax.jit(decoder_forward)
    y = jax.block_until_ready(fwd(x, params))

    y_ref = jax.block_until_ready(reference_forward(x, params))
    assert y.shape == y_ref.shape, (y.shape, y_ref.shape)
    err = float(jnp.max(jnp.abs(y - y_ref)))
    # bf16 matmul operands / bf16 activation storage, chained through 5 stages
    # of InstanceNorm re-scaling, vs an all-f32 reference.
    assert err < 1e-1, f"max abs err too large: {err}"

    print("KERNEL_OK")
</pallas_src>

<mosaic_0001>
module attributes {stable_mosaic.version = 11 : i64} {
  func.func @_deconv_in_stats_kernel(%arg0: i32, %arg1: i32, %arg2: i32, %arg3: memref<1x16x128xbf16, #tpu.memory_space<vmem>>, %arg4: memref<128x128xbf16, #tpu.memory_space<vmem>>, %arg5: memref<1x128xf32, #tpu.memory_space<vmem>>, %arg6: memref<1x16x128xbf16, #tpu.memory_space<vmem>>, %arg7: memref<1x1x2x128xf32, #tpu.memory_space<vmem>>) attributes {dimension_semantics = [#tpu.dimension_semantics<parallel>, #tpu.dimension_semantics<parallel>, #tpu.dimension_semantics<arbitrary>], iteration_bounds = array<i64: 2, 1, 1>, scalar_prefetch = 0 : i64, scratch_operands = 0 : i64, tpu.core_type = #tpu.core_type<tc>, window_params = [{transform_indices = @transform_0, window_bounds = array<i64: 1, 16, 128>}, {transform_indices = @transform_1, window_bounds = array<i64: 128, 128>}, {transform_indices = @transform_2, window_bounds = array<i64: 1, 128>}, {transform_indices = @transform_3, window_bounds = array<i64: 1, 16, 128>}, {transform_indices = @transform_4, window_bounds = array<i64: 1, 1, 2, 128>}]} {
    %c0 = arith.constant 0 : index
    %c0_0 = arith.constant 0 : index
    %c0_1 = arith.constant 0 : index
    %0 = vector.load %arg3[%c0, %c0_0, %c0_1] : memref<1x16x128xbf16, #tpu.memory_space<vmem>>, vector<1x16x128xbf16>
    %1 = vector.shape_cast %0 : vector<1x16x128xbf16> to vector<16x128xbf16>
    %c0_2 = arith.constant 0 : index
    %c0_3 = arith.constant 0 : index
    %2 = vector.load %arg4[%c0_2, %c0_3] : memref<128x128xbf16, #tpu.memory_space<vmem>>, vector<128x128xbf16>
    %cst = arith.constant dense<0.000000e+00> : vector<16x128xf32>
    %3 = tpu.matmul %1, %2, %cst {dimension_numbers = #tpu.dot_dimension_numbers<[1], [0], [0], [1], [0, 0, 1, 1], [], []>} : vector<16x128xbf16>, vector<128x128xbf16>, vector<16x128xf32> -> vector<16x128xf32>
    %c0_4 = arith.constant 0 : index
    %c0_5 = arith.constant 0 : index
    %4 = vector.load %arg5[%c0_4, %c0_5] : memref<1x128xf32, #tpu.memory_space<vmem>>, vector<1x128xf32>
    %5 = vector.broadcast %4 : vector<1x128xf32> to vector<16x128xf32>
    %6 = arith.addf %3, %5 : vector<16x128xf32>
    %7 = arith.truncf %6 : vector<16x128xf32> to vector<16x128xbf16>
    %c0_6 = arith.constant 0 : index
    %c0_7 = arith.constant 0 : index
    %c0_8 = arith.constant 0 : index
    %8 = vector.load %arg6[%c0_6, %c0_7, %c0_8] : memref<1x16x128xbf16, #tpu.memory_space<vmem>>, vector<1x16x128xbf16>
    %9 = vector.shape_cast %8 : vector<1x16x128xbf16> to vector<16x128xbf16>
    %10 = vector.shape_cast %7 : vector<16x128xbf16> to vector<1x16x128xbf16>
    tpu.vector_store %arg6[%c0_6, %c0_7, %c0_8], %10 {strides = array<i32>} : memref<1x16x128xbf16, #tpu.memory_space<vmem>>, vector<1x16x128xbf16>,
    %cst_9 = arith.constant dense<0.000000e+00> : vector<128xf32>
    %11 = vector.multi_reduction <add>, %6, %cst_9 [0] : vector<16x128xf32> to vector<128xf32>
    %12 = vector.shape_cast %11 : vector<128xf32> to vector<1x128xf32>
    %c0_10 = arith.constant 0 : index
    %c0_11 = arith.constant 0 : index
    %c0_12 = arith.constant 0 : index
    %c0_13 = arith.constant 0 : index
    %13 = vector.load %arg7[%c0_10, %c0_11, %c0_12, %c0_13] : memref<1x1x2x128xf32, #tpu.memory_space<vmem>>, vector<1x1x1x128xf32>
    %14 = vector.shape_cast %13 : vector<1x1x1x128xf32> to vector<1x128xf32>
    %15 = vector.shape_cast %12 : vector<1x128xf32> to vector<1x1x1x128xf32>
    tpu.vector_store %arg7[%c0_10, %c0_11, %c0_12, %c0_13], %15 {strides = array<i32>} : memref<1x1x2x128xf32, #tpu.memory_space<vmem>>, vector<1x1x1x128xf32>,
    %16 = arith.mulf %6, %6 : vector<16x128xf32>
    %cst_14 = arith.constant dense<0.000000e+00> : vector<128xf32>
    %17 = vector.multi_reduction <add>, %16, %cst_14 [0] : vector<16x128xf32> to vector<128xf32>
    %18 = vector.shape_cast %17 : vector<128xf32> to vector<1x128xf32>
    %c0_15 = arith.constant 0 : index
    %c0_16 = arith.constant 0 : index
    %c1 = arith.constant 1 : index
    %c0_17 = arith.constant 0 : index
    %19 = vector.load %arg7[%c0_15, %c0_16, %c1, %c0_17] : memref<1x1x2x128xf32, #tpu.memory_space<vmem>>, vector<1x1x1x128xf32>
    %20 = vector.shape_cast %19 : vector<1x1x1x128xf32> to vector<1x128xf32>
    %21 = vector.shape_cast %18 : vector<1x128xf32> to vector<1x1x1x128xf32>
    tpu.vector_store %arg7[%c0_15, %c0_16, %c1, %c0_17], %21 {strides = array<i32>} : memref<1x1x2x128xf32, #tpu.memory_space<vmem>>, vector<1x1x1x128xf32>,
    return
  }
  func.func @transform_0(%arg0: i32, %arg1: i32, %arg2: i32) -> (i32, i32, i32) {
    %c0_i32 = arith.constant 0 : i32
    %c0_i32_0 = arith.constant 0 : i32
    return %arg0, %arg1, %c0_i32 : i32, i32, i32
  }
  func.func @transform_1(%arg0: i32, %arg1: i32, %arg2: i32) -> (i32, i32) {
    %c0_i32 = arith.constant 0 : i32
    %c0_i32_0 = arith.constant 0 : i32
    return %c0_i32, %arg2 : i32, i32
  }
  func.func @transform_2(%arg0: i32, %arg1: i32, %arg2: i32) -> (i32, i32) {
    %c0_i32 = arith.constant 0 : i32
    %c0_i32_0 = arith.constant 0 : i32
    return %c0_i32, %arg2 : i32, i32
  }
  func.func @transform_3(%arg0: i32, %arg1: i32, %arg2: i32) -> (i32, i32, i32) {
    %c0_i32 = arith.constant 0 : i32
    return %arg0, %arg1, %arg2 : i32, i32, i32
  }
  func.func @transform_4(%arg0: i32, %arg1: i32, %arg2: i32) -> (i32, i32, i32, i32) {
    %c0_i32 = arith.constant 0 : i32
    %c0_i32_0 = arith.constant 0 : i32
    return %arg0, %arg1, %c0_i32, %arg2 : i32, i32, i32, i32
  }
}

module attributes {stable_mosaic.version = 11 : i64} {
  func.func @_deconv_in_stats_kernel(%arg0: i32, %arg1: i32, %arg2: i32, %arg3: memref<1x80x128xbf16, #tpu.memory_space<vmem>>, %arg4: memref<128x64xbf16, #tpu.memory_space<vmem>>, %arg5: memref<1x64xf32, #tpu.memory_space<vmem>>, %arg6: memref<1x80x64xbf16, #tpu.memory_space<vmem>>, %arg7: memref<1x1x2x64xf32, #tpu.memory_space<vmem>>) attributes {dimension_semantics = [#tpu.dimension_semantics<parallel>, #tpu.dimension_semantics<parallel>, #tpu.dimension_semantics<arbitrary>], iteration_bounds = array<i64: 2, 1, 1>, scalar_prefetch = 0 : i64, scratch_operands = 0 : i64, tpu.core_type = #tpu.core_type<tc>, window_params = [{transform_indices = @transform_0, window_bounds = array<i64: 1, 80, 128>}, {transform_indices = @transform_1, window_bounds = array<i64: 128, 64>}, {transform_indices = @transform_2, window_bounds = array<i64: 1, 64>}, {transform_indices = @transform_3, window_bounds = array<i64: 1, 80, 64>}, {transform_indices = @transform_4, window_bounds = array<i64: 1, 1, 2, 64>}]} {
    %c0 = arith.constant 0 : index
    %c0_0 = arith.constant 0 : index
    %c0_1 = arith.constant 0 : index
    %0 = vector.load %arg3[%c0, %c0_0, %c0_1] : memref<1x80x128xbf16, #tpu.memory_space<vmem>>, vector<1x80x128xbf16>
    %1 = vector.shape_cast %0 : vector<1x80x128xbf16> to vector<80x128xbf16>
    %c0_2 = arith.constant 0 : index
    %c0_3 = arith.constant 0 : index
    %2 = vector.load %arg4[%c0_2, %c0_3] : memref<128x64xbf16, #tpu.memory_space<vmem>>, vector<128x64xbf16>
    %cst = arith.constant dense<0.000000e+00> : vector<80x64xf32>
    %3 = tpu.matmul %1, %2, %cst {dimension_numbers = #tpu.dot_dimension_numbers<[1], [0], [0], [1], [0, 0, 1, 1], [], []>} : vector<80x128xbf16>, vector<128x64xbf16>, vector<80x64xf32> -> vector<80x64xf32>
    %c0_4 = arith.constant 0 : index
    %c0_5 = arith.constant 0 : index
    %4 = vector.load %arg5[%c0_4, %c0_5] : memref<1x64xf32, #tpu.memory_space<vmem>>, vector<1x64xf32>
    %5 = vector.broadcast %4 : vector<1x64xf32> to vector<80x64xf32>
    %6 = arith.addf %3, %5 : vector<80x64xf32>
    %7 = arith.truncf %6 : vector<80x64xf32> to vector<80x64xbf16>
    %c0_6 = arith.constant 0 : index
    %c0_7 = arith.constant 0 : index
    %c0_8 = arith.constant 0 : index
    %8 = vector.load %arg6[%c0_6, %c0_7, %c0_8] : memref<1x80x64xbf16, #tpu.memory_space<vmem>>, vector<1x80x64xbf16>
    %9 = vector.shape_cast %8 : vector<1x80x64xbf16> to vector<80x64xbf16>
    %10 = vector.shape_cast %7 : vector<80x64xbf16> to vector<1x80x64xbf16>
    tpu.vector_store %arg6[%c0_6, %c0_7, %c0_8], %10 {strides = array<i32>} : memref<1x80x64xbf16, #tpu.memory_space<vmem>>, vector<1x80x64xbf16>,
    %cst_9 = arith.constant dense<0.000000e+00> : vector<64xf32>
    %11 = vector.multi_reduction <add>, %6, %cst_9 [0] : vector<80x64xf32> to vector<64xf32>
    %12 = vector.shape_cast %11 : vector<64xf32> to vector<1x64xf32>
    %c0_10 = arith.constant 0 : index
    %c0_11 = arith.constant 0 : index
    %c0_12 = arith.constant 0 : index
    %c0_13 = arith.constant 0 : index
    %13 = vector.load %arg7[%c0_10, %c0_11, %c0_12, %c0_13] : memref<1x1x2x64xf32, #tpu.memory_space<vmem>>, vector<1x1x1x64xf32>
    %14 = vector.shape_cast %13 : vector<1x1x1x64xf32> to vector<1x64xf32>
    %15 = vector.shape_cast %12 : vector<1x64xf32> to vector<1x1x1x64xf32>
    tpu.vector_store %arg7[%c0_10, %c0_11, %c0_12, %c0_13], %15 {strides = array<i32>} : memref<1x1x2x64xf32, #tpu.memory_space<vmem>>, vector<1x1x1x64xf32>,
    %16 = arith.mulf %6, %6 : vector<80x64xf32>
    %cst_14 = arith.constant dense<0.000000e+00> : vector<64xf32>
    %17 = vector.multi_reduction <add>, %16, %cst_14 [0] : vector<80x64xf32> to vector<64xf32>
    %18 = vector.shape_cast %17 : vector<64xf32> to vector<1x64xf32>
    %c0_15 = arith.constant 0 : index
    %c0_16 = arith.constant 0 : index
    %c1 = arith.constant 1 : index
    %c0_17 = arith.constant 0 : index
    %19 = vector.load %arg7[%c0_15, %c0_16, %c1, %c0_17] : memref<1x1x2x64xf32, #tpu.memory_space<vmem>>, vector<1x1x1x64xf32>
    %20 = vector.shape_cast %19 : vector<1x1x1x64xf32> to vector<1x64xf32>
    %21 = vector.shape_cast %18 : vector<1x64xf32> to vector<1x1x1x64xf32>
    tpu.vector_store %arg7[%c0_15, %c0_16, %c1, %c0_17], %21 {strides = array<i32>} : memref<1x1x2x64xf32, #tpu.memory_space<vmem>>, vector<1x1x1x64xf32>,
    return
  }
  func.func @transform_0(%arg0: i32, %arg1: i32, %arg2: i32) -> (i32, i32, i32) {
    %c0_i32 = arith.constant 0 : i32
    %c0_i32_0 = arith.constant 0 : i32
    return %arg0, %arg1, %c0_i32 : i32, i32, i32
  }
  func.func @transform_1(%arg0: i32, %arg1: i32, %arg2: i32) -> (i32, i32) {
    %c0_i32 = arith.constant 0 : i32
    %c0_i32_0 = arith.constant 0 : i32
    return %c0_i32, %arg2 : i32, i32
  }
  func.func @transform_2(%arg0: i32, %arg1: i32, %arg2: i32) -> (i32, i32) {
    %c0_i32 = arith.constant 0 : i32
    %c0_i32_0 = arith.constant 0 : i32
    return %c0_i32, %arg2 : i32, i32
  }
  func.func @transform_3(%arg0: i32, %arg1: i32, %arg2: i32) -> (i32, i32, i32) {
    %c0_i32 = arith.constant 0 : i32
    return %arg0, %arg1, %arg2 : i32, i32, i32
  }
  func.func @transform_4(%arg0: i32, %arg1: i32, %arg2: i32) -> (i32, i32, i32, i32) {
    %c0_i32 = arith.constant 0 : i32
    %c0_i32_0 = arith.constant 0 : i32
    return %arg0, %arg1, %c0_i32, %arg2 : i32, i32, i32, i32
  }
}

module attributes {stable_mosaic.version = 11 : i64} {
  func.func @_deconv_in_stats_kernel(%arg0: i32, %arg1: i32, %arg2: i32, %arg3: memref<1x496x64xbf16, #tpu.memory_space<vmem>>, %arg4: memref<64x64xbf16, #tpu.memory_space<vmem>>, %arg5: memref<1x64xf32, #tpu.memory_space<vmem>>, %arg6: memref<1x496x64xbf16, #tpu.memory_space<vmem>>, %arg7: memref<1x1x2x64xf32, #tpu.memory_space<vmem>>) attributes {dimension_semantics = [#tpu.dimension_semantics<parallel>, #tpu.dimension_semantics<parallel>, #tpu.dimension_semantics<arbitrary>], iteration_bounds = array<i64: 2, 1, 1>, scalar_prefetch = 0 : i64, scratch_operands = 0 : i64, tpu.core_type = #tpu.core_type<tc>, window_params = [{transform_indices = @transform_0, window_bounds = array<i64: 1, 496, 64>}, {transform_indices = @transform_1, window_bounds = array<i64: 64, 64>}, {transform_indices = @transform_2, window_bounds = array<i64: 1, 64>}, {transform_indices = @transform_3, window_bounds = array<i64: 1, 496, 64>}, {transform_indices = @transform_4, window_bounds = array<i64: 1, 1, 2, 64>}]} {
    %c0 = arith.constant 0 : index
    %c0_0 = arith.constant 0 : index
    %c0_1 = arith.constant 0 : index
    %0 = vector.load %arg3[%c0, %c0_0, %c0_1] : memref<1x496x64xbf16, #tpu.memory_space<vmem>>, vector<1x496x64xbf16>
    %1 = vector.shape_cast %0 : vector<1x496x64xbf16> to vector<496x64xbf16>
    %c0_2 = arith.constant 0 : index
    %c0_3 = arith.constant 0 : index
    %2 = vector.load %arg4[%c0_2, %c0_3] : memref<64x64xbf16, #tpu.memory_space<vmem>>, vector<64x64xbf16>
    %cst = arith.constant dense<0.000000e+00> : vector<496x64xf32>
    %3 = tpu.matmul %1, %2, %cst {dimension_numbers = #tpu.dot_dimension_numbers<[1], [0], [0], [1], [0, 0, 1, 1], [], []>} : vector<496x64xbf16>, vector<64x64xbf16>, vector<496x64xf32> -> vector<496x64xf32>
    %c0_4 = arith.constant 0 : index
    %c0_5 = arith.constant 0 : index
    %4 = vector.load %arg5[%c0_4, %c0_5] : memref<1x64xf32, #tpu.memory_space<vmem>>, vector<1x64xf32>
    %5 = vector.broadcast %4 : vector<1x64xf32> to vector<496x64xf32>
    %6 = arith.addf %3, %5 : vector<496x64xf32>
    %7 = arith.truncf %6 : vector<496x64xf32> to vector<496x64xbf16>
    %c0_6 = arith.constant 0 : index
    %c0_7 = arith.constant 0 : index
    %c0_8 = arith.constant 0 : index
    %8 = vector.load %arg6[%c0_6, %c0_7, %c0_8] : memref<1x496x64xbf16, #tpu.memory_space<vmem>>, vector<1x496x64xbf16>
    %9 = vector.shape_cast %8 : vector<1x496x64xbf16> to vector<496x64xbf16>
    %10 = vector.shape_cast %7 : vector<496x64xbf16> to vector<1x496x64xbf16>
    tpu.vector_store %arg6[%c0_6, %c0_7, %c0_8], %10 {strides = array<i32>} : memref<1x496x64xbf16, #tpu.memory_space<vmem>>, vector<1x496x64xbf16>,
    %cst_9 = arith.constant dense<0.000000e+00> : vector<64xf32>
    %11 = vector.multi_reduction <add>, %6, %cst_9 [0] : vector<496x64xf32> to vector<64xf32>
    %12 = vector.shape_cast %11 : vector<64xf32> to vector<1x64xf32>
    %c0_10 = arith.constant 0 : index
    %c0_11 = arith.constant 0 : index
    %c0_12 = arith.constant 0 : index
    %c0_13 = arith.constant 0 : index
    %13 = vector.load %arg7[%c0_10, %c0_11, %c0_12, %c0_13] : memref<1x1x2x64xf32, #tpu.memory_space<vmem>>, vector<1x1x1x64xf32>
    %14 = vector.shape_cast %13 : vector<1x1x1x64xf32> to vector<1x64xf32>
    %15 = vector.shape_cast %12 : vector<1x64xf32> to vector<1x1x1x64xf32>
    tpu.vector_store %arg7[%c0_10, %c0_11, %c0_12, %c0_13], %15 {strides = array<i32>} : memref<1x1x2x64xf32, #tpu.memory_space<vmem>>, vector<1x1x1x64xf32>,
    %16 = arith.mulf %6, %6 : vector<496x64xf32>
    %cst_14 = arith.constant dense<0.000000e+00> : vector<64xf32>
    %17 = vector.multi_reduction <add>, %16, %cst_14 [0] : vector<496x64xf32> to vector<64xf32>
    %18 = vector.shape_cast %17 : vector<64xf32> to vector<1x64xf32>
    %c0_15 = arith.constant 0 : index
    %c0_16 = arith.constant 0 : index
    %c1 = arith.constant 1 : index
    %c0_17 = arith.constant 0 : index
    %19 = vector.load %arg7[%c0_15, %c0_16, %c1, %c0_17] : memref<1x1x2x64xf32, #tpu.memory_space<vmem>>, vector<1x1x1x64xf32>
    %20 = vector.shape_cast %19 : vector<1x1x1x64xf32> to vector<1x64xf32>
    %21 = vector.shape_cast %18 : vector<1x64xf32> to vector<1x1x1x64xf32>
    tpu.vector_store %arg7[%c0_15, %c0_16, %c1, %c0_17], %21 {strides = array<i32>} : memref<1x1x2x64xf32, #tpu.memory_space<vmem>>, vector<1x1x1x64xf32>,
    return
  }
  func.func @transform_0(%arg0: i32, %arg1: i32, %arg2: i32) -> (i32, i32, i32) {
    %c0_i32 = arith.constant 0 : i32
    %c0_i32_0 = arith.constant 0 : i32
    return %arg0, %arg1, %c0_i32 : i32, i32, i32
  }
  func.func @transform_1(%arg0: i32, %arg1: i32, %arg2: i32) -> (i32, i32) {
    %c0_i32 = arith.constant 0 : i32
    %c0_i32_0 = arith.constant 0 : i32
    return %c0_i32, %arg2 : i32, i32
  }
  func.func @transform_2(%arg0: i32, %arg1: i32, %arg2: i32) -> (i32, i32) {
    %c0_i32 = arith.constant 0 : i32
    %c0_i32_0 = arith.constant 0 : i32
    return %c0_i32, %arg2 : i32, i32
  }
  func.func @transform_3(%arg0: i32, %arg1: i32, %arg2: i32) -> (i32, i32, i32) {
    %c0_i32 = arith.constant 0 : i32
    return %arg0, %arg1, %arg2 : i32, i32, i32
  }
  func.func @transform_4(%arg0: i32, %arg1: i32, %arg2: i32) -> (i32, i32, i32, i32) {
    %c0_i32 = arith.constant 0 : i32
    %c0_i32_0 = arith.constant 0 : i32
    return %arg0, %arg1, %c0_i32, %arg2 : i32, i32, i32, i32
  }
}

module attributes {stable_mosaic.version = 11 : i64} {
  func.func @_deconv_in_stats_kernel(%arg0: i32, %arg1: i32, %arg2: i32, %arg3: memref<1x512x64xbf16, #tpu.memory_space<vmem>>, %arg4: memref<64x32xbf16, #tpu.memory_space<vmem>>, %arg5: memref<1x32xf32, #tpu.memory_space<vmem>>, %arg6: memref<1x512x32xbf16, #tpu.memory_space<vmem>>, %arg7: memref<1x1x2x32xf32, #tpu.memory_space<vmem>>) attributes {dimension_semantics = [#tpu.dimension_semantics<parallel>, #tpu.dimension_semantics<parallel>, #tpu.dimension_semantics<arbitrary>], iteration_bounds = array<i64: 2, 8, 1>, scalar_prefetch = 0 : i64, scratch_operands = 0 : i64, tpu.core_type = #tpu.core_type<tc>, window_params = [{transform_indices = @transform_0, window_bounds = array<i64: 1, 512, 64>}, {transform_indices = @transform_1, window_bounds = array<i64: 64, 32>}, {transform_indices = @transform_2, window_bounds = array<i64: 1, 32>}, {transform_indices = @transform_3, window_bounds = array<i64: 1, 512, 32>}, {transform_indices = @transform_4, window_bounds = array<i64: 1, 1, 2, 32>}]} {
    %c0 = arith.constant 0 : index
    %c0_0 = arith.constant 0 : index
    %c0_1 = arith.constant 0 : index
    %0 = vector.load %arg3[%c0, %c0_0, %c0_1] : memref<1x512x64xbf16, #tpu.memory_space<vmem>>, vector<1x512x64xbf16>
    %1 = vector.shape_cast %0 : vector<1x512x64xbf16> to vector<512x64xbf16>
    %c0_2 = arith.constant 0 : index
    %c0_3 = arith.constant 0 : index
    %2 = vector.load %arg4[%c0_2, %c0_3] : memref<64x32xbf16, #tpu.memory_space<vmem>>, vector<64x32xbf16>
    %cst = arith.constant dense<0.000000e+00> : vector<512x32xf32>
    %3 = tpu.matmul %1, %2, %cst {dimension_numbers = #tpu.dot_dimension_numbers<[1], [0], [0], [1], [0, 0, 1, 1], [], []>} : vector<512x64xbf16>, vector<64x32xbf16>, vector<512x32xf32> -> vector<512x32xf32>
    %c0_4 = arith.constant 0 : index
    %c0_5 = arith.constant 0 : index
    %4 = vector.load %arg5[%c0_4, %c0_5] : memref<1x32xf32, #tpu.memory_space<vmem>>, vector<1x32xf32>
    %5 = vector.broadcast %4 : vector<1x32xf32> to vector<512x32xf32>
    %6 = arith.addf %3, %5 : vector<512x32xf32>
    %7 = arith.truncf %6 : vector<512x32xf32> to vector<512x32xbf16>
    %c0_6 = arith.constant 0 : index
    %c0_7 = arith.constant 0 : index
    %c0_8 = arith.constant 0 : index
    %8 = vector.load %arg6[%c0_6, %c0_7, %c0_8] : memref<1x512x32xbf16, #tpu.memory_space<vmem>>, vector<1x512x32xbf16>
    %9 = vector.shape_cast %8 : vector<1x512x32xbf16> to vector<512x32xbf16>
    %10 = vector.shape_cast %7 : vector<512x32xbf16> to vector<1x512x32xbf16>
    tpu.vector_store %arg6[%c0_6, %c0_7, %c0_8], %10 {strides = array<i32>} : memref<1x512x32xbf16, #tpu.memory_space<vmem>>, vector<1x512x32xbf16>,
    %cst_9 = arith.constant dense<0.000000e+00> : vector<32xf32>
    %11 = vector.multi_reduction <add>, %6, %cst_9 [0] : vector<512x32xf32> to vector<32xf32>
    %12 = vector.shape_cast %11 : vector<32xf32> to vector<1x32xf32>
    %c0_10 = arith.constant 0 : index
    %c0_11 = arith.constant 0 : index
    %c0_12 = arith.constant 0 : index
    %c0_13 = arith.constant 0 : index
    %13 = vector.load %arg7[%c0_10, %c0_11, %c0_12, %c0_13] : memref<1x1x2x32xf32, #tpu.memory_space<vmem>>, vector<1x1x1x32xf32>
    %14 = vector.shape_cast %13 : vector<1x1x1x32xf32> to vector<1x32xf32>
    %15 = vector.shape_cast %12 : vector<1x32xf32> to vector<1x1x1x32xf32>
    tpu.vector_store %arg7[%c0_10, %c0_11, %c0_12, %c0_13], %15 {strides = array<i32>} : memref<1x1x2x32xf32, #tpu.memory_space<vmem>>, vector<1x1x1x32xf32>,
    %16 = arith.mulf %6, %6 : vector<512x32xf32>
    %cst_14 = arith.constant dense<0.000000e+00> : vector<32xf32>
    %17 = vector.multi_reduction <add>, %16, %cst_14 [0] : vector<512x32xf32> to vector<32xf32>
    %18 = vector.shape_cast %17 : vector<32xf32> to vector<1x32xf32>
    %c0_15 = arith.constant 0 : index
    %c0_16 = arith.constant 0 : index
    %c1 = arith.constant 1 : index
    %c0_17 = arith.constant 0 : index
    %19 = vector.load %arg7[%c0_15, %c0_16, %c1, %c0_17] : memref<1x1x2x32xf32, #tpu.memory_space<vmem>>, vector<1x1x1x32xf32>
    %20 = vector.shape_cast %19 : vector<1x1x1x32xf32> to vector<1x32xf32>
    %21 = vector.shape_cast %18 : vector<1x32xf32> to vector<1x1x1x32xf32>
    tpu.vector_store %arg7[%c0_15, %c0_16, %c1, %c0_17], %21 {strides = array<i32>} : memref<1x1x2x32xf32, #tpu.memory_space<vmem>>, vector<1x1x1x32xf32>,
    return
  }
  func.func @transform_0(%arg0: i32, %arg1: i32, %arg2: i32) -> (i32, i32, i32) {
    %c0_i32 = arith.constant 0 : i32
    %c0_i32_0 = arith.constant 0 : i32
    return %arg0, %arg1, %c0_i32 : i32, i32, i32
  }
  func.func @transform_1(%arg0: i32, %arg1: i32, %arg2: i32) -> (i32, i32) {
    %c0_i32 = arith.constant 0 : i32
    %c0_i32_0 = arith.constant 0 : i32
    return %c0_i32, %arg2 : i32, i32
  }
  func.func @transform_2(%arg0: i32, %arg1: i32, %arg2: i32) -> (i32, i32) {
    %c0_i32 = arith.constant 0 : i32
    %c0_i32_0 = arith.constant 0 : i32
    return %c0_i32, %arg2 : i32, i32
  }
  func.func @transform_3(%arg0: i32, %arg1: i32, %arg2: i32) -> (i32, i32, i32) {
    %c0_i32 = arith.constant 0 : i32
    return %arg0, %arg1, %arg2 : i32, i32, i32
  }
  func.func @transform_4(%arg0: i32, %arg1: i32, %arg2: i32) -> (i32, i32, i32, i32) {
    %c0_i32 = arith.constant 0 : i32
    %c0_i32_0 = arith.constant 0 : i32
    return %arg0, %arg1, %c0_i32, %arg2 : i32, i32, i32, i32
  }
}

module attributes {stable_mosaic.version = 11 : i64} {
  func.func @_deconv_tanh_kernel(%arg0: i32, %arg1: i32, %arg2: i32, %arg3: memref<1x512x32xbf16, #tpu.memory_space<vmem>>, %arg4: memref<32x8xbf16, #tpu.memory_space<vmem>>, %arg5: memref<1x8xf32, #tpu.memory_space<vmem>>, %arg6: memref<1x512x8xf32, #tpu.memory_space<vmem>>) attributes {dimension_semantics = [#tpu.dimension_semantics<parallel>, #tpu.dimension_semantics<parallel>, #tpu.dimension_semantics<arbitrary>], iteration_bounds = array<i64: 2, 68, 1>, scalar_prefetch = 0 : i64, scratch_operands = 0 : i64, tpu.core_type = #tpu.core_type<tc>, window_params = [{transform_indices = @transform_0, window_bounds = array<i64: 1, 512, 32>}, {transform_indices = @transform_1, window_bounds = array<i64: 32, 8>}, {transform_indices = @transform_2, window_bounds = array<i64: 1, 8>}, {transform_indices = @transform_3, window_bounds = array<i64: 1, 512, 8>}]} {
    %c0 = arith.constant 0 : index
    %c0_0 = arith.constant 0 : index
    %c0_1 = arith.constant 0 : index
    %0 = vector.load %arg3[%c0, %c0_0, %c0_1] : memref<1x512x32xbf16, #tpu.memory_space<vmem>>, vector<1x512x32xbf16>
    %1 = vector.shape_cast %0 : vector<1x512x32xbf16> to vector<512x32xbf16>
    %c0_2 = arith.constant 0 : index
    %c0_3 = arith.constant 0 : index
    %2 = vector.load %arg4[%c0_2, %c0_3] : memref<32x8xbf16, #tpu.memory_space<vmem>>, vector<32x8xbf16>
    %cst = arith.constant dense<0.000000e+00> : vector<512x8xf32>
    %3 = tpu.matmul %1, %2, %cst {dimension_numbers = #tpu.dot_dimension_numbers<[1], [0], [0], [1], [0, 0, 1, 1], [], []>} : vector<512x32xbf16>, vector<32x8xbf16>, vector<512x8xf32> -> vector<512x8xf32>
    %c0_4 = arith.constant 0 : index
    %c0_5 = arith.constant 0 : index
    %4 = vector.load %arg5[%c0_4, %c0_5] : memref<1x8xf32, #tpu.memory_space<vmem>>, vector<1x8xf32>
    %5 = vector.broadcast %4 : vector<1x8xf32> to vector<512x8xf32>
    %6 = arith.addf %3, %5 : vector<512x8xf32>
    %7 = math.tanh %6 : vector<512x8xf32>
    %c0_6 = arith.constant 0 : index
    %c0_7 = arith.constant 0 : index
    %c0_8 = arith.constant 0 : index
    %8 = vector.load %arg6[%c0_6, %c0_7, %c0_8] : memref<1x512x8xf32, #tpu.memory_space<vmem>>, vector<1x512x8xf32>
    %9 = vector.shape_cast %8 : vector<1x512x8xf32> to vector<512x8xf32>
    %10 = vector.shape_cast %7 : vector<512x8xf32> to vector<1x512x8xf32>
    tpu.vector_store %arg6[%c0_6, %c0_7, %c0_8], %10 {strides = array<i32>} : memref<1x512x8xf32, #tpu.memory_space<vmem>>, vector<1x512x8xf32>,
    return
  }
  func.func @transform_0(%arg0: i32, %arg1: i32, %arg2: i32) -> (i32, i32, i32) {
    %c0_i32 = arith.constant 0 : i32
    %c0_i32_0 = arith.constant 0 : i32
    return %arg0, %arg1, %c0_i32 : i32, i32, i32
  }
  func.func @transform_1(%arg0: i32, %arg1: i32, %arg2: i32) -> (i32, i32) {
    %c0_i32 = arith.constant 0 : i32
    %c0_i32_0 = arith.constant 0 : i32
    return %c0_i32, %arg2 : i32, i32
  }
  func.func @transform_2(%arg0: i32, %arg1: i32, %arg2: i32) -> (i32, i32) {
    %c0_i32 = arith.constant 0 : i32
    %c0_i32_0 = arith.constant 0 : i32
    return %c0_i32, %arg2 : i32, i32
  }
  func.func @transform_3(%arg0: i32, %arg1: i32, %arg2: i32) -> (i32, i32, i32) {
    %c0_i32 = arith.constant 0 : i32
    return %arg0, %arg1, %arg2 : i32, i32, i32
  }
}

</mosaic_0001>

<llo_original>
// kernel: decoder_forward.5
$region0: #{decoder_forward.5}
  #allocation0 [shape = 'u32[]', space=smem, size = 0x4, offset = 0x4, fixed_abs, tag = 'smem constant byte address 0x4 - core index']
  #allocation1 [shape = 'u32[144,128]{1,0:T(1,128)}', space=vmem, size = 0x12000, scoped, tag = 'internal scratch']
  %s0 = inlined_call_operand.vmem [shape: bf16[2,16,128], index: 0, kind: input, shape index: {}]
  %s1 = inlined_call_operand.vmem [shape: bf16[128,128], index: 1, kind: input, shape index: {}]
  %s2 = inlined_call_operand.vmem [shape: f32[1,128], index: 2, kind: input, shape index: {}]
  %s3 = inlined_call_operand.vmem [shape: bf16[2,16,128], index: 3, kind: output, shape index: {0}]
  %s4 = inlined_call_operand.vmem [shape: f32[2,1,2,128], index: 4, kind: output, shape index: {1}]
  %5 = xla_tuple %s3, %s4
  %s6 = sld [smem:[#allocation0]]
  $region53: #{decoder_forward.5} parent=0
    _
  %s8 = ssub.s32 1, %s6
  %s9 = scalar_select 0, %s8, %s6
  loop: start=0, step=1, limit=4
  $region2: #{decoder_forward.5} parent=0 // loop_pre_header
    _
  $region3: #{decoder_forward.5} parent=0 // loop_header
    %s11 = sphi 0, %s15
    %p12 = scmp.ge.s32.totalorder %s11, 4
    %s18 = sphi 0, %s37
    %s19 = sphi 0, %s33
    %s20 = sphi 0, %s29
    %s21 = sphi 0, %s18
    %s22 = sphi 0, %s19
    %s23 = sphi 0, %s20
    %s24 = sphi 0, %s21
    %s25 = sphi 0, %s22
    %s26 = sphi 0, %s23
    %s42 = sphi 0, %s44
    %s45 = sphi 0, %s42
    %s46 = sphi 0, %s45
    %s62 = sphi 0, %s46
    %s68 = sphi 0, %s70
    %s71 = sphi 0, %s68
    %s72 = sphi 0, %s71
    %s88 = sphi 0, %s72
    %s94 = sphi 0, %s96
    %s97 = sphi 0, %s94
    %s98 = sphi 0, %s97
    %s114 = sphi 0, %s98
    %s124 = sphi 0, %s126
    %s127 = sphi 0, %s124
    %s128 = sphi 0, %s127
    %s144 = sphi 0, %s128
    %s154 = sphi 0, %s156
    %s157 = sphi 0, %s154
    %s158 = sphi 0, %s157
    %s174 = sphi 0, %s158
  $region4: #{decoder_forward.5} parent=0 // loop_header_branch
    %14 = sbr.rel (%p12) target = $region8
  $region5: #{decoder_forward.5} parent=0 // loop_body
    %s16 = ssub.s32 %s11, 1
    %s17 = ssub.s32 %s11, 2
    %s27 = sadd.s32 1, %s20
    %p28 = scmp.ge.s32.totalorder %s27, 1
    %s29 = scalar_select %p28, 0, %s27
    %s30 = sadd.s32 1, %s19
    %s31 = scalar_select %p28, %s30, %s19
    %p32 = scmp.ge.s32.totalorder %s31, 1
    %s33 = scalar_select %p32, 0, %s31
    %s34 = sadd.s32 1, %s18
    %s35 = scalar_select %p32, %s34, %s18
    %p36 = scmp.ge.s32.totalorder %s35, 2
    %s37 = scalar_select %p36, 0, %s35
    %s38 = ssub.s32 %s18, %s37
    %s39 = ssub.s32 %s19, %s33
    %s40 = sor.u32 %s38, %s39
    %p41 = scmp.eq.s32.totalorder %s40, 0
    %s43 = sadd.s32 %s42, 1
    %s44 = scalar_select %p41, %s42, %s43
    %p47 = pneg %p41
    %p48 = scmp.eq.s32.totalorder %s11, 1
    %p49 = por %p47, %p48
    %p50 = scmp.ne.s32.totalorder %s42, %s45
    %p51 = scmp.eq.s32.totalorder %s11, 0
    %p52 = por %p50, %p51
    %p53 = scmp.ne.s32.totalorder %s42, %s45
    %p54 = scmp.eq.s32.totalorder %s16, 1
    %p55 = por %p53, %p54
    %p56 = scmp.ne.s32.totalorder %s45, %s46
    %p57 = scmp.eq.s32.totalorder %s16, 0
    %p58 = por %p56, %p57
    %p59 = scmp.ne.s32.totalorder %s45, %s46
    %p60 = scmp.eq.s32.totalorder %s17, 1
    %p61 = por %p59, %p60
    %p63 = scmp.ne.s32.totalorder %s46, %s62
    %p64 = scmp.eq.s32.totalorder %s17, 0
    %p65 = por %p63, %p64
    %s66 = ssub.s32 %s20, %s29
    %p67 = scmp.eq.s32.totalorder %s66, 0
    %s69 = sadd.s32 %s68, 1
    %s70 = scalar_select %p67, %s68, %s69
    %p73 = pneg %p67
    %p74 = scmp.eq.s32.totalorder %s11, 1
    %p75 = por %p73, %p74
    %p76 = scmp.ne.s32.totalorder %s68, %s71
    %p77 = scmp.eq.s32.totalorder %s11, 0
    %p78 = por %p76, %p77
    %p79 = scmp.ne.s32.totalorder %s68, %s71
    %p80 = scmp.eq.s32.totalorder %s16, 1
    %p81 = por %p79, %p80
    %p82 = scmp.ne.s32.totalorder %s71, %s72
    %p83 = scmp.eq.s32.totalorder %s16, 0
    %p84 = por %p82, %p83
    %p85 = scmp.ne.s32.totalorder %s71, %s72
    %p86 = scmp.eq.s32.totalorder %s17, 1
    %p87 = por %p85, %p86
    %p89 = scmp.ne.s32.totalorder %s72, %s88
    %p90 = scmp.eq.s32.totalorder %s17, 0
    %p91 = por %p89, %p90
    %s92 = ssub.s32 %s20, %s29
    %p93 = scmp.eq.s32.totalorder %s92, 0
    %s95 = sadd.s32 %s94, 1
    %s96 = scalar_select %p93, %s94, %s95
    %p99 = pneg %p93
    %p100 = scmp.eq.s32.totalorder %s11, 1
    %p101 = por %p99, %p100
    %p102 = scmp.ne.s32.totalorder %s94, %s97
    %p103 = scmp.eq.s32.totalorder %s11, 0
    %p104 = por %p102, %p103
    %p105 = scmp.ne.s32.totalorder %s94, %s97
    %p106 = scmp.eq.s32.totalorder %s16, 1
    %p107 = por %p105, %p106
    %p108 = scmp.ne.s32.totalorder %s97, %s98
    %p109 = scmp.eq.s32.totalorder %s16, 0
    %p110 = por %p108, %p109
    %p111 = scmp.ne.s32.totalorder %s97, %s98
    %p112 = scmp.eq.s32.totalorder %s17, 1
    %p113 = por %p111, %p112
    %p115 = scmp.ne.s32.totalorder %s98, %s114
    %p116 = scmp.eq.s32.totalorder %s17, 0
    %p117 = por %p115, %p116
    %s118 = ssub.s32 %s18, %s37
    %s119 = ssub.s32 %s19, %s33
    %s120 = sor.u32 %s118, %s119
    %s121 = ssub.s32 %s20, %s29
    %s122 = sor.u32 %s120, %s121
    %p123 = scmp.eq.s32.totalorder %s122, 0
    %s125 = sadd.s32 %s124, 1
    %s126 = scalar_select %p123, %s124, %s125
    %p129 = pneg %p123
    %p130 = scmp.eq.s32.totalorder %s11, 1
    %p131 = por %p129, %p130
    %p132 = scmp.ne.s32.totalorder %s124, %s127
    %p133 = scmp.eq.s32.totalorder %s11, 0
    %p134 = por %p132, %p133
    %p135 = scmp.ne.s32.totalorder %s124, %s127
    %p136 = scmp.eq.s32.totalorder %s16, 1
    %p137 = por %p135, %p136
    %p138 = scmp.ne.s32.totalorder %s127, %s128
    %p139 = scmp.eq.s32.totalorder %s16, 0
    %p140 = por %p138, %p139
    %p141 = scmp.ne.s32.totalorder %s127, %s128
    %p142 = scmp.eq.s32.totalorder %s17, 1
    %p143 = por %p141, %p142
    %p145 = scmp.ne.s32.totalorder %s128, %s144
    %p146 = scmp.eq.s32.totalorder %s17, 0
    %p147 = por %p145, %p146
    %s148 = ssub.s32 %s18, %s37
    %s149 = ssub.s32 %s19, %s33
    %s150 = sor.u32 %s148, %s149
    %s151 = ssub.s32 %s20, %s29
    %s152 = sor.u32 %s150, %s151
    %p153 = scmp.eq.s32.totalorder %s152, 0
    %s155 = sadd.s32 %s154, 1
    %s156 = scalar_select %p153, %s154, %s155
    %p159 = pneg %p153
    %p160 = scmp.eq.s32.totalorder %s11, 1
    %p161 = por %p159, %p160
    %p162 = scmp.ne.s32.totalorder %s154, %s157
    %p163 = scmp.eq.s32.totalorder %s11, 0
    %p164 = por %p162, %p163
    %p165 = scmp.ne.s32.totalorder %s154, %s157
    %p166 = scmp.eq.s32.totalorder %s16, 1
    %p167 = por %p165, %p166
    %p168 = scmp.ne.s32.totalorder %s157, %s158
    %p169 = scmp.eq.s32.totalorder %s16, 0
    %p170 = por %p168, %p169
    %p171 = scmp.ne.s32.totalorder %s157, %s158
    %p172 = scmp.eq.s32.totalorder %s17, 1
    %p173 = por %p171, %p172
    %p175 = scmp.ne.s32.totalorder %s158, %s174
    %p176 = scmp.eq.s32.totalorder %s17, 0
    %p177 = por %p175, %p176
    %p178 = scmp.le.s32.totalorder 1, %s11
    %p179 = scmp.lt.s32.totalorder %s11, 3
    %p180 = pnand %p178, %p179
    %p181 = pneg %p180
    // Predicated region
    $region9: #{decoder_forward.5} parent=5 // pred_check
      _
    $region10: #{decoder_forward.5} parent=5 // pred_check_branch
      %183 = sbr.rel (%p180) target = $region12
    $region11: #{decoder_forward.5} parent=5 // pred_region
      %s184 = ssub.s32 %s11, 1
      // Predicated region
      $region13: #{decoder_forward.5} parent=11 // pred_check
        %p185 = pneg %p84
      $region14: #{decoder_forward.5} parent=11 // pred_check_branch
        %187 = sbr.rel (%p185) target = $region16
      $region15: #{decoder_forward.5} parent=11 // pred_region
        %p188 = scmp.lt.s32.totalorder %s23, 0
        %s189 = scalar_select %p188, %s23, 0
        %s190 = smul.addr %s189, 4
        %s191 = scalar_lea.vmem %s1, %s190
      $region16: #{decoder_forward.5} parent=11 // pred_fallthru
        _
      // Predicated region
      $region17: #{decoder_forward.5} parent=11 // pred_check
        %p192 = pneg %p110
      $region18: #{decoder_forward.5} parent=11 // pred_check_branch
        %194 = sbr.rel (%p192) target = $region20
      $region19: #{decoder_forward.5} parent=11 // pred_region
        %p195 = scmp.lt.s32.totalorder %s23, 0
        %s196 = scalar_select %p195, %s23, 0
        %s197 = scalar_lea.vmem %s2, %s196
      $region20: #{decoder_forward.5} parent=11 // pred_fallthru
        _
    $region12: #{decoder_forward.5} parent=5 // pred_fallthru
      _
    %p198 = scmp.lt.s32.totalorder %s11, 2
    // Predicated region
    $region21: #{decoder_forward.5} parent=5 // pred_check
      %p199 = pneg %p198
    $region22: #{decoder_forward.5} parent=5 // pred_check_branch
      %201 = sbr.rel (%p199) target = $region24
    $region23: #{decoder_forward.5} parent=5 // pred_region
      // Predicated region
      $region25: #{decoder_forward.5} parent=23 // pred_check
        %p202 = pneg %p52
      $region26: #{decoder_forward.5} parent=23 // pred_check_branch
        %204 = sbr.rel (%p202) target = $region28
      $region27: #{decoder_forward.5} parent=23 // pred_region
        %s205 = smul.u32 2, %s19
        %p206 = scmp.lt.s32.totalorder %s18, 1
        %s207 = scalar_select %p206, %s18, 1
        %p208 = scmp.lt.s32.totalorder %s205, 1
        %s209 = scalar_select %p208, %s205, 1
        %s210 = smul.addr %s207, 2
        %s211 = sadd.s32 %s209, %s210
        %s212 = smul.addr %s211, 4
        %s213 = scalar_lea.vmem %s0, %s212
        %s214 = smul.u32 2, %s19
      $region28: #{decoder_forward.5} parent=23 // pred_fallthru
        _
    $region24: #{decoder_forward.5} parent=5 // pred_fallthru
      _
    %p215 = scmp.le.s32.totalorder 1, %s11
    %p216 = scmp.lt.s32.totalorder %s11, 3
    %p217 = pnand %p215, %p216
    %p218 = pneg %p217
    // Predicated region
    $region29: #{decoder_forward.5} parent=5 // pred_check
      _
    $region30: #{decoder_forward.5} parent=5 // pred_check_branch
      %220 = sbr.rel (%p217) target = $region32
    $region31: #{decoder_forward.5} parent=5 // pred_region
      %s221 = ssub.s32 %s11, 1
      %s222 = smul.u32 2, %s22
      %p223 = scmp.lt.s32.totalorder %s21, 1
      %s224 = scalar_select %p223, %s21, 1
      %p225 = scmp.lt.s32.totalorder %s222, 1
      %s226 = scalar_select %p225, %s222, 1
      %s227 = smul.addr %s224, 2
      %s228 = sadd.s32 %s226, %s227
      %s229 = smul.addr %s228, 4
      %s230 = scalar_lea.vmem %s0, %s229
      %p231 = pneg %p58
      %p232 = pneg %p55
      %p233 = scmp.lt.s32.totalorder %s23, 0
      %s234 = scalar_select %p233, %s23, 0
      %s235 = smul.addr %s234, 4
      %s236 = scalar_lea.vmem %s1, %s235
      %p237 = pneg %p84
      %p238 = pneg %p81
      %p239 = scmp.lt.s32.totalorder %s23, 0
      %s240 = scalar_select %p239, %s23, 0
      %s241 = scalar_lea.vmem %s2, %s240
      %p242 = pneg %p110
      %p243 = pneg %p107
      %p244 = pneg %p140
      %p245 = pneg %p137
      %s246 = smul.u32 2, %s22
      %p247 = scmp.lt.s32.totalorder %s21, 1
      %s248 = scalar_select %p247, %s21, 1
      %p249 = scmp.lt.s32.totalorder %s246, 1
      %s250 = scalar_select %p249, %s246, 1
      %p251 = scmp.lt.s32.totalorder %s23, 0
      %s252 = scalar_select %p251, %s23, 0
      %s253 = sadd.s32 %s252, %s250
      %s254 = smul.addr %s248, 2
      %s255 = sadd.s32 %s253, %s254
      %s256 = smul.addr %s255, 4
      %s257 = scalar_lea.vmem %s3, %s256
      %p258 = pneg %p170
      %p259 = pneg %p167
      %p260 = scmp.lt.s32.totalorder %s21, 1
      %s261 = scalar_select %p260, %s21, 1
      %p262 = scmp.lt.s32.totalorder %s22, 0
      %s263 = scalar_select %p262, %s22, 0
      %p264 = scmp.lt.s32.totalorder %s23, 0
      %s265 = scalar_select %p264, %s23, 0
      %s266 = sadd.s32 %s265, %s263
      %s267 = sadd.s32 %s266, %s261
      %s268 = smul.addr %s267, 2
      %s269 = scalar_lea.vmem %s4, %s268
      %s270 = smul.u32 2, %s22
      %p271 = scmp.lt.s32.totalorder %s21, 1
      %s272 = scalar_select %p271, %s21, 1
      %p273 = scmp.lt.s32.totalorder %s270, 1
      %s274 = scalar_select %p273, %s270, 1
      %s275 = smul.addr %s272, 2
      %s276 = sadd.s32 %s274, %s275
      %s277 = smul.addr %s276, 4
      %s278 = scalar_lea.vmem %s0, %s277
      %s279 = smul.u32 2, %s22
      %p280 = scmp.lt.s32.totalorder %s23, 0
      %s281 = scalar_select %p280, %s23, 0
      %s282 = smul.addr %s281, 4
      %s283 = scalar_lea.vmem %s1, %s282
      %p284 = scmp.lt.s32.totalorder %s23, 0
      %s285 = scalar_select %p284, %s23, 0
      %s286 = scalar_lea.vmem %s2, %s285
      %s287 = smul.u32 2, %s22
      %p288 = scmp.lt.s32.totalorder %s21, 1
      %s289 = scalar_select %p288, %s21, 1
      %p290 = scmp.lt.s32.totalorder %s287, 1
      %s291 = scalar_select %p290, %s287, 1
      %p292 = scmp.lt.s32.totalorder %s23, 0
      %s293 = scalar_select %p292, %s23, 0
      %s294 = sadd.s32 %s293, %s291
      %s295 = smul.addr %s289, 2
      %s296 = sadd.s32 %s294, %s295
      %s297 = smul.addr %s296, 4
      %s298 = scalar_lea.vmem %s3, %s297
      %s299 = smul.u32 2, %s22
      %p300 = scmp.lt.s32.totalorder %s21, 1
      %s301 = scalar_select %p300, %s21, 1
      %p302 = scmp.lt.s32.totalorder %s22, 0
      %s303 = scalar_select %p302, %s22, 0
      %p304 = scmp.lt.s32.totalorder %s23, 0
      %s305 = scalar_select %p304, %s23, 0
      %s306 = sadd.s32 %s305, %s303
      %s307 = sadd.s32 %s306, %s301
      %s308 = smul.addr %s307, 2
      %s309 = scalar_lea.vmem %s4, %s308
      %v311 = vld [vmem:[%s278] sm:$0xf]
      %v312 = vld [vmem:[%s278 + $0x4] sm:$0xf]
      %v313 = vld [vmem:[%s283] sm:$0xf]
      %v314 = vld [vmem:[%s283 + $0x4] sm:$0xf]
      %v315 = vld [vmem:[%s283 + $0x8] sm:$0xf]
      %v316 = vld [vmem:[%s283 + $0xc] sm:$0xf]
      %v317 = vld [vmem:[%s283 + $0x10] sm:$0xf]
      %v318 = vld [vmem:[%s283 + $0x14] sm:$0xf]
      %v319 = vld [vmem:[%s283 + $0x18] sm:$0xf]
      %v320 = vld [vmem:[%s283 + $0x1c] sm:$0xf]
      %v321 = vld [vmem:[%s283 + $0x20] sm:$0xf]
      %v322 = vld [vmem:[%s283 + $0x24] sm:$0xf]
      %v323 = vld [vmem:[%s283 + $0x28] sm:$0xf]
      %v324 = vld [vmem:[%s283 + $0x2c] sm:$0xf]
      %v325 = vld [vmem:[%s283 + $0x30] sm:$0xf]
      %v326 = vld [vmem:[%s283 + $0x34] sm:$0xf]
      %v327 = vld [vmem:[%s283 + $0x38] sm:$0xf]
      %v328 = vld [vmem:[%s283 + $0x3c] sm:$0xf]
      %v329 = vld [vmem:[%s286] sm:$0x1]
      %v331 = vlaneseq
      %v332 = vshrl.u32 %v331, 7
      %v333 = vsub.s32 0, %v332
      %v334 = vrot.slane %v329, %v333
      %v338 = vunpack.c.l.b16 %v311
      %v339 = vunpack.c.l.b16 %v312
      %v340 = vpack.c.b16 %v339, %v338
      %v358 = vunpack.c.l.b16 %v313
      %v359 = vunpack.c.l.b16 %v314
      %v360 = vunpack.c.l.b16 %v315
      %v361 = vunpack.c.l.b16 %v316
      %v362 = vunpack.c.l.b16 %v317
      %v363 = vunpack.c.l.b16 %v318
      %v364 = vunpack.c.l.b16 %v319
      %v365 = vunpack.c.l.b16 %v320
      %v366 = vunpack.c.l.b16 %v321
      %v367 = vunpack.c.l.b16 %v322
      %v368 = vunpack.c.l.b16 %v323
      %v369 = vunpack.c.l.b16 %v324
      %v370 = vunpack.c.l.b16 %v325
      %v371 = vunpack.c.l.b16 %v326
      %v372 = vunpack.c.l.b16 %v327
      %v373 = vunpack.c.l.b16 %v328
      %v374 = vpack.c.b16 %v359, %v358
      %v375 = vpack.c.b16 %v361, %v360
      %v376 = vpack.c.b16 %v363, %v362
      %v377 = vpack.c.b16 %v365, %v364
      %v378 = vpack.c.b16 %v367, %v366
      %v379 = vpack.c.b16 %v369, %v368
      %v380 = vpack.c.b16 %v371, %v370
      %v381 = vpack.c.b16 %v373, %v372
      %390 = vmatprep.subr.bf16.mxu0 0
      %391 = vmatpush1.bf16.msra.mxu0 %v381
      %392 = vmatprep.subr.bf16.mxu0 0
      %393 = vmatpush1.bf16.msra.mxu0 %v380
      %394 = vmatprep.subr.bf16.mxu0 0
      %395 = vmatpush1.bf16.msra.mxu0 %v379
      %396 = vmatprep.subr.bf16.mxu0 0
      %397 = vmatpush1.bf16.msra.mxu0 %v378
      %398 = vmatprep.subr.bf16.mxu0 0
      %399 = vmatpush1.bf16.msra.mxu0 %v377
      %400 = vmatprep.subr.bf16.mxu0 0
      %401 = vmatpush1.bf16.msra.mxu0 %v376
      %402 = vmatprep.subr.bf16.mxu0 0
      %403 = vmatpush1.bf16.msra.mxu0 %v375
      %404 = vmatprep.subr.bf16.mxu0 0
      %405 = vmatpush1.bf16.msra.mxu0 %v374
      %406 = vmatprep.subr.bf16.mxu0 0
      %407 = vmatpush2.bf16.msra.mxu0 0
      %408 = vmatprep.subr.bf16.mxu0 0
      %409 = vmatpush2.bf16.msra.mxu0 0
      %410 = vmatprep.subr.bf16.mxu0 0
      %411 = vmatpush2.bf16.msra.mxu0 0
      %412 = vmatprep.subr.bf16.mxu0 0
      %413 = vmatpush2.bf16.msra.mxu0 0
      %414 = vmatprep.subr.bf16.mxu0 0
      %415 = vmatpush2.bf16.msra.mxu0 0
      %416 = vmatprep.subr.bf16.mxu0 0
      %417 = vmatpush2.bf16.msra.mxu0 0
      %418 = vmatprep.subr.bf16.mxu0 0
      %419 = vmatpush2.bf16.msra.mxu0 0
      %420 = vmatprep.subr.bf16.mxu0 0
      %421 = vmatpush2.bf16.msra.mxu0 0
      %422 = vmatprep.mubr.bf16.mxu0 0
      %423 = vmatmul.mubr.bf16.gmra.mxu0 %v340
      %v424 = vpop.f32.mrf.mxu0
      %v425 = vadd.f32 %v334, %v424
      %v426 = vpop.f32.mrf.mxu0
      %v427 = vpop.f32.mrf.mxu0
      %v428 = vadd.f32 %v334, %v427
      %v429 = vpop.f32.mrf.mxu0
      %430 = vdwg.mxu0
      %v431 = vpack.c.bf16 %v428, %v425
      %v433 = vunpack.c.l.b16 %v431
      %v434 = vunpack.c.h.b16 %v431
      %v435 = vpack.c.b16 %v433, %v433
      %v436 = vpack.c.b16 %v434, %v434
      %439 = vst [vmem:[%s298] sm:$0xf] %v435
      %440 = vst [vmem:[%s298 + $0x4] sm:$0xf] %v436
      %v441 = vadd.f32 %v425, %v428
      %v442 = vrot.slane %v441, 4
      %v443 = vadd.f32 %v441, %v442
      %v444 = vrot.slane %v443, 2
      %v445 = vadd.f32 %v443, %v444
      %v446 = vrot.slane %v445, 1
      %v447 = vadd.f32 %v445, %v446
      %448 = vst [vmem:[%s309] sm:$0x1] %v447
      %v449 = vmul.f32 %v425, %v425
      %v450 = vmul.f32 %v428, %v428
      %v451 = vadd.f32 %v449, %v450
      %v452 = vrot.slane %v451, 4
      %v453 = vadd.f32 %v451, %v452
      %v454 = vrot.slane %v453, 2
      %v455 = vadd.f32 %v453, %v454
      %v456 = vrot.slane %v455, 1
      %v457 = vadd.f32 %v455, %v456
      %458 = vst [vmem:[%s309 + $0x1] sm:$0x1] %v457
      %s459 = smul.u32 2, %s22
      %p460 = scmp.lt.s32.totalorder %s21, 1
      %s461 = scalar_select %p460, %s21, 1
      %p462 = scmp.lt.s32.totalorder %s459, 1
      %s463 = scalar_select %p462, %s459, 1
      %p464 = scmp.lt.s32.totalorder %s23, 0
      %s465 = scalar_select %p464, %s23, 0
      %s466 = sadd.s32 %s465, %s463
      %s467 = smul.addr %s461, 2
      %s468 = sadd.s32 %s466, %s467
      %s469 = smul.addr %s468, 4
      %s470 = scalar_lea.vmem %s3, %s469
      %p471 = scmp.lt.s32.totalorder %s21, 1
      %s472 = scalar_select %p471, %s21, 1
      %p473 = scmp.lt.s32.totalorder %s22, 0
      %s474 = scalar_select %p473, %s22, 0
      %p475 = scmp.lt.s32.totalorder %s23, 0
      %s476 = scalar_select %p475, %s23, 0
      %s477 = sadd.s32 %s476, %s474
      %s478 = sadd.s32 %s477, %s472
      %s479 = smul.addr %s478, 2
      %s480 = scalar_lea.vmem %s4, %s479
      // Predicated region
      $region33: #{decoder_forward.5} parent=31 // pred_check
        %p481 = pneg %p137
      $region34: #{decoder_forward.5} parent=31 // pred_check_branch
        %483 = sbr.rel (%p481) target = $region36
      $region35: #{decoder_forward.5} parent=31 // pred_region
        %s484 = smul.u32 2, %s22
      $region36: #{decoder_forward.5} parent=31 // pred_fallthru
        _
      // Predicated region
      $region37: #{decoder_forward.5} parent=31 // pred_check
        %p485 = pneg %p167
      $region38: #{decoder_forward.5} parent=31 // pred_check_branch
        %487 = sbr.rel (%p485) target = $region40
      $region39: #{decoder_forward.5} parent=31 // pred_region
        _
      $region40: #{decoder_forward.5} parent=31 // pred_fallthru
        _
    $region32: #{decoder_forward.5} parent=5 // pred_fallthru
      _
    %p488 = scmp.le.s32.totalorder 2, %s11
    // Predicated region
    $region41: #{decoder_forward.5} parent=5 // pred_check
      %p489 = pneg %p488
    $region42: #{decoder_forward.5} parent=5 // pred_check_branch
      %491 = sbr.rel (%p489) target = $region44
    $region43: #{decoder_forward.5} parent=5 // pred_region
      %s492 = ssub.s32 %s11, 2
      // Predicated region
      $region45: #{decoder_forward.5} parent=43 // pred_check
        %p493 = pneg %p143
      $region46: #{decoder_forward.5} parent=43 // pred_check_branch
        %495 = sbr.rel (%p493) target = $region48
      $region47: #{decoder_forward.5} parent=43 // pred_region
        %s496 = smul.u32 2, %s25
        %p497 = scmp.lt.s32.totalorder %s24, 1
        %s498 = scalar_select %p497, %s24, 1
        %p499 = scmp.lt.s32.totalorder %s496, 1
        %s500 = scalar_select %p499, %s496, 1
        %p501 = scmp.lt.s32.totalorder %s26, 0
        %s502 = scalar_select %p501, %s26, 0
        %s503 = sadd.s32 %s502, %s500
        %s504 = smul.addr %s498, 2
        %s505 = sadd.s32 %s503, %s504
        %s506 = smul.addr %s505, 4
        %s507 = scalar_lea.vmem %s3, %s506
      $region48: #{decoder_forward.5} parent=43 // pred_fallthru
        _
      // Predicated region
      $region49: #{decoder_forward.5} parent=43 // pred_check
        %p508 = pneg %p173
      $region50: #{decoder_forward.5} parent=43 // pred_check_branch
        %510 = sbr.rel (%p508) target = $region52
      $region51: #{decoder_forward.5} parent=43 // pred_region
        %p511 = scmp.lt.s32.totalorder %s24, 1
        %s512 = scalar_select %p511, %s24, 1
        %p513 = scmp.lt.s32.totalorder %s25, 0
        %s514 = scalar_select %p513, %s25, 0
        %p515 = scmp.lt.s32.totalorder %s26, 0
        %s516 = scalar_select %p515, %s26, 0
        %s517 = sadd.s32 %s516, %s514
        %s518 = sadd.s32 %s517, %s512
        %s519 = smul.addr %s518, 2
        %s520 = scalar_lea.vmem %s4, %s519
      $region52: #{decoder_forward.5} parent=43 // pred_fallthru
        _
    $region44: #{decoder_forward.5} parent=5 // pred_fallthru
      _
  $region6: #{decoder_forward.5} parent=0 // loop_footer
    %s15 = sadd.s32 1, %s11
  $region7: #{decoder_forward.5} parent=0 // loop_footer_branch
    %10 = sbr.rel target = $region3
  $region8: #{decoder_forward.5} parent=0 // loop_exit
    _

// kernel: decoder_forward.6
$region0: #{decoder_forward.6}
  #allocation0 [shape = 'u32[]', space=smem, size = 0x4, offset = 0x4, fixed_abs, tag = 'smem constant byte address 0x4 - core index']
  #allocation1 [shape = 'u32[144,128]{1,0:T(1,128)}', space=vmem, size = 0x12000, scoped, tag = 'internal scratch']
  %s0 = inlined_call_operand.vmem [shape: bf16[2,80,128], index: 0, kind: input, shape index: {}]
  %s1 = inlined_call_operand.vmem [shape: bf16[128,64], index: 1, kind: input, shape index: {}]
  %s2 = inlined_call_operand.vmem [shape: f32[1,64], index: 2, kind: input, shape index: {}]
  %s3 = inlined_call_operand.vmem [shape: bf16[2,80,64], index: 3, kind: output, shape index: {0}]
  %s4 = inlined_call_operand.vmem [shape: f32[2,1,2,64], index: 4, kind: output, shape index: {1}]
  %5 = xla_tuple %s3, %s4
  %s6 = sld [smem:[#allocation0]]
  $region53: #{decoder_forward.6} parent=0
    _
  %s8 = ssub.s32 1, %s6
  %s9 = scalar_select 0, %s8, %s6
  loop: start=0, step=1, limit=4
  $region2: #{decoder_forward.6} parent=0 // loop_pre_header
    _
  $region3: #{decoder_forward.6} parent=0 // loop_header
    %s11 = sphi 0, %s15
    %p12 = scmp.ge.s32.totalorder %s11, 4
    %s18 = sphi 0, %s37
    %s19 = sphi 0, %s33
    %s20 = sphi 0, %s29
    %s21 = sphi 0, %s18
    %s22 = sphi 0, %s19
    %s23 = sphi 0, %s20
    %s24 = sphi 0, %s21
    %s25 = sphi 0, %s22
    %s26 = sphi 0, %s23
    %s42 = sphi 0, %s44
    %s45 = sphi 0, %s42
    %s46 = sphi 0, %s45
    %s62 = sphi 0, %s46
    %s68 = sphi 0, %s70
    %s71 = sphi 0, %s68
    %s72 = sphi 0, %s71
    %s88 = sphi 0, %s72
    %s94 = sphi 0, %s96
    %s97 = sphi 0, %s94
    %s98 = sphi 0, %s97
    %s114 = sphi 0, %s98
    %s124 = sphi 0, %s126
    %s127 = sphi 0, %s124
    %s128 = sphi 0, %s127
    %s144 = sphi 0, %s128
    %s154 = sphi 0, %s156
    %s157 = sphi 0, %s154
    %s158 = sphi 0, %s157
    %s174 = sphi 0, %s158
  $region4: #{decoder_forward.6} parent=0 // loop_header_branch
    %14 = sbr.rel (%p12) target = $region8
  $region5: #{decoder_forward.6} parent=0 // loop_body
    %s16 = ssub.s32 %s11, 1
    %s17 = ssub.s32 %s11, 2
    %s27 = sadd.s32 1, %s20
    %p28 = scmp.ge.s32.totalorder %s27, 1
    %s29 = scalar_select %p28, 0, %s27
    %s30 = sadd.s32 1, %s19
    %s31 = scalar_select %p28, %s30, %s19
    %p32 = scmp.ge.s32.totalorder %s31, 1
    %s33 = scalar_select %p32, 0, %s31
    %s34 = sadd.s32 1, %s18
    %s35 = scalar_select %p32, %s34, %s18
    %p36 = scmp.ge.s32.totalorder %s35, 2
    %s37 = scalar_select %p36, 0, %s35
    %s38 = ssub.s32 %s18, %s37
    %s39 = ssub.s32 %s19, %s33
    %s40 = sor.u32 %s38, %s39
    %p41 = scmp.eq.s32.totalorder %s40, 0
    %s43 = sadd.s32 %s42, 1
    %s44 = scalar_select %p41, %s42, %s43
    %p47 = pneg %p41
    %p48 = scmp.eq.s32.totalorder %s11, 1
    %p49 = por %p47, %p48
    %p50 = scmp.ne.s32.totalorder %s42, %s45
    %p51 = scmp.eq.s32.totalorder %s11, 0
    %p52 = por %p50, %p51
    %p53 = scmp.ne.s32.totalorder %s42, %s45
    %p54 = scmp.eq.s32.totalorder %s16, 1
    %p55 = por %p53, %p54
    %p56 = scmp.ne.s32.totalorder %s45, %s46
    %p57 = scmp.eq.s32.totalorder %s16, 0
    %p58 = por %p56, %p57
    %p59 = scmp.ne.s32.totalorder %s45, %s46
    %p60 = scmp.eq.s32.totalorder %s17, 1
    %p61 = por %p59, %p60
    %p63 = scmp.ne.s32.totalorder %s46, %s62
    %p64 = scmp.eq.s32.totalorder %s17, 0
    %p65 = por %p63, %p64
    %s66 = ssub.s32 %s20, %s29
    %p67 = scmp.eq.s32.totalorder %s66, 0
    %s69 = sadd.s32 %s68, 1
    %s70 = scalar_select %p67, %s68, %s69
    %p73 = pneg %p67
    %p74 = scmp.eq.s32.totalorder %s11, 1
    %p75 = por %p73, %p74
    %p76 = scmp.ne.s32.totalorder %s68, %s71
    %p77 = scmp.eq.s32.totalorder %s11, 0
    %p78 = por %p76, %p77
    %p79 = scmp.ne.s32.totalorder %s68, %s71
    %p80 = scmp.eq.s32.totalorder %s16, 1
    %p81 = por %p79, %p80
    %p82 = scmp.ne.s32.totalorder %s71, %s72
    %p83 = scmp.eq.s32.totalorder %s16, 0
    %p84 = por %p82, %p83
    %p85 = scmp.ne.s32.totalorder %s71, %s72
    %p86 = scmp.eq.s32.totalorder %s17, 1
    %p87 = por %p85, %p86
    %p89 = scmp.ne.s32.totalorder %s72, %s88
    %p90 = scmp.eq.s32.totalorder %s17, 0
    %p91 = por %p89, %p90
    %s92 = ssub.s32 %s20, %s29
    %p93 = scmp.eq.s32.totalorder %s92, 0
    %s95 = sadd.s32 %s94, 1
    %s96 = scalar_select %p93, %s94, %s95
    %p99 = pneg %p93
    %p100 = scmp.eq.s32.totalorder %s11, 1
    %p101 = por %p99, %p100
    %p102 = scmp.ne.s32.totalorder %s94, %s97
    %p103 = scmp.eq.s32.totalorder %s11, 0
    %p104 = por %p102, %p103
    %p105 = scmp.ne.s32.totalorder %s94, %s97
    %p106 = scmp.eq.s32.totalorder %s16, 1
    %p107 = por %p105, %p106
    %p108 = scmp.ne.s32.totalorder %s97, %s98
    %p109 = scmp.eq.s32.totalorder %s16, 0
    %p110 = por %p108, %p109
    %p111 = scmp.ne.s32.totalorder %s97, %s98
    %p112 = scmp.eq.s32.totalorder %s17, 1
    %p113 = por %p111, %p112
    %p115 = scmp.ne.s32.totalorder %s98, %s114
    %p116 = scmp.eq.s32.totalorder %s17, 0
    %p117 = por %p115, %p116
    %s118 = ssub.s32 %s18, %s37
    %s119 = ssub.s32 %s19, %s33
    %s120 = sor.u32 %s118, %s119
    %s121 = ssub.s32 %s20, %s29
    %s122 = sor.u32 %s120, %s121
    %p123 = scmp.eq.s32.totalorder %s122, 0
    %s125 = sadd.s32 %s124, 1
    %s126 = scalar_select %p123, %s124, %s125
    %p129 = pneg %p123
    %p130 = scmp.eq.s32.totalorder %s11, 1
    %p131 = por %p129, %p130
    %p132 = scmp.ne.s32.totalorder %s124, %s127
    %p133 = scmp.eq.s32.totalorder %s11, 0
    %p134 = por %p132, %p133
    %p135 = scmp.ne.s32.totalorder %s124, %s127
    %p136 = scmp.eq.s32.totalorder %s16, 1
    %p137 = por %p135, %p136
    %p138 = scmp.ne.s32.totalorder %s127, %s128
    %p139 = scmp.eq.s32.totalorder %s16, 0
    %p140 = por %p138, %p139
    %p141 = scmp.ne.s32.totalorder %s127, %s128
    %p142 = scmp.eq.s32.totalorder %s17, 1
    %p143 = por %p141, %p142
    %p145 = scmp.ne.s32.totalorder %s128, %s144
    %p146 = scmp.eq.s32.totalorder %s17, 0
    %p147 = por %p145, %p146
    %s148 = ssub.s32 %s18, %s37
    %s149 = ssub.s32 %s19, %s33
    %s150 = sor.u32 %s148, %s149
    %s151 = ssub.s32 %s20, %s29
    %s152 = sor.u32 %s150, %s151
    %p153 = scmp.eq.s32.totalorder %s152, 0
    %s155 = sadd.s32 %s154, 1
    %s156 = scalar_select %p153, %s154, %s155
    %p159 = pneg %p153
    %p160 = scmp.eq.s32.totalorder %s11, 1
    %p161 = por %p159, %p160
    %p162 = scmp.ne.s32.totalorder %s154, %s157
    %p163 = scmp.eq.s32.totalorder %s11, 0
    %p164 = por %p162, %p163
    %p165 = scmp.ne.s32.totalorder %s154, %s157
    %p166 = scmp.eq.s32.totalorder %s16, 1
    %p167 = por %p165, %p166
    %p168 = scmp.ne.s32.totalorder %s157, %s158
    %p169 = scmp.eq.s32.totalorder %s16, 0
    %p170 = por %p168, %p169
    %p171 = scmp.ne.s32.totalorder %s157, %s158
    %p172 = scmp.eq.s32.totalorder %s17, 1
    %p173 = por %p171, %p172
    %p175 = scmp.ne.s32.totalorder %s158, %s174
    %p176 = scmp.eq.s32.totalorder %s17, 0
    %p177 = por %p175, %p176
    %p178 = scmp.le.s32.totalorder 1, %s11
    %p179 = scmp.lt.s32.totalorder %s11, 3
    %p180 = pnand %p178, %p179
    %p181 = pneg %p180
    // Predicated region
    $region9: #{decoder_forward.6} parent=5 // pred_check
      _
    $region10: #{decoder_forward.6} parent=5 // pred_check_branch
      %183 = sbr.rel (%p180) target = $region12
    $region11: #{decoder_forward.6} parent=5 // pred_region
      %s184 = ssub.s32 %s11, 1
      // Predicated region
      $region13: #{decoder_forward.6} parent=11 // pred_check
        %p185 = pneg %p84
      $region14: #{decoder_forward.6} parent=11 // pred_check_branch
        %187 = sbr.rel (%p185) target = $region16
      $region15: #{decoder_forward.6} parent=11 // pred_region
        %p188 = scmp.lt.s32.totalorder %s23, 0
        %s189 = scalar_select %p188, %s23, 0
        %s190 = smul.addr %s189, 4
        %s191 = scalar_lea.vmem %s1, %s190
      $region16: #{decoder_forward.6} parent=11 // pred_fallthru
        _
      // Predicated region
      $region17: #{decoder_forward.6} parent=11 // pred_check
        %p192 = pneg %p110
      $region18: #{decoder_forward.6} parent=11 // pred_check_branch
        %194 = sbr.rel (%p192) target = $region20
      $region19: #{decoder_forward.6} parent=11 // pred_region
        %p195 = scmp.lt.s32.totalorder %s23, 0
        %s196 = scalar_select %p195, %s23, 0
        %s197 = scalar_lea.vmem %s2, %s196
      $region20: #{decoder_forward.6} parent=11 // pred_fallthru
        _
    $region12: #{decoder_forward.6} parent=5 // pred_fallthru
      _
    %p198 = scmp.lt.s32.totalorder %s11, 2
    // Predicated region
    $region21: #{decoder_forward.6} parent=5 // pred_check
      %p199 = pneg %p198
    $region22: #{decoder_forward.6} parent=5 // pred_check_branch
      %201 = sbr.rel (%p199) target = $region24
    $region23: #{decoder_forward.6} parent=5 // pred_region
      // Predicated region
      $region25: #{decoder_forward.6} parent=23 // pred_check
        %p202 = pneg %p52
      $region26: #{decoder_forward.6} parent=23 // pred_check_branch
        %204 = sbr.rel (%p202) target = $region28
      $region27: #{decoder_forward.6} parent=23 // pred_region
        %s205 = smul.u32 10, %s19
        %p206 = scmp.lt.s32.totalorder %s18, 1
        %s207 = scalar_select %p206, %s18, 1
        %p208 = scmp.lt.s32.totalorder %s205, 9
        %s209 = scalar_select %p208, %s205, 9
        %s210 = smul.addr %s207, 10
        %s211 = sadd.s32 %s209, %s210
        %s212 = smul.addr %s211, 4
        %s213 = scalar_lea.vmem %s0, %s212
        %s214 = smul.u32 10, %s19
      $region28: #{decoder_forward.6} parent=23 // pred_fallthru
        _
    $region24: #{decoder_forward.6} parent=5 // pred_fallthru
      _
    %p215 = scmp.le.s32.totalorder 1, %s11
    %p216 = scmp.lt.s32.totalorder %s11, 3
    %p217 = pnand %p215, %p216
    %p218 = pneg %p217
    // Predicated region
    $region29: #{decoder_forward.6} parent=5 // pred_check
      _
    $region30: #{decoder_forward.6} parent=5 // pred_check_branch
      %220 = sbr.rel (%p217) target = $region32
    $region31: #{decoder_forward.6} parent=5 // pred_region
      %s221 = ssub.s32 %s11, 1
      %s222 = smul.u32 10, %s22
      %p223 = scmp.lt.s32.totalorder %s21, 1
      %s224 = scalar_select %p223, %s21, 1
      %p225 = scmp.lt.s32.totalorder %s222, 9
      %s226 = scalar_select %p225, %s222, 9
      %s227 = smul.addr %s224, 10
      %s228 = sadd.s32 %s226, %s227
      %s229 = smul.addr %s228, 4
      %s230 = scalar_lea.vmem %s0, %s229
      %p231 = pneg %p58
      %p232 = pneg %p55
      %p233 = scmp.lt.s32.totalorder %s23, 0
      %s234 = scalar_select %p233, %s23, 0
      %s235 = smul.addr %s234, 4
      %s236 = scalar_lea.vmem %s1, %s235
      %p237 = pneg %p84
      %p238 = pneg %p81
      %p239 = scmp.lt.s32.totalorder %s23, 0
      %s240 = scalar_select %p239, %s23, 0
      %s241 = scalar_lea.vmem %s2, %s240
      %p242 = pneg %p110
      %p243 = pneg %p107
      %p244 = pneg %p140
      %p245 = pneg %p137
      %s246 = smul.u32 10, %s22
      %p247 = scmp.lt.s32.totalorder %s21, 1
      %s248 = scalar_select %p247, %s21, 1
      %p249 = scmp.lt.s32.totalorder %s246, 9
      %s250 = scalar_select %p249, %s246, 9
      %p251 = scmp.lt.s32.totalorder %s23, 0
      %s252 = scalar_select %p251, %s23, 0
      %s253 = sadd.s32 %s252, %s250
      %s254 = smul.addr %s248, 10
      %s255 = sadd.s32 %s253, %s254
      %s256 = smul.addr %s255, 4
      %s257 = scalar_lea.vmem %s3, %s256
      %p258 = pneg %p170
      %p259 = pneg %p167
      %p260 = scmp.lt.s32.totalorder %s21, 1
      %s261 = scalar_select %p260, %s21, 1
      %p262 = scmp.lt.s32.totalorder %s22, 0
      %s263 = scalar_select %p262, %s22, 0
      %p264 = scmp.lt.s32.totalorder %s23, 0
      %s265 = scalar_select %p264, %s23, 0
      %s266 = sadd.s32 %s265, %s263
      %s267 = sadd.s32 %s266, %s261
      %s268 = smul.addr %s267, 2
      %s269 = scalar_lea.vmem %s4, %s268
      %s270 = smul.u32 10, %s22
      %p271 = scmp.lt.s32.totalorder %s21, 1
      %s272 = scalar_select %p271, %s21, 1
      %p273 = scmp.lt.s32.totalorder %s270, 9
      %s274 = scalar_select %p273, %s270, 9
      %s275 = smul.addr %s272, 10
      %s276 = sadd.s32 %s274, %s275
      %s277 = smul.addr %s276, 4
      %s278 = scalar_lea.vmem %s0, %s277
      %s279 = smul.u32 10, %s22
      %p280 = scmp.lt.s32.totalorder %s23, 0
      %s281 = scalar_select %p280, %s23, 0
      %s282 = smul.addr %s281, 4
      %s283 = scalar_lea.vmem %s1, %s282
      %p284 = scmp.lt.s32.totalorder %s23, 0
      %s285 = scalar_select %p284, %s23, 0
      %s286 = scalar_lea.vmem %s2, %s285
      %s287 = smul.u32 10, %s22
      %p288 = scmp.lt.s32.totalorder %s21, 1
      %s289 = scalar_select %p288, %s21, 1
      %p290 = scmp.lt.s32.totalorder %s287, 9
      %s291 = scalar_select %p290, %s287, 9
      %p292 = scmp.lt.s32.totalorder %s23, 0
      %s293 = scalar_select %p292, %s23, 0
      %s294 = sadd.s32 %s293, %s291
      %s295 = smul.addr %s289, 10
      %s296 = sadd.s32 %s294, %s295
      %s297 = smul.addr %s296, 4
      %s298 = scalar_lea.vmem %s3, %s297
      %s299 = smul.u32 10, %s22
      %p300 = scmp.lt.s32.totalorder %s21, 1
      %s301 = scalar_select %p300, %s21, 1
      %p302 = scmp.lt.s32.totalorder %s22, 0
      %s303 = scalar_select %p302, %s22, 0
      %p304 = scmp.lt.s32.totalorder %s23, 0
      %s305 = scalar_select %p304, %s23, 0
      %s306 = sadd.s32 %s305, %s303
      %s307 = sadd.s32 %s306, %s301
      %s308 = smul.addr %s307, 2
      %s309 = scalar_lea.vmem %s4, %s308
      %v311 = vld [vmem:[%s278] sm:$0xf]
      %v312 = vld [vmem:[%s278 + $0x4] sm:$0xf]
      %v313 = vld [vmem:[%s278 + $0x8] sm:$0xf]
      %v314 = vld [vmem:[%s278 + $0xc] sm:$0xf]
      %v315 = vld [vmem:[%s278 + $0x10] sm:$0xf]
      %v316 = vld [vmem:[%s278 + $0x14] sm:$0xf]
      %v317 = vld [vmem:[%s278 + $0x18] sm:$0xf]
      %v318 = vld [vmem:[%s278 + $0x1c] sm:$0xf]
      %v319 = vld [vmem:[%s278 + $0x20] sm:$0xf]
      %v320 = vld [vmem:[%s278 + $0x24] sm:$0xf]
      %v321 = vld [vmem:[%s283] sm:$0xf]
      %v322 = vld [vmem:[%s283 + $0x4] sm:$0xf]
      %v323 = vld [vmem:[%s283 + $0x8] sm:$0xf]
      %v324 = vld [vmem:[%s283 + $0xc] sm:$0xf]
      %v325 = vld [vmem:[%s283 + $0x10] sm:$0xf]
      %v326 = vld [vmem:[%s283 + $0x14] sm:$0xf]
      %v327 = vld [vmem:[%s283 + $0x18] sm:$0xf]
      %v328 = vld [vmem:[%s283 + $0x1c] sm:$0xf]
      %v329 = vld [vmem:[%s283 + $0x20] sm:$0xf]
      %v330 = vld [vmem:[%s283 + $0x24] sm:$0xf]
      %v331 = vld [vmem:[%s283 + $0x28] sm:$0xf]
      %v332 = vld [vmem:[%s283 + $0x2c] sm:$0xf]
      %v333 = vld [vmem:[%s283 + $0x30] sm:$0xf]
      %v334 = vld [vmem:[%s283 + $0x34] sm:$0xf]
      %v335 = vld [vmem:[%s283 + $0x38] sm:$0xf]
      %v336 = vld [vmem:[%s283 + $0x3c] sm:$0xf]
      %v337 = vld [vmem:[%s286] sm:$0x1]
      %v339 = vlaneseq
      %v340 = vshrl.u32 %v339, 7
      %v341 = vsub.s32 0, %v340
      %v342 = vrot.slane %v337, %v341
      %v354 = vunpack.c.l.b16 %v311
      %v355 = vunpack.c.l.b16 %v312
      %v356 = vunpack.c.l.b16 %v313
      %v357 = vunpack.c.l.b16 %v314
      %v358 = vunpack.c.l.b16 %v315
      %v359 = vunpack.c.l.b16 %v316
      %v360 = vunpack.c.l.b16 %v317
      %v361 = vunpack.c.l.b16 %v318
      %v362 = vunpack.c.l.b16 %v319
      %v363 = vunpack.c.l.b16 %v320
      %v364 = vpack.c.b16 %v355, %v354
      %v365 = vpack.c.b16 %v357, %v356
      %v366 = vpack.c.b16 %v359, %v358
      %v367 = vpack.c.b16 %v361, %v360
      %v368 = vpack.c.b16 %v363, %v362
      %v390 = vunpack.c.l.b16 %v321
      %v391 = vunpack.c.l.b16 %v322
      %v392 = vunpack.c.l.b16 %v323
      %v393 = vunpack.c.l.b16 %v324
      %v394 = vunpack.c.l.b16 %v325
      %v395 = vunpack.c.l.b16 %v326
      %v396 = vunpack.c.l.b16 %v327
      %v397 = vunpack.c.l.b16 %v328
      %v398 = vunpack.c.l.b16 %v329
      %v399 = vunpack.c.l.b16 %v330
      %v400 = vunpack.c.l.b16 %v331
      %v401 = vunpack.c.l.b16 %v332
      %v402 = vunpack.c.l.b16 %v333
      %v403 = vunpack.c.l.b16 %v334
      %v404 = vunpack.c.l.b16 %v335
      %v405 = vunpack.c.l.b16 %v336
      %v406 = vpack.c.b16 %v391, %v390
      %v407 = vpack.c.b16 %v393, %v392
      %v408 = vpack.c.b16 %v395, %v394
      %v409 = vpack.c.b16 %v397, %v396
      %v410 = vpack.c.b16 %v399, %v398
      %v411 = vpack.c.b16 %v401, %v400
      %v412 = vpack.c.b16 %v403, %v402
      %v413 = vpack.c.b16 %v405, %v404
      %422 = vmatprep.subr.bf16.mxu0 0
      %423 = vmatpush1.bf16.msra.mxu0 %v413
      %424 = vmatprep.subr.bf16.mxu0 0
      %425 = vmatpush1.bf16.msra.mxu0 %v412
      %426 = vmatprep.subr.bf16.mxu0 0
      %427 = vmatpush1.bf16.msra.mxu0 %v411
      %428 = vmatprep.subr.bf16.mxu0 0
      %429 = vmatpush1.bf16.msra.mxu0 %v410
      %430 = vmatprep.subr.bf16.mxu0 0
      %431 = vmatpush1.bf16.msra.mxu0 %v409
      %432 = vmatprep.subr.bf16.mxu0 0
      %433 = vmatpush1.bf16.msra.mxu0 %v408
      %434 = vmatprep.subr.bf16.mxu0 0
      %435 = vmatpush1.bf16.msra.mxu0 %v407
      %436 = vmatprep.subr.bf16.mxu0 0
      %437 = vmatpush1.bf16.msra.mxu0 %v406
      %438 = vmatprep.subr.bf16.mxu0 0
      %439 = vmatpush2.bf16.msra.mxu0 0
      %440 = vmatprep.subr.bf16.mxu0 0
      %441 = vmatpush2.bf16.msra.mxu0 0
      %442 = vmatprep.subr.bf16.mxu0 0
      %443 = vmatpush2.bf16.msra.mxu0 0
      %444 = vmatprep.subr.bf16.mxu0 0
      %445 = vmatpush2.bf16.msra.mxu0 0
      %446 = vmatprep.subr.bf16.mxu0 0
      %447 = vmatpush2.bf16.msra.mxu0 0
      %448 = vmatprep.subr.bf16.mxu0 0
      %449 = vmatpush2.bf16.msra.mxu0 0
      %450 = vmatprep.subr.bf16.mxu0 0
      %451 = vmatpush2.bf16.msra.mxu0 0
      %452 = vmatprep.subr.bf16.mxu0 0
      %453 = vmatpush2.bf16.msra.mxu0 0
      %454 = vmatprep.mubr.bf16.mxu0 0
      %455 = vmatmul.mubr.bf16.gmra.mxu0 %v364
      %v456 = vpop.f32.mrf.mxu0
      %v457 = vadd.f32 %v342, %v456
      %v458 = vpop.f32.mrf.mxu0
      %v459 = vpop.f32.mrf.mxu0
      %v460 = vadd.f32 %v342, %v459
      %v461 = vpop.f32.mrf.mxu0
      %462 = vmatprep.mubr.bf16.mxu0 0
      %463 = vmatmul.mubr.bf16.gmra.mxu0 %v365
      %v464 = vpop.f32.mrf.mxu0
      %v465 = vadd.f32 %v342, %v464
      %v466 = vpop.f32.mrf.mxu0
      %v467 = vpop.f32.mrf.mxu0
      %v468 = vadd.f32 %v342, %v467
      %v469 = vpop.f32.mrf.mxu0
      %470 = vmatprep.mubr.bf16.mxu0 0
      %471 = vmatmul.mubr.bf16.gmra.mxu0 %v366
      %v472 = vpop.f32.mrf.mxu0
      %v473 = vadd.f32 %v342, %v472
      %v474 = vpop.f32.mrf.mxu0
      %v475 = vpop.f32.mrf.mxu0
      %v476 = vadd.f32 %v342, %v475
      %v477 = vpop.f32.mrf.mxu0
      %478 = vmatprep.mubr.bf16.mxu0 0
      %479 = vmatmul.mubr.bf16.gmra.mxu0 %v367
      %v480 = vpop.f32.mrf.mxu0
      %v481 = vadd.f32 %v342, %v480
      %v482 = vpop.f32.mrf.mxu0
      %v483 = vpop.f32.mrf.mxu0
      %v484 = vadd.f32 %v342, %v483
      %v485 = vpop.f32.mrf.mxu0
      %486 = vmatprep.mubr.bf16.mxu0 0
      %487 = vmatmul.mubr.bf16.gmra.mxu0 %v368
      %v488 = vpop.f32.mrf.mxu0
      %v489 = vadd.f32 %v342, %v488
      %v490 = vpop.f32.mrf.mxu0
      %v491 = vpop.f32.mrf.mxu0
      %v492 = vadd.f32 %v342, %v491
      %v493 = vpop.f32.mrf.mxu0
      %494 = vdwg.mxu0
      %v495 = vpack.c.bf16 %v460, %v457
      %v496 = vpack.c.bf16 %v468, %v465
      %v497 = vpack.c.bf16 %v476, %v473
      %v498 = vpack.c.bf16 %v484, %v481
      %v499 = vpack.c.bf16 %v492, %v489
      %v505 = vunpack.c.l.b16 %v495
      %v506 = vunpack.c.h.b16 %v495
      %v507 = vunpack.c.l.b16 %v496
      %v508 = vunpack.c.h.b16 %v496
      %v509 = vunpack.c.l.b16 %v497
      %v510 = vunpack.c.h.b16 %v497
      %v511 = vunpack.c.l.b16 %v498
      %v512 = vunpack.c.h.b16 %v498
      %v513 = vunpack.c.l.b16 %v499
      %v514 = vunpack.c.h.b16 %v499
      %v515 = vpack.c.b16 %v505, %v505
      %v516 = vpack.c.b16 %v506, %v506
      %v517 = vpack.c.b16 %v507, %v507
      %v518 = vpack.c.b16 %v508, %v508
      %v519 = vpack.c.b16 %v509, %v509
      %v520 = vpack.c.b16 %v510, %v510
      %v521 = vpack.c.b16 %v511, %v511
      %v522 = vpack.c.b16 %v512, %v512
      %v523 = vpack.c.b16 %v513, %v513
      %v524 = vpack.c.b16 %v514, %v514
      %vm535 = vcmask 519168
      %536 = vst.msk [vmem:[%s298] sm:$0xf] %vm535, %v515
      %537 = vst.msk [vmem:[%s298 + $0x4] sm:$0xf] %vm535, %v516
      %538 = vst.msk [vmem:[%s298 + $0x8] sm:$0xf] %vm535, %v517
      %539 = vst.msk [vmem:[%s298 + $0xc] sm:$0xf] %vm535, %v518
      %540 = vst.msk [vmem:[%s298 + $0x10] sm:$0xf] %vm535, %v519
      %541 = vst.msk [vmem:[%s298 + $0x14] sm:$0xf] %vm535, %v520
      %542 = vst.msk [vmem:[%s298 + $0x18] sm:$0xf] %vm535, %v521
      %543 = vst.msk [vmem:[%s298 + $0x1c] sm:$0xf] %vm535, %v522
      %544 = vst.msk [vmem:[%s298 + $0x20] sm:$0xf] %vm535, %v523
      %545 = vst.msk [vmem:[%s298 + $0x24] sm:$0xf] %vm535, %v524
      %vm546 = vcmask 523264
      %v547 = vsel %vm546, %v457, 0.0
      %v548 = vsel %vm546, %v460, 0.0
      %v549 = vadd.f32 %v547, %v548
      %v550 = vsel %vm546, %v465, 0.0
      %v551 = vadd.f32 %v549, %v550
      %v552 = vsel %vm546, %v468, 0.0
      %v553 = vadd.f32 %v551, %v552
      %v554 = vsel %vm546, %v473, 0.0
      %v555 = vadd.f32 %v553, %v554
      %v556 = vsel %vm546, %v476, 0.0
      %v557 = vadd.f32 %v555, %v556
      %v558 = vsel %vm546, %v481, 0.0
      %v559 = vadd.f32 %v557, %v558
      %v560 = vsel %vm546, %v484, 0.0
      %v561 = vadd.f32 %v559, %v560
      %v562 = vsel %vm546, %v489, 0.0
      %v563 = vadd.f32 %v561, %v562
      %v564 = vsel %vm546, %v492, 0.0
      %v565 = vadd.f32 %v563, %v564
      %v566 = vrot.slane %v565, 4
      %v567 = vadd.f32 %v565, %v566
      %v568 = vrot.slane %v567, 2
      %v569 = vadd.f32 %v567, %v568
      %v570 = vrot.slane %v569, 1
      %v571 = vadd.f32 %v569, %v570
      %vm572 = vcmask 516096
      %573 = vst.msk [vmem:[%s309] sm:$0x1] %vm572, %v571
      %v574 = vmul.f32 %v457, %v457
      %v575 = vmul.f32 %v460, %v460
      %v576 = vmul.f32 %v465, %v465
      %v577 = vmul.f32 %v468, %v468
      %v578 = vmul.f32 %v473, %v473
      %v579 = vmul.f32 %v476, %v476
      %v580 = vmul.f32 %v481, %v481
      %v581 = vmul.f32 %v484, %v484
      %v582 = vmul.f32 %v489, %v489
      %v583 = vmul.f32 %v492, %v492
      %v584 = vsel %vm546, %v574, 0.0
      %v585 = vsel %vm546, %v575, 0.0
      %v586 = vadd.f32 %v584, %v585
      %v587 = vsel %vm546, %v576, 0.0
      %v588 = vadd.f32 %v586, %v587
      %v589 = vsel %vm546, %v577, 0.0
      %v590 = vadd.f32 %v588, %v589
      %v591 = vsel %vm546, %v578, 0.0
      %v592 = vadd.f32 %v590, %v591
      %v593 = vsel %vm546, %v579, 0.0
      %v594 = vadd.f32 %v592, %v593
      %v595 = vsel %vm546, %v580, 0.0
      %v596 = vadd.f32 %v594, %v595
      %v597 = vsel %vm546, %v581, 0.0
      %v598 = vadd.f32 %v596, %v597
      %v599 = vsel %vm546, %v582, 0.0
      %v600 = vadd.f32 %v598, %v599
      %v601 = vsel %vm546, %v583, 0.0
      %v602 = vadd.f32 %v600, %v601
      %v603 = vrot.slane %v602, 4
      %v604 = vadd.f32 %v602, %v603
      %v605 = vrot.slane %v604, 2
      %v606 = vadd.f32 %v604, %v605
      %v607 = vrot.slane %v606, 1
      %v608 = vadd.f32 %v606, %v607
      %609 = vst.msk [vmem:[%s309 + $0x1] sm:$0x1] %vm572, %v608
      %s610 = smul.u32 10, %s22
      %p611 = scmp.lt.s32.totalorder %s21, 1
      %s612 = scalar_select %p611, %s21, 1
      %p613 = scmp.lt.s32.totalorder %s610, 9
      %s614 = scalar_select %p613, %s610, 9
      %p615 = scmp.lt.s32.totalorder %s23, 0
      %s616 = scalar_select %p615, %s23, 0
      %s617 = sadd.s32 %s616, %s614
      %s618 = smul.addr %s612, 10
      %s619 = sadd.s32 %s617, %s618
      %s620 = smul.addr %s619, 4
      %s621 = scalar_lea.vmem %s3, %s620
      %p622 = scmp.lt.s32.totalorder %s21, 1
      %s623 = scalar_select %p622, %s21, 1
      %p624 = scmp.lt.s32.totalorder %s22, 0
      %s625 = scalar_select %p624, %s22, 0
      %p626 = scmp.lt.s32.totalorder %s23, 0
      %s627 = scalar_select %p626, %s23, 0
      %s628 = sadd.s32 %s627, %s625
      %s629 = sadd.s32 %s628, %s623
      %s630 = smul.addr %s629, 2
      %s631 = scalar_lea.vmem %s4, %s630
      // Predicated region
      $region33: #{decoder_forward.6} parent=31 // pred_check
        %p632 = pneg %p137
      $region34: #{decoder_forward.6} parent=31 // pred_check_branch
        %634 = sbr.rel (%p632) target = $region36
      $region35: #{decoder_forward.6} parent=31 // pred_region
        %s635 = smul.u32 10, %s22
      $region36: #{decoder_forward.6} parent=31 // pred_fallthru
        _
      // Predicated region
      $region37: #{decoder_forward.6} parent=31 // pred_check
        %p636 = pneg %p167
      $region38: #{decoder_forward.6} parent=31 // pred_check_branch
        %638 = sbr.rel (%p636) target = $region40
      $region39: #{decoder_forward.6} parent=31 // pred_region
        _
      $region40: #{decoder_forward.6} parent=31 // pred_fallthru
        _
    $region32: #{decoder_forward.6} parent=5 // pred_fallthru
      _
    %p639 = scmp.le.s32.totalorder 2, %s11
    // Predicated region
    $region41: #{decoder_forward.6} parent=5 // pred_check
      %p640 = pneg %p639
    $region42: #{decoder_forward.6} parent=5 // pred_check_branch
      %642 = sbr.rel (%p640) target = $region44
    $region43: #{decoder_forward.6} parent=5 // pred_region
      %s643 = ssub.s32 %s11, 2
      // Predicated region
      $region45: #{decoder_forward.6} parent=43 // pred_check
        %p644 = pneg %p143
      $region46: #{decoder_forward.6} parent=43 // pred_check_branch
        %646 = sbr.rel (%p644) target = $region48
      $region47: #{decoder_forward.6} parent=43 // pred_region
        %s647 = smul.u32 10, %s25
        %p648 = scmp.lt.s32.totalorder %s24, 1
        %s649 = scalar_select %p648, %s24, 1
        %p650 = scmp.lt.s32.totalorder %s647, 9
        %s651 = scalar_select %p650, %s647, 9
        %p652 = scmp.lt.s32.totalorder %s26, 0
        %s653 = scalar_select %p652, %s26, 0
        %s654 = sadd.s32 %s653, %s651
        %s655 = smul.addr %s649, 10
        %s656 = sadd.s32 %s654, %s655
        %s657 = smul.addr %s656, 4
        %s658 = scalar_lea.vmem %s3, %s657
      $region48: #{decoder_forward.6} parent=43 // pred_fallthru
        _
      // Predicated region
      $region49: #{decoder_forward.6} parent=43 // pred_check
        %p659 = pneg %p173
      $region50: #{decoder_forward.6} parent=43 // pred_check_branch
        %661 = sbr.rel (%p659) target = $region52
      $region51: #{decoder_forward.6} parent=43 // pred_region
        %p662 = scmp.lt.s32.totalorder %s24, 1
        %s663 = scalar_select %p662, %s24, 1
        %p664 = scmp.lt.s32.totalorder %s25, 0
        %s665 = scalar_select %p664, %s25, 0
        %p666 = scmp.lt.s32.totalorder %s26, 0
        %s667 = scalar_select %p666, %s26, 0
        %s668 = sadd.s32 %s667, %s665
        %s669 = sadd.s32 %s668, %s663
        %s670 = smul.addr %s669, 2
        %s671 = scalar_lea.vmem %s4, %s670
      $region52: #{decoder_forward.6} parent=43 // pred_fallthru
        _
    $region44: #{decoder_forward.6} parent=5 // pred_fallthru
      _
  $region6: #{decoder_forward.6} parent=0 // loop_footer
    %s15 = sadd.s32 1, %s11
  $region7: #{decoder_forward.6} parent=0 // loop_footer_branch
    %10 = sbr.rel target = $region3
  $region8: #{decoder_forward.6} parent=0 // loop_exit
    _

// kernel: decoder_forward.7
$region0: #{decoder_forward.7}
  #allocation0 [shape = 'u32[]', space=smem, size = 0x4, offset = 0x4, fixed_abs, tag = 'smem constant byte address 0x4 - core index']
  #allocation1 [shape = 'u32[144,128]{1,0:T(1,128)}', space=vmem, size = 0x12000, scoped, tag = 'internal scratch']
  %s0 = inlined_call_operand.vmem [shape: bf16[2,496,64], index: 0, kind: input, shape index: {}]
  %s1 = inlined_call_operand.vmem [shape: bf16[64,64], index: 1, kind: input, shape index: {}]
  %s2 = inlined_call_operand.vmem [shape: f32[1,64], index: 2, kind: input, shape index: {}]
  %s3 = inlined_call_operand.vmem [shape: bf16[2,496,64], index: 3, kind: output, shape index: {0}]
  %s4 = inlined_call_operand.vmem [shape: f32[2,1,2,64], index: 4, kind: output, shape index: {1}]
  %5 = xla_tuple %s3, %s4
  %s6 = sld [smem:[#allocation0]]
  $region53: #{decoder_forward.7} parent=0
    _
  %s8 = ssub.s32 1, %s6
  %s9 = scalar_select 0, %s8, %s6
  loop: start=0, step=1, limit=4
  $region2: #{decoder_forward.7} parent=0 // loop_pre_header
    _
  $region3: #{decoder_forward.7} parent=0 // loop_header
    %s11 = sphi 0, %s15
    %p12 = scmp.ge.s32.totalorder %s11, 4
    %s18 = sphi 0, %s37
    %s19 = sphi 0, %s33
    %s20 = sphi 0, %s29
    %s21 = sphi 0, %s18
    %s22 = sphi 0, %s19
    %s23 = sphi 0, %s20
    %s24 = sphi 0, %s21
    %s25 = sphi 0, %s22
    %s26 = sphi 0, %s23
    %s42 = sphi 0, %s44
    %s45 = sphi 0, %s42
    %s46 = sphi 0, %s45
    %s62 = sphi 0, %s46
    %s68 = sphi 0, %s70
    %s71 = sphi 0, %s68
    %s72 = sphi 0, %s71
    %s88 = sphi 0, %s72
    %s94 = sphi 0, %s96
    %s97 = sphi 0, %s94
    %s98 = sphi 0, %s97
    %s114 = sphi 0, %s98
    %s124 = sphi 0, %s126
    %s127 = sphi 0, %s124
    %s128 = sphi 0, %s127
    %s144 = sphi 0, %s128
    %s154 = sphi 0, %s156
    %s157 = sphi 0, %s154
    %s158 = sphi 0, %s157
    %s174 = sphi 0, %s158
  $region4: #{decoder_forward.7} parent=0 // loop_header_branch
    %14 = sbr.rel (%p12) target = $region8
  $region5: #{decoder_forward.7} parent=0 // loop_body
    %s16 = ssub.s32 %s11, 1
    %s17 = ssub.s32 %s11, 2
    %s27 = sadd.s32 1, %s20
    %p28 = scmp.ge.s32.totalorder %s27, 1
    %s29 = scalar_select %p28, 0, %s27
    %s30 = sadd.s32 1, %s19
    %s31 = scalar_select %p28, %s30, %s19
    %p32 = scmp.ge.s32.totalorder %s31, 1
    %s33 = scalar_select %p32, 0, %s31
    %s34 = sadd.s32 1, %s18
    %s35 = scalar_select %p32, %s34, %s18
    %p36 = scmp.ge.s32.totalorder %s35, 2
    %s37 = scalar_select %p36, 0, %s35
    %s38 = ssub.s32 %s18, %s37
    %s39 = ssub.s32 %s19, %s33
    %s40 = sor.u32 %s38, %s39
    %p41 = scmp.eq.s32.totalorder %s40, 0
    %s43 = sadd.s32 %s42, 1
    %s44 = scalar_select %p41, %s42, %s43
    %p47 = pneg %p41
    %p48 = scmp.eq.s32.totalorder %s11, 1
    %p49 = por %p47, %p48
    %p50 = scmp.ne.s32.totalorder %s42, %s45
    %p51 = scmp.eq.s32.totalorder %s11, 0
    %p52 = por %p50, %p51
    %p53 = scmp.ne.s32.totalorder %s42, %s45
    %p54 = scmp.eq.s32.totalorder %s16, 1
    %p55 = por %p53, %p54
    %p56 = scmp.ne.s32.totalorder %s45, %s46
    %p57 = scmp.eq.s32.totalorder %s16, 0
    %p58 = por %p56, %p57
    %p59 = scmp.ne.s32.totalorder %s45, %s46
    %p60 = scmp.eq.s32.totalorder %s17, 1
    %p61 = por %p59, %p60
    %p63 = scmp.ne.s32.totalorder %s46, %s62
    %p64 = scmp.eq.s32.totalorder %s17, 0
    %p65 = por %p63, %p64
    %s66 = ssub.s32 %s20, %s29
    %p67 = scmp.eq.s32.totalorder %s66, 0
    %s69 = sadd.s32 %s68, 1
    %s70 = scalar_select %p67, %s68, %s69
    %p73 = pneg %p67
    %p74 = scmp.eq.s32.totalorder %s11, 1
    %p75 = por %p73, %p74
    %p76 = scmp.ne.s32.totalorder %s68, %s71
    %p77 = scmp.eq.s32.totalorder %s11, 0
    %p78 = por %p76, %p77
    %p79 = scmp.ne.s32.totalorder %s68, %s71
    %p80 = scmp.eq.s32.totalorder %s16, 1
    %p81 = por %p79, %p80
    %p82 = scmp.ne.s32.totalorder %s71, %s72
    %p83 = scmp.eq.s32.totalorder %s16, 0
    %p84 = por %p82, %p83
    %p85 = scmp.ne.s32.totalorder %s71, %s72
    %p86 = scmp.eq.s32.totalorder %s17, 1
    %p87 = por %p85, %p86
    %p89 = scmp.ne.s32.totalorder %s72, %s88
    %p90 = scmp.eq.s32.totalorder %s17, 0
    %p91 = por %p89, %p90
    %s92 = ssub.s32 %s20, %s29
    %p93 = scmp.eq.s32.totalorder %s92, 0
    %s95 = sadd.s32 %s94, 1
    %s96 = scalar_select %p93, %s94, %s95
    %p99 = pneg %p93
    %p100 = scmp.eq.s32.totalorder %s11, 1
    %p101 = por %p99, %p100
    %p102 = scmp.ne.s32.totalorder %s94, %s97
    %p103 = scmp.eq.s32.totalorder %s11, 0
    %p104 = por %p102, %p103
    %p105 = scmp.ne.s32.totalorder %s94, %s97
    %p106 = scmp.eq.s32.totalorder %s16, 1
    %p107 = por %p105, %p106
    %p108 = scmp.ne.s32.totalorder %s97, %s98
    %p109 = scmp.eq.s32.totalorder %s16, 0
    %p110 = por %p108, %p109
    %p111 = scmp.ne.s32.totalorder %s97, %s98
    %p112 = scmp.eq.s32.totalorder %s17, 1
    %p113 = por %p111, %p112
    %p115 = scmp.ne.s32.totalorder %s98, %s114
    %p116 = scmp.eq.s32.totalorder %s17, 0
    %p117 = por %p115, %p116
    %s118 = ssub.s32 %s18, %s37
    %s119 = ssub.s32 %s19, %s33
    %s120 = sor.u32 %s118, %s119
    %s121 = ssub.s32 %s20, %s29
    %s122 = sor.u32 %s120, %s121
    %p123 = scmp.eq.s32.totalorder %s122, 0
    %s125 = sadd.s32 %s124, 1
    %s126 = scalar_select %p123, %s124, %s125
    %p129 = pneg %p123
    %p130 = scmp.eq.s32.totalorder %s11, 1
    %p131 = por %p129, %p130
    %p132 = scmp.ne.s32.totalorder %s124, %s127
    %p133 = scmp.eq.s32.totalorder %s11, 0
    %p134 = por %p132, %p133
    %p135 = scmp.ne.s32.totalorder %s124, %s127
    %p136 = scmp.eq.s32.totalorder %s16, 1
    %p137 = por %p135, %p136
    %p138 = scmp.ne.s32.totalorder %s127, %s128
    %p139 = scmp.eq.s32.totalorder %s16, 0
    %p140 = por %p138, %p139
    %p141 = scmp.ne.s32.totalorder %s127, %s128
    %p142 = scmp.eq.s32.totalorder %s17, 1
    %p143 = por %p141, %p142
    %p145 = scmp.ne.s32.totalorder %s128, %s144
    %p146 = scmp.eq.s32.totalorder %s17, 0
    %p147 = por %p145, %p146
    %s148 = ssub.s32 %s18, %s37
    %s149 = ssub.s32 %s19, %s33
    %s150 = sor.u32 %s148, %s149
    %s151 = ssub.s32 %s20, %s29
    %s152 = sor.u32 %s150, %s151
    %p153 = scmp.eq.s32.totalorder %s152, 0
    %s155 = sadd.s32 %s154, 1
    %s156 = scalar_select %p153, %s154, %s155
    %p159 = pneg %p153
    %p160 = scmp.eq.s32.totalorder %s11, 1
    %p161 = por %p159, %p160
    %p162 = scmp.ne.s32.totalorder %s154, %s157
    %p163 = scmp.eq.s32.totalorder %s11, 0
    %p164 = por %p162, %p163
    %p165 = scmp.ne.s32.totalorder %s154, %s157
    %p166 = scmp.eq.s32.totalorder %s16, 1
    %p167 = por %p165, %p166
    %p168 = scmp.ne.s32.totalorder %s157, %s158
    %p169 = scmp.eq.s32.totalorder %s16, 0
    %p170 = por %p168, %p169
    %p171 = scmp.ne.s32.totalorder %s157, %s158
    %p172 = scmp.eq.s32.totalorder %s17, 1
    %p173 = por %p171, %p172
    %p175 = scmp.ne.s32.totalorder %s158, %s174
    %p176 = scmp.eq.s32.totalorder %s17, 0
    %p177 = por %p175, %p176
    %p178 = scmp.le.s32.totalorder 1, %s11
    %p179 = scmp.lt.s32.totalorder %s11, 3
    %p180 = pnand %p178, %p179
    %p181 = pneg %p180
    // Predicated region
    $region9: #{decoder_forward.7} parent=5 // pred_check
      _
    $region10: #{decoder_forward.7} parent=5 // pred_check_branch
      %183 = sbr.rel (%p180) target = $region12
    $region11: #{decoder_forward.7} parent=5 // pred_region
      %s184 = ssub.s32 %s11, 1
      // Predicated region
      $region13: #{decoder_forward.7} parent=11 // pred_check
        %p185 = pneg %p84
      $region14: #{decoder_forward.7} parent=11 // pred_check_branch
        %187 = sbr.rel (%p185) target = $region16
      $region15: #{decoder_forward.7} parent=11 // pred_region
        %p188 = scmp.lt.s32.totalorder %s23, 0
        %s189 = scalar_select %p188, %s23, 0
        %s190 = smul.addr %s189, 4
        %s191 = scalar_lea.vmem %s1, %s190
      $region16: #{decoder_forward.7} parent=11 // pred_fallthru
        _
      // Predicated region
      $region17: #{decoder_forward.7} parent=11 // pred_check
        %p192 = pneg %p110
      $region18: #{decoder_forward.7} parent=11 // pred_check_branch
        %194 = sbr.rel (%p192) target = $region20
      $region19: #{decoder_forward.7} parent=11 // pred_region
        %p195 = scmp.lt.s32.totalorder %s23, 0
        %s196 = scalar_select %p195, %s23, 0
        %s197 = scalar_lea.vmem %s2, %s196
      $region20: #{decoder_forward.7} parent=11 // pred_fallthru
        _
    $region12: #{decoder_forward.7} parent=5 // pred_fallthru
      _
    %p198 = scmp.lt.s32.totalorder %s11, 2
    // Predicated region
    $region21: #{decoder_forward.7} parent=5 // pred_check
      %p199 = pneg %p198
    $region22: #{decoder_forward.7} parent=5 // pred_check_branch
      %201 = sbr.rel (%p199) target = $region24
    $region23: #{decoder_forward.7} parent=5 // pred_region
      // Predicated region
      $region25: #{decoder_forward.7} parent=23 // pred_check
        %p202 = pneg %p52
      $region26: #{decoder_forward.7} parent=23 // pred_check_branch
        %204 = sbr.rel (%p202) target = $region28
      $region27: #{decoder_forward.7} parent=23 // pred_region
        %s205 = smul.u32 62, %s19
        %p206 = scmp.lt.s32.totalorder %s18, 1
        %s207 = scalar_select %p206, %s18, 1
        %p208 = scmp.lt.s32.totalorder %s205, 61
        %s209 = scalar_select %p208, %s205, 61
        %s210 = smul.addr %s207, 62
        %s211 = sadd.s32 %s209, %s210
        %s212 = smul.addr %s211, 4
        %s213 = scalar_lea.vmem %s0, %s212
        %s214 = smul.u32 62, %s19
      $region28: #{decoder_forward.7} parent=23 // pred_fallthru
        _
    $region24: #{decoder_forward.7} parent=5 // pred_fallthru
      _
    %p215 = scmp.le.s32.totalorder 1, %s11
    %p216 = scmp.lt.s32.totalorder %s11, 3
    %p217 = pnand %p215, %p216
    %p218 = pneg %p217
    // Predicated region
    $region29: #{decoder_forward.7} parent=5 // pred_check
      _
    $region30: #{decoder_forward.7} parent=5 // pred_check_branch
      %220 = sbr.rel (%p217) target = $region32
    $region31: #{decoder_forward.7} parent=5 // pred_region
      %s221 = ssub.s32 %s11, 1
      %s222 = smul.u32 62, %s22
      %p223 = scmp.lt.s32.totalorder %s21, 1
      %s224 = scalar_select %p223, %s21, 1
      %p225 = scmp.lt.s32.totalorder %s222, 61
      %s226 = scalar_select %p225, %s222, 61
      %s227 = smul.addr %s224, 62
      %s228 = sadd.s32 %s226, %s227
      %s229 = smul.addr %s228, 4
      %s230 = scalar_lea.vmem %s0, %s229
      %p231 = pneg %p58
      %p232 = pneg %p55
      %p233 = scmp.lt.s32.totalorder %s23, 0
      %s234 = scalar_select %p233, %s23, 0
      %s235 = smul.addr %s234, 4
      %s236 = scalar_lea.vmem %s1, %s235
      %p237 = pneg %p84
      %p238 = pneg %p81
      %p239 = scmp.lt.s32.totalorder %s23, 0
      %s240 = scalar_select %p239, %s23, 0
      %s241 = scalar_lea.vmem %s2, %s240
      %p242 = pneg %p110
      %p243 = pneg %p107
      %p244 = pneg %p140
      %p245 = pneg %p137
      %s246 = smul.u32 62, %s22
      %p247 = scmp.lt.s32.totalorder %s21, 1
      %s248 = scalar_select %p247, %s21, 1
      %p249 = scmp.lt.s32.totalorder %s246, 61
      %s250 = scalar_select %p249, %s246, 61
      %p251 = scmp.lt.s32.totalorder %s23, 0
      %s252 = scalar_select %p251, %s23, 0
      %s253 = sadd.s32 %s252, %s250
      %s254 = smul.addr %s248, 62
      %s255 = sadd.s32 %s253, %s254
      %s256 = smul.addr %s255, 4
      %s257 = scalar_lea.vmem %s3, %s256
      %p258 = pneg %p170
      %p259 = pneg %p167
      %p260 = scmp.lt.s32.totalorder %s21, 1
      %s261 = scalar_select %p260, %s21, 1
      %p262 = scmp.lt.s32.totalorder %s22, 0
      %s263 = scalar_select %p262, %s22, 0
      %p264 = scmp.lt.s32.totalorder %s23, 0
      %s265 = scalar_select %p264, %s23, 0
      %s266 = sadd.s32 %s265, %s263
      %s267 = sadd.s32 %s266, %s261
      %s268 = smul.addr %s267, 2
      %s269 = scalar_lea.vmem %s4, %s268
      %s270 = smul.u32 62, %s22
      %p271 = scmp.lt.s32.totalorder %s21, 1
      %s272 = scalar_select %p271, %s21, 1
      %p273 = scmp.lt.s32.totalorder %s270, 61
      %s274 = scalar_select %p273, %s270, 61
      %s275 = smul.addr %s272, 62
      %s276 = sadd.s32 %s274, %s275
      %s277 = smul.addr %s276, 4
      %s278 = scalar_lea.vmem %s0, %s277
      %s279 = smul.u32 62, %s22
      %p280 = scmp.lt.s32.totalorder %s23, 0
      %s281 = scalar_select %p280, %s23, 0
      %s282 = smul.addr %s281, 4
      %s283 = scalar_lea.vmem %s1, %s282
      %p284 = scmp.lt.s32.totalorder %s23, 0
      %s285 = scalar_select %p284, %s23, 0
      %s286 = scalar_lea.vmem %s2, %s285
      %s287 = smul.u32 62, %s22
      %p288 = scmp.lt.s32.totalorder %s21, 1
      %s289 = scalar_select %p288, %s21, 1
      %p290 = scmp.lt.s32.totalorder %s287, 61
      %s291 = scalar_select %p290, %s287, 61
      %p292 = scmp.lt.s32.totalorder %s23, 0
      %s293 = scalar_select %p292, %s23, 0
      %s294 = sadd.s32 %s293, %s291
      %s295 = smul.addr %s289, 62
      %s296 = sadd.s32 %s294, %s295
      %s297 = smul.addr %s296, 4
      %s298 = scalar_lea.vmem %s3, %s297
      %s299 = smul.u32 62, %s22
      %p300 = scmp.lt.s32.totalorder %s21, 1
      %s301 = scalar_select %p300, %s21, 1
      %p302 = scmp.lt.s32.totalorder %s22, 0
      %s303 = scalar_select %p302, %s22, 0
      %p304 = scmp.lt.s32.totalorder %s23, 0
      %s305 = scalar_select %p304, %s23, 0
      %s306 = sadd.s32 %s305, %s303
      %s307 = sadd.s32 %s306, %s301
      %s308 = smul.addr %s307, 2
      %s309 = scalar_lea.vmem %s4, %s308
      %v311 = vld [vmem:[%s278] sm:$0xf]
      %v312 = vld [vmem:[%s278 + $0x4] sm:$0xf]
      %v313 = vld [vmem:[%s278 + $0x8] sm:$0xf]
      %v314 = vld [vmem:[%s278 + $0xc] sm:$0xf]
      %v315 = vld [vmem:[%s278 + $0x10] sm:$0xf]
      %v316 = vld [vmem:[%s278 + $0x14] sm:$0xf]
      %v317 = vld [vmem:[%s278 + $0x18] sm:$0xf]
      %v318 = vld [vmem:[%s278 + $0x1c] sm:$0xf]
      %v319 = vld [vmem:[%s278 + $0x20] sm:$0xf]
      %v320 = vld [vmem:[%s278 + $0x24] sm:$0xf]
      %v321 = vld [vmem:[%s278 + $0x28] sm:$0xf]
      %v322 = vld [vmem:[%s278 + $0x2c] sm:$0xf]
      %v323 = vld [vmem:[%s278 + $0x30] sm:$0xf]
      %v324 = vld [vmem:[%s278 + $0x34] sm:$0xf]
      %v325 = vld [vmem:[%s278 + $0x38] sm:$0xf]
      %v326 = vld [vmem:[%s278 + $0x3c] sm:$0xf]
      %v327 = vld [vmem:[%s278 + $0x40] sm:$0xf]
      %v328 = vld [vmem:[%s278 + $0x44] sm:$0xf]
      %v329 = vld [vmem:[%s278 + $0x48] sm:$0xf]
      %v330 = vld [vmem:[%s278 + $0x4c] sm:$0xf]
      %v331 = vld [vmem:[%s278 + $0x50] sm:$0xf]
      %v332 = vld [vmem:[%s278 + $0x54] sm:$0xf]
      %v333 = vld [vmem:[%s278 + $0x58] sm:$0xf]
      %v334 = vld [vmem:[%s278 + $0x5c] sm:$0xf]
      %v335 = vld [vmem:[%s278 + $0x60] sm:$0xf]
      %v336 = vld [vmem:[%s278 + $0x64] sm:$0xf]
      %v337 = vld [vmem:[%s278 + $0x68] sm:$0xf]
      %v338 = vld [vmem:[%s278 + $0x6c] sm:$0xf]
      %v339 = vld [vmem:[%s278 + $0x70] sm:$0xf]
      %v340 = vld [vmem:[%s278 + $0x74] sm:$0xf]
      %v341 = vld [vmem:[%s278 + $0x78] sm:$0xf]
      %v342 = vld [vmem:[%s278 + $0x7c] sm:$0xf]
      %v343 = vld [vmem:[%s278 + $0x80] sm:$0xf]
      %v344 = vld [vmem:[%s278 + $0x84] sm:$0xf]
      %v345 = vld [vmem:[%s278 + $0x88] sm:$0xf]
      %v346 = vld [vmem:[%s278 + $0x8c] sm:$0xf]
      %v347 = vld [vmem:[%s278 + $0x90] sm:$0xf]
      %v348 = vld [vmem:[%s278 + $0x94] sm:$0xf]
      %v349 = vld [vmem:[%s278 + $0x98] sm:$0xf]
      %v350 = vld [vmem:[%s278 + $0x9c] sm:$0xf]
      %v351 = vld [vmem:[%s278 + $0xa0] sm:$0xf]
      %v352 = vld [vmem:[%s278 + $0xa4] sm:$0xf]
      %v353 = vld [vmem:[%s278 + $0xa8] sm:$0xf]
      %v354 = vld [vmem:[%s278 + $0xac] sm:$0xf]
      %v355 = vld [vmem:[%s278 + $0xb0] sm:$0xf]
      %v356 = vld [vmem:[%s278 + $0xb4] sm:$0xf]
      %v357 = vld [vmem:[%s278 + $0xb8] sm:$0xf]
      %v358 = vld [vmem:[%s278 + $0xbc] sm:$0xf]
      %v359 = vld [vmem:[%s278 + $0xc0] sm:$0xf]
      %v360 = vld [vmem:[%s278 + $0xc4] sm:$0xf]
      %v361 = vld [vmem:[%s278 + $0xc8] sm:$0xf]
      %v362 = vld [vmem:[%s278 + $0xcc] sm:$0xf]
      %v363 = vld [vmem:[%s278 + $0xd0] sm:$0xf]
      %v364 = vld [vmem:[%s278 + $0xd4] sm:$0xf]
      %v365 = vld [vmem:[%s278 + $0xd8] sm:$0xf]
      %v366 = vld [vmem:[%s278 + $0xdc] sm:$0xf]
      %v367 = vld [vmem:[%s278 + $0xe0] sm:$0xf]
      %v368 = vld [vmem:[%s278 + $0xe4] sm:$0xf]
      %v369 = vld [vmem:[%s278 + $0xe8] sm:$0xf]
      %v370 = vld [vmem:[%s278 + $0xec] sm:$0xf]
      %v371 = vld [vmem:[%s278 + $0xf0] sm:$0xf]
      %v372 = vld [vmem:[%s278 + $0xf4] sm:$0xf]
      %v373 = vld [vmem:[%s283] sm:$0xf]
      %v374 = vld [vmem:[%s283 + $0x4] sm:$0xf]
      %v375 = vld [vmem:[%s283 + $0x8] sm:$0xf]
      %v376 = vld [vmem:[%s283 + $0xc] sm:$0xf]
      %v377 = vld [vmem:[%s283 + $0x10] sm:$0xf]
      %v378 = vld [vmem:[%s283 + $0x14] sm:$0xf]
      %v379 = vld [vmem:[%s283 + $0x18] sm:$0xf]
      %v380 = vld [vmem:[%s283 + $0x1c] sm:$0xf]
      %v381 = vld [vmem:[%s286] sm:$0x1]
      %v383 = vlaneseq
      %v384 = vshrl.u32 %v383, 7
      %v385 = vsub.s32 0, %v384
      %v386 = vrot.slane %v381, %v385
      %v450 = vunpack.c.l.b16 %v311
      %v451 = vunpack.c.l.b16 %v312
      %v452 = vunpack.c.l.b16 %v313
      %v453 = vunpack.c.l.b16 %v314
      %v454 = vunpack.c.l.b16 %v315
      %v455 = vunpack.c.l.b16 %v316
      %v456 = vunpack.c.l.b16 %v317
      %v457 = vunpack.c.l.b16 %v318
      %v458 = vunpack.c.l.b16 %v319
      %v459 = vunpack.c.l.b16 %v320
      %v460 = vunpack.c.l.b16 %v321
      %v461 = vunpack.c.l.b16 %v322
      %v462 = vunpack.c.l.b16 %v323
      %v463 = vunpack.c.l.b16 %v324
      %v464 = vunpack.c.l.b16 %v325
      %v465 = vunpack.c.l.b16 %v326
      %v466 = vunpack.c.l.b16 %v327
      %v467 = vunpack.c.l.b16 %v328
      %v468 = vunpack.c.l.b16 %v329
      %v469 = vunpack.c.l.b16 %v330
      %v470 = vunpack.c.l.b16 %v331
      %v471 = vunpack.c.l.b16 %v332
      %v472 = vunpack.c.l.b16 %v333
      %v473 = vunpack.c.l.b16 %v334
      %v474 = vunpack.c.l.b16 %v335
      %v475 = vunpack.c.l.b16 %v336
      %v476 = vunpack.c.l.b16 %v337
      %v477 = vunpack.c.l.b16 %v338
      %v478 = vunpack.c.l.b16 %v339
      %v479 = vunpack.c.l.b16 %v340
      %v480 = vunpack.c.l.b16 %v341
      %v481 = vunpack.c.l.b16 %v342
      %v482 = vunpack.c.l.b16 %v343
      %v483 = vunpack.c.l.b16 %v344
      %v484 = vunpack.c.l.b16 %v345
      %v485 = vunpack.c.l.b16 %v346
      %v486 = vunpack.c.l.b16 %v347
      %v487 = vunpack.c.l.b16 %v348
      %v488 = vunpack.c.l.b16 %v349
      %v489 = vunpack.c.l.b16 %v350
      %v490 = vunpack.c.l.b16 %v351
      %v491 = vunpack.c.l.b16 %v352
      %v492 = vunpack.c.l.b16 %v353
      %v493 = vunpack.c.l.b16 %v354
      %v494 = vunpack.c.l.b16 %v355
      %v495 = vunpack.c.l.b16 %v356
      %v496 = vunpack.c.l.b16 %v357
      %v497 = vunpack.c.l.b16 %v358
      %v498 = vunpack.c.l.b16 %v359
      %v499 = vunpack.c.l.b16 %v360
      %v500 = vunpack.c.l.b16 %v361
      %v501 = vunpack.c.l.b16 %v362
      %v502 = vunpack.c.l.b16 %v363
      %v503 = vunpack.c.l.b16 %v364
      %v504 = vunpack.c.l.b16 %v365
      %v505 = vunpack.c.l.b16 %v366
      %v506 = vunpack.c.l.b16 %v367
      %v507 = vunpack.c.l.b16 %v368
      %v508 = vunpack.c.l.b16 %v369
      %v509 = vunpack.c.l.b16 %v370
      %v510 = vunpack.c.l.b16 %v371
      %v511 = vunpack.c.l.b16 %v372
      %v512 = vpack.c.b16 %v451, %v450
      %v513 = vpack.c.b16 %v453, %v452
      %v514 = vpack.c.b16 %v455, %v454
      %v515 = vpack.c.b16 %v457, %v456
      %v516 = vpack.c.b16 %v459, %v458
      %v517 = vpack.c.b16 %v461, %v460
      %v518 = vpack.c.b16 %v463, %v462
      %v519 = vpack.c.b16 %v465, %v464
      %v520 = vpack.c.b16 %v467, %v466
      %v521 = vpack.c.b16 %v469, %v468
      %v522 = vpack.c.b16 %v471, %v470
      %v523 = vpack.c.b16 %v473, %v472
      %v524 = vpack.c.b16 %v475, %v474
      %v525 = vpack.c.b16 %v477, %v476
      %v526 = vpack.c.b16 %v479, %v478
      %v527 = vpack.c.b16 %v481, %v480
      %v528 = vpack.c.b16 %v483, %v482
      %v529 = vpack.c.b16 %v485, %v484
      %v530 = vpack.c.b16 %v487, %v486
      %v531 = vpack.c.b16 %v489, %v488
      %v532 = vpack.c.b16 %v491, %v490
      %v533 = vpack.c.b16 %v493, %v492
      %v534 = vpack.c.b16 %v495, %v494
      %v535 = vpack.c.b16 %v497, %v496
      %v536 = vpack.c.b16 %v499, %v498
      %v537 = vpack.c.b16 %v501, %v500
      %v538 = vpack.c.b16 %v503, %v502
      %v539 = vpack.c.b16 %v505, %v504
      %v540 = vpack.c.b16 %v507, %v506
      %v541 = vpack.c.b16 %v509, %v508
      %v542 = vpack.c.b16 %v511, %v510
      %v551 = vunpack.c.l.b16 %v373
      %v552 = vunpack.c.l.b16 %v374
      %v553 = vunpack.c.l.b16 %v375
      %v554 = vunpack.c.l.b16 %v376
      %v555 = vunpack.c.l.b16 %v377
      %v556 = vunpack.c.l.b16 %v378
      %v557 = vunpack.c.l.b16 %v379
      %v558 = vunpack.c.l.b16 %v380
      %v559 = vpack.c.b16 %v552, %v551
      %v560 = vpack.c.b16 %v554, %v553
      %v561 = vpack.c.b16 %v556, %v555
      %v562 = vpack.c.b16 %v558, %v557
      %vm567 = vcmask 523264
      %v569 = vsel %vm567, %v512, 0
      %v572 = vsel %vm567, %v513, 0
      %v575 = vsel %vm567, %v514, 0
      %v578 = vsel %vm567, %v515, 0
      %v581 = vsel %vm567, %v516, 0
      %v584 = vsel %vm567, %v517, 0
      %v587 = vsel %vm567, %v518, 0
      %v590 = vsel %vm567, %v519, 0
      %v593 = vsel %vm567, %v520, 0
      %v596 = vsel %vm567, %v521, 0
      %v599 = vsel %vm567, %v522, 0
      %v602 = vsel %vm567, %v523, 0
      %v605 = vsel %vm567, %v524, 0
      %v608 = vsel %vm567, %v525, 0
      %v611 = vsel %vm567, %v526, 0
      %v614 = vsel %vm567, %v527, 0
      %v617 = vsel %vm567, %v528, 0
      %v620 = vsel %vm567, %v529, 0
      %v623 = vsel %vm567, %v530, 0
      %v626 = vsel %vm567, %v531, 0
      %v629 = vsel %vm567, %v532, 0
      %v632 = vsel %vm567, %v533, 0
      %v635 = vsel %vm567, %v534, 0
      %v638 = vsel %vm567, %v535, 0
      %v641 = vsel %vm567, %v536, 0
      %v644 = vsel %vm567, %v537, 0
      %v647 = vsel %vm567, %v538, 0
      %v650 = vsel %vm567, %v539, 0
      %v653 = vsel %vm567, %v540, 0
      %v656 = vsel %vm567, %v541, 0
      %v659 = vsel %vm567, %v542, 0
      %661 = vmatprep.subr.bf16.mxu0 0
      %662 = vmatpush1.bf16.msra.mxu0 0
      %663 = vmatprep.subr.bf16.mxu0 0
      %664 = vmatpush1.bf16.msra.mxu0 0
      %665 = vmatprep.subr.bf16.mxu0 0
      %666 = vmatpush1.bf16.msra.mxu0 0
      %667 = vmatprep.subr.bf16.mxu0 0
      %668 = vmatpush1.bf16.msra.mxu0 0
      %669 = vmatprep.subr.bf16.mxu0 0
      %670 = vmatpush1.bf16.msra.mxu0 %v562
      %671 = vmatprep.subr.bf16.mxu0 0
      %672 = vmatpush1.bf16.msra.mxu0 %v561
      %673 = vmatprep.subr.bf16.mxu0 0
      %674 = vmatpush1.bf16.msra.mxu0 %v560
      %675 = vmatprep.subr.bf16.mxu0 0
      %676 = vmatpush1.bf16.msra.mxu0 %v559
      %677 = vmatprep.subr.bf16.mxu0 0
      %678 = vmatpush2.bf16.msra.mxu0 0
      %679 = vmatprep.subr.bf16.mxu0 0
      %680 = vmatpush2.bf16.msra.mxu0 0
      %681 = vmatprep.subr.bf16.mxu0 0
      %682 = vmatpush2.bf16.msra.mxu0 0
      %683 = vmatprep.subr.bf16.mxu0 0
      %684 = vmatpush2.bf16.msra.mxu0 0
      %685 = vmatprep.subr.bf16.mxu0 0
      %686 = vmatpush2.bf16.msra.mxu0 0
      %687 = vmatprep.subr.bf16.mxu0 0
      %688 = vmatpush2.bf16.msra.mxu0 0
      %689 = vmatprep.subr.bf16.mxu0 0
      %690 = vmatpush2.bf16.msra.mxu0 0
      %691 = vmatprep.subr.bf16.mxu0 0
      %692 = vmatpush2.bf16.msra.mxu0 0
      %693 = vmatprep.mubr.bf16.mxu0 0
      %694 = vmatmul.mubr.bf16.gmra.mxu0 %v569
      %v695 = vpop.f32.mrf.mxu0
      %v696 = vadd.f32 %v386, %v695
      %v697 = vpop.f32.mrf.mxu0
      %v698 = vpop.f32.mrf.mxu0
      %v699 = vadd.f32 %v386, %v698
      %v700 = vpop.f32.mrf.mxu0
      %701 = vmatprep.mubr.bf16.mxu0 0
      %702 = vmatmul.mubr.bf16.gmra.mxu0 %v572
      %v703 = vpop.f32.mrf.mxu0
      %v704 = vadd.f32 %v386, %v703
      %v705 = vpop.f32.mrf.mxu0
      %v706 = vpop.f32.mrf.mxu0
      %v707 = vadd.f32 %v386, %v706
      %v708 = vpop.f32.mrf.mxu0
      %709 = vmatprep.mubr.bf16.mxu0 0
      %710 = vmatmul.mubr.bf16.gmra.mxu0 %v575
      %v711 = vpop.f32.mrf.mxu0
      %v712 = vadd.f32 %v386, %v711
      %v713 = vpop.f32.mrf.mxu0
      %v714 = vpop.f32.mrf.mxu0
      %v715 = vadd.f32 %v386, %v714
      %v716 = vpop.f32.mrf.mxu0
      %717 = vmatprep.mubr.bf16.mxu0 0
      %718 = vmatmul.mubr.bf16.gmra.mxu0 %v578
      %v719 = vpop.f32.mrf.mxu0
      %v720 = vadd.f32 %v386, %v719
      %v721 = vpop.f32.mrf.mxu0
      %v722 = vpop.f32.mrf.mxu0
      %v723 = vadd.f32 %v386, %v722
      %v724 = vpop.f32.mrf.mxu0
      %725 = vmatprep.mubr.bf16.mxu0 0
      %726 = vmatmul.mubr.bf16.gmra.mxu0 %v581
      %v727 = vpop.f32.mrf.mxu0
      %v728 = vadd.f32 %v386, %v727
      %v729 = vpop.f32.mrf.mxu0
      %v730 = vpop.f32.mrf.mxu0
      %v731 = vadd.f32 %v386, %v730
      %v732 = vpop.f32.mrf.mxu0
      %733 = vmatprep.mubr.bf16.mxu0 0
      %734 = vmatmul.mubr.bf16.gmra.mxu0 %v584
      %v735 = vpop.f32.mrf.mxu0
      %v736 = vadd.f32 %v386, %v735
      %v737 = vpop.f32.mrf.mxu0
      %v738 = vpop.f32.mrf.mxu0
      %v739 = vadd.f32 %v386, %v738
      %v740 = vpop.f32.mrf.mxu0
      %741 = vmatprep.mubr.bf16.mxu0 0
      %742 = vmatmul.mubr.bf16.gmra.mxu0 %v587
      %v743 = vpop.f32.mrf.mxu0
      %v744 = vadd.f32 %v386, %v743
      %v745 = vpop.f32.mrf.mxu0
      %v746 = vpop.f32.mrf.mxu0
      %v747 = vadd.f32 %v386, %v746
      %v748 = vpop.f32.mrf.mxu0
      %749 = vmatprep.mubr.bf16.mxu0 0
      %750 = vmatmul.mubr.bf16.gmra.mxu0 %v590
      %v751 = vpop.f32.mrf.mxu0
      %v752 = vadd.f32 %v386, %v751
      %v753 = vpop.f32.mrf.mxu0
      %v754 = vpop.f32.mrf.mxu0
      %v755 = vadd.f32 %v386, %v754
      %v756 = vpop.f32.mrf.mxu0
      %757 = vmatprep.mubr.bf16.mxu0 0
      %758 = vmatmul.mubr.bf16.gmra.mxu0 %v593
      %v759 = vpop.f32.mrf.mxu0
      %v760 = vadd.f32 %v386, %v759
      %v761 = vpop.f32.mrf.mxu0
      %v762 = vpop.f32.mrf.mxu0
      %v763 = vadd.f32 %v386, %v762
      %v764 = vpop.f32.mrf.mxu0
      %765 = vmatprep.mubr.bf16.mxu0 0
      %766 = vmatmul.mubr.bf16.gmra.mxu0 %v596
      %v767 = vpop.f32.mrf.mxu0
      %v768 = vadd.f32 %v386, %v767
      %v769 = vpop.f32.mrf.mxu0
      %v770 = vpop.f32.mrf.mxu0
      %v771 = vadd.f32 %v386, %v770
      %v772 = vpop.f32.mrf.mxu0
      %773 = vmatprep.mubr.bf16.mxu0 0
      %774 = vmatmul.mubr.bf16.gmra.mxu0 %v599
      %v775 = vpop.f32.mrf.mxu0
      %v776 = vadd.f32 %v386, %v775
      %v777 = vpop.f32.mrf.mxu0
      %v778 = vpop.f32.mrf.mxu0
      %v779 = vadd.f32 %v386, %v778
      %v780 = vpop.f32.mrf.mxu0
      %781 = vmatprep.mubr.bf16.mxu0 0
      %782 = vmatmul.mubr.bf16.gmra.mxu0 %v602
      %v783 = vpop.f32.mrf.mxu0
      %v784 = vadd.f32 %v386, %v783
      %v785 = vpop.f32.mrf.mxu0
      %v786 = vpop.f32.mrf.mxu0
      %v787 = vadd.f32 %v386, %v786
      %v788 = vpop.f32.mrf.mxu0
      %789 = vmatprep.mubr.bf16.mxu0 0
      %790 = vmatmul.mubr.bf16.gmra.mxu0 %v605
      %v791 = vpop.f32.mrf.mxu0
      %v792 = vadd.f32 %v386, %v791
      %v793 = vpop.f32.mrf.mxu0
      %v794 = vpop.f32.mrf.mxu0
      %v795 = vadd.f32 %v386, %v794
      %v796 = vpop.f32.mrf.mxu0
      %797 = vmatprep.mubr.bf16.mxu0 0
      %798 = vmatmul.mubr.bf16.gmra.mxu0 %v608
      %v799 = vpop.f32.mrf.mxu0
      %v800 = vadd.f32 %v386, %v799
      %v801 = vpop.f32.mrf.mxu0
      %v802 = vpop.f32.mrf.mxu0
      %v803 = vadd.f32 %v386, %v802
      %v804 = vpop.f32.mrf.mxu0
      %805 = vmatprep.mubr.bf16.mxu0 0
      %806 = vmatmul.mubr.bf16.gmra.mxu0 %v611
      %v807 = vpop.f32.mrf.mxu0
      %v808 = vadd.f32 %v386, %v807
      %v809 = vpop.f32.mrf.mxu0
      %v810 = vpop.f32.mrf.mxu0
      %v811 = vadd.f32 %v386, %v810
      %v812 = vpop.f32.mrf.mxu0
      %813 = vmatprep.mubr.bf16.mxu0 0
      %814 = vmatmul.mubr.bf16.gmra.mxu0 %v614
      %v815 = vpop.f32.mrf.mxu0
      %v816 = vadd.f32 %v386, %v815
      %v817 = vpop.f32.mrf.mxu0
      %v818 = vpop.f32.mrf.mxu0
      %v819 = vadd.f32 %v386, %v818
      %v820 = vpop.f32.mrf.mxu0
      %821 = vmatprep.mubr.bf16.mxu0 0
      %822 = vmatmul.mubr.bf16.gmra.mxu0 %v617
      %v823 = vpop.f32.mrf.mxu0
      %v824 = vadd.f32 %v386, %v823
      %v825 = vpop.f32.mrf.mxu0
      %v826 = vpop.f32.mrf.mxu0
      %v827 = vadd.f32 %v386, %v826
      %v828 = vpop.f32.mrf.mxu0
      %829 = vmatprep.mubr.bf16.mxu0 0
      %830 = vmatmul.mubr.bf16.gmra.mxu0 %v620
      %v831 = vpop.f32.mrf.mxu0
      %v832 = vadd.f32 %v386, %v831
      %v833 = vpop.f32.mrf.mxu0
      %v834 = vpop.f32.mrf.mxu0
      %v835 = vadd.f32 %v386, %v834
      %v836 = vpop.f32.mrf.mxu0
      %837 = vmatprep.mubr.bf16.mxu0 0
      %838 = vmatmul.mubr.bf16.gmra.mxu0 %v623
      %v839 = vpop.f32.mrf.mxu0
      %v840 = vadd.f32 %v386, %v839
      %v841 = vpop.f32.mrf.mxu0
      %v842 = vpop.f32.mrf.mxu0
      %v843 = vadd.f32 %v386, %v842
      %v844 = vpop.f32.mrf.mxu0
      %845 = vmatprep.mubr.bf16.mxu0 0
      %846 = vmatmul.mubr.bf16.gmra.mxu0 %v626
      %v847 = vpop.f32.mrf.mxu0
      %v848 = vadd.f32 %v386, %v847
      %v849 = vpop.f32.mrf.mxu0
      %v850 = vpop.f32.mrf.mxu0
      %v851 = vadd.f32 %v386, %v850
      %v852 = vpop.f32.mrf.mxu0
      %853 = vmatprep.mubr.bf16.mxu0 0
      %854 = vmatmul.mubr.bf16.gmra.mxu0 %v629
      %v855 = vpop.f32.mrf.mxu0
      %v856 = vadd.f32 %v386, %v855
      %v857 = vpop.f32.mrf.mxu0
      %v858 = vpop.f32.mrf.mxu0
      %v859 = vadd.f32 %v386, %v858
      %v860 = vpop.f32.mrf.mxu0
      %861 = vmatprep.mubr.bf16.mxu0 0
      %862 = vmatmul.mubr.bf16.gmra.mxu0 %v632
      %v863 = vpop.f32.mrf.mxu0
      %v864 = vadd.f32 %v386, %v863
      %v865 = vpop.f32.mrf.mxu0
      %v866 = vpop.f32.mrf.mxu0
      %v867 = vadd.f32 %v386, %v866
      %v868 = vpop.f32.mrf.mxu0
      %869 = vmatprep.mubr.bf16.mxu0 0
      %870 = vmatmul.mubr.bf16.gmra.mxu0 %v635
      %v871 = vpop.f32.mrf.mxu0
      %v872 = vadd.f32 %v386, %v871
      %v873 = vpop.f32.mrf.mxu0
      %v874 = vpop.f32.mrf.mxu0
      %v875 = vadd.f32 %v386, %v874
      %v876 = vpop.f32.mrf.mxu0
      %877 = vmatprep.mubr.bf16.mxu0 0
      %878 = vmatmul.mubr.bf16.gmra.mxu0 %v638
      %v879 = vpop.f32.mrf.mxu0
      %v880 = vadd.f32 %v386, %v879
      %v881 = vpop.f32.mrf.mxu0
      %v882 = vpop.f32.mrf.mxu0
      %v883 = vadd.f32 %v386, %v882
      %v884 = vpop.f32.mrf.mxu0
      %885 = vmatprep.mubr.bf16.mxu0 0
      %886 = vmatmul.mubr.bf16.gmra.mxu0 %v641
      %v887 = vpop.f32.mrf.mxu0
      %v888 = vadd.f32 %v386, %v887
      %v889 = vpop.f32.mrf.mxu0
      %v890 = vpop.f32.mrf.mxu0
      %v891 = vadd.f32 %v386, %v890
      %v892 = vpop.f32.mrf.mxu0
      %893 = vmatprep.mubr.bf16.mxu0 0
      %894 = vmatmul.mubr.bf16.gmra.mxu0 %v644
      %v895 = vpop.f32.mrf.mxu0
      %v896 = vadd.f32 %v386, %v895
      %v897 = vpop.f32.mrf.mxu0
      %v898 = vpop.f32.mrf.mxu0
      %v899 = vadd.f32 %v386, %v898
      %v900 = vpop.f32.mrf.mxu0
      %901 = vmatprep.mubr.bf16.mxu0 0
      %902 = vmatmul.mubr.bf16.gmra.mxu0 %v647
      %v903 = vpop.f32.mrf.mxu0
      %v904 = vadd.f32 %v386, %v903
      %v905 = vpop.f32.mrf.mxu0
      %v906 = vpop.f32.mrf.mxu0
      %v907 = vadd.f32 %v386, %v906
      %v908 = vpop.f32.mrf.mxu0
      %909 = vmatprep.mubr.bf16.mxu0 0
      %910 = vmatmul.mubr.bf16.gmra.mxu0 %v650
      %v911 = vpop.f32.mrf.mxu0
      %v912 = vadd.f32 %v386, %v911
      %v913 = vpop.f32.mrf.mxu0
      %v914 = vpop.f32.mrf.mxu0
      %v915 = vadd.f32 %v386, %v914
      %v916 = vpop.f32.mrf.mxu0
      %917 = vmatprep.mubr.bf16.mxu0 0
      %918 = vmatmul.mubr.bf16.gmra.mxu0 %v653
      %v919 = vpop.f32.mrf.mxu0
      %v920 = vadd.f32 %v386, %v919
      %v921 = vpop.f32.mrf.mxu0
      %v922 = vpop.f32.mrf.mxu0
      %v923 = vadd.f32 %v386, %v922
      %v924 = vpop.f32.mrf.mxu0
      %925 = vmatprep.mubr.bf16.mxu0 0
      %926 = vmatmul.mubr.bf16.gmra.mxu0 %v656
      %v927 = vpop.f32.mrf.mxu0
      %v928 = vadd.f32 %v386, %v927
      %v929 = vpop.f32.mrf.mxu0
      %v930 = vpop.f32.mrf.mxu0
      %v931 = vadd.f32 %v386, %v930
      %v932 = vpop.f32.mrf.mxu0
      %933 = vmatprep.mubr.bf16.mxu0 0
      %934 = vmatmul.mubr.bf16.gmra.mxu0 %v659
      %v935 = vpop.f32.mrf.mxu0
      %v936 = vadd.f32 %v386, %v935
      %v937 = vpop.f32.mrf.mxu0
      %v938 = vpop.f32.mrf.mxu0
      %v939 = vadd.f32 %v386, %v938
      %v940 = vpop.f32.mrf.mxu0
      %941 = vdwg.mxu0
      %v942 = vpack.c.bf16 %v699, %v696
      %v943 = vpack.c.bf16 %v707, %v704
      %v944 = vpack.c.bf16 %v715, %v712
      %v945 = vpack.c.bf16 %v723, %v720
      %v946 = vpack.c.bf16 %v731, %v728
      %v947 = vpack.c.bf16 %v739, %v736
      %v948 = vpack.c.bf16 %v747, %v744
      %v949 = vpack.c.bf16 %v755, %v752
      %v950 = vpack.c.bf16 %v763, %v760
      %v951 = vpack.c.bf16 %v771, %v768
      %v952 = vpack.c.bf16 %v779, %v776
      %v953 = vpack.c.bf16 %v787, %v784
      %v954 = vpack.c.bf16 %v795, %v792
      %v955 = vpack.c.bf16 %v803, %v800
      %v956 = vpack.c.bf16 %v811, %v808
      %v957 = vpack.c.bf16 %v819, %v816
      %v958 = vpack.c.bf16 %v827, %v824
      %v959 = vpack.c.bf16 %v835, %v832
      %v960 = vpack.c.bf16 %v843, %v840
      %v961 = vpack.c.bf16 %v851, %v848
      %v962 = vpack.c.bf16 %v859, %v856
      %v963 = vpack.c.bf16 %v867, %v864
      %v964 = vpack.c.bf16 %v875, %v872
      %v965 = vpack.c.bf16 %v883, %v880
      %v966 = vpack.c.bf16 %v891, %v888
      %v967 = vpack.c.bf16 %v899, %v896
      %v968 = vpack.c.bf16 %v907, %v904
      %v969 = vpack.c.bf16 %v915, %v912
      %v970 = vpack.c.bf16 %v923, %v920
      %v971 = vpack.c.bf16 %v931, %v928
      %v972 = vpack.c.bf16 %v939, %v936
      %v1004 = vunpack.c.l.b16 %v942
      %v1005 = vunpack.c.h.b16 %v942
      %v1006 = vunpack.c.l.b16 %v943
      %v1007 = vunpack.c.h.b16 %v943
      %v1008 = vunpack.c.l.b16 %v944
      %v1009 = vunpack.c.h.b16 %v944
      %v1010 = vunpack.c.l.b16 %v945
      %v1011 = vunpack.c.h.b16 %v945
      %v1012 = vunpack.c.l.b16 %v946
      %v1013 = vunpack.c.h.b16 %v946
      %v1014 = vunpack.c.l.b16 %v947
      %v1015 = vunpack.c.h.b16 %v947
      %v1016 = vunpack.c.l.b16 %v948
      %v1017 = vunpack.c.h.b16 %v948
      %v1018 = vunpack.c.l.b16 %v949
      %v1019 = vunpack.c.h.b16 %v949
      %v1020 = vunpack.c.l.b16 %v950
      %v1021 = vunpack.c.h.b16 %v950
      %v1022 = vunpack.c.l.b16 %v951
      %v1023 = vunpack.c.h.b16 %v951
      %v1024 = vunpack.c.l.b16 %v952
      %v1025 = vunpack.c.h.b16 %v952
      %v1026 = vunpack.c.l.b16 %v953
      %v1027 = vunpack.c.h.b16 %v953
      %v1028 = vunpack.c.l.b16 %v954
      %v1029 = vunpack.c.h.b16 %v954
      %v1030 = vunpack.c.l.b16 %v955
      %v1031 = vunpack.c.h.b16 %v955
      %v1032 = vunpack.c.l.b16 %v956
      %v1033 = vunpack.c.h.b16 %v956
      %v1034 = vunpack.c.l.b16 %v957
      %v1035 = vunpack.c.h.b16 %v957
      %v1036 = vunpack.c.l.b16 %v958
      %v1037 = vunpack.c.h.b16 %v958
      %v1038 = vunpack.c.l.b16 %v959
      %v1039 = vunpack.c.h.b16 %v959
      %v1040 = vunpack.c.l.b16 %v960
      %v1041 = vunpack.c.h.b16 %v960
      %v1042 = vunpack.c.l.b16 %v961
      %v1043 = vunpack.c.h.b16 %v961
      %v1044 = vunpack.c.l.b16 %v962
      %v1045 = vunpack.c.h.b16 %v962
      %v1046 = vunpack.c.l.b16 %v963
      %v1047 = vunpack.c.h.b16 %v963
      %v1048 = vunpack.c.l.b16 %v964
      %v1049 = vunpack.c.h.b16 %v964
      %v1050 = vunpack.c.l.b16 %v965
      %v1051 = vunpack.c.h.b16 %v965
      %v1052 = vunpack.c.l.b16 %v966
      %v1053 = vunpack.c.h.b16 %v966
      %v1054 = vunpack.c.l.b16 %v967
      %v1055 = vunpack.c.h.b16 %v967
      %v1056 = vunpack.c.l.b16 %v968
      %v1057 = vunpack.c.h.b16 %v968
      %v1058 = vunpack.c.l.b16 %v969
      %v1059 = vunpack.c.h.b16 %v969
      %v1060 = vunpack.c.l.b16 %v970
      %v1061 = vunpack.c.h.b16 %v970
      %v1062 = vunpack.c.l.b16 %v971
      %v1063 = vunpack.c.h.b16 %v971
      %v1064 = vunpack.c.l.b16 %v972
      %v1065 = vunpack.c.h.b16 %v972
      %v1066 = vpack.c.b16 %v1004, %v1004
      %v1067 = vpack.c.b16 %v1005, %v1005
      %v1068 = vpack.c.b16 %v1006, %v1006
      %v1069 = vpack.c.b16 %v1007, %v1007
      %v1070 = vpack.c.b16 %v1008, %v1008
      %v1071 = vpack.c.b16 %v1009, %v1009
      %v1072 = vpack.c.b16 %v1010, %v1010
      %v1073 = vpack.c.b16 %v1011, %v1011
      %v1074 = vpack.c.b16 %v1012, %v1012
      %v1075 = vpack.c.b16 %v1013, %v1013
      %v1076 = vpack.c.b16 %v1014, %v1014
      %v1077 = vpack.c.b16 %v1015, %v1015
      %v1078 = vpack.c.b16 %v1016, %v1016
      %v1079 = vpack.c.b16 %v1017, %v1017
      %v1080 = vpack.c.b16 %v1018, %v1018
      %v1081 = vpack.c.b16 %v1019, %v1019
      %v1082 = vpack.c.b16 %v1020, %v1020
      %v1083 = vpack.c.b16 %v1021, %v1021
      %v1084 = vpack.c.b16 %v1022, %v1022
      %v1085 = vpack.c.b16 %v1023, %v1023
      %v1086 = vpack.c.b16 %v1024, %v1024
      %v1087 = vpack.c.b16 %v1025, %v1025
      %v1088 = vpack.c.b16 %v1026, %v1026
      %v1089 = vpack.c.b16 %v1027, %v1027
      %v1090 = vpack.c.b16 %v1028, %v1028
      %v1091 = vpack.c.b16 %v1029, %v1029
      %v1092 = vpack.c.b16 %v1030, %v1030
      %v1093 = vpack.c.b16 %v1031, %v1031
      %v1094 = vpack.c.b16 %v1032, %v1032
      %v1095 = vpack.c.b16 %v1033, %v1033
      %v1096 = vpack.c.b16 %v1034, %v1034
      %v1097 = vpack.c.b16 %v1035, %v1035
      %v1098 = vpack.c.b16 %v1036, %v1036
      %v1099 = vpack.c.b16 %v1037, %v1037
      %v1100 = vpack.c.b16 %v1038, %v1038
      %v1101 = vpack.c.b16 %v1039, %v1039
      %v1102 = vpack.c.b16 %v1040, %v1040
      %v1103 = vpack.c.b16 %v1041, %v1041
      %v1104 = vpack.c.b16 %v1042, %v1042
      %v1105 = vpack.c.b16 %v1043, %v1043
      %v1106 = vpack.c.b16 %v1044, %v1044
      %v1107 = vpack.c.b16 %v1045, %v1045
      %v1108 = vpack.c.b16 %v1046, %v1046
      %v1109 = vpack.c.b16 %v1047, %v1047
      %v1110 = vpack.c.b16 %v1048, %v1048
      %v1111 = vpack.c.b16 %v1049, %v1049
      %v1112 = vpack.c.b16 %v1050, %v1050
      %v1113 = vpack.c.b16 %v1051, %v1051
      %v1114 = vpack.c.b16 %v1052, %v1052
      %v1115 = vpack.c.b16 %v1053, %v1053
      %v1116 = vpack.c.b16 %v1054, %v1054
      %v1117 = vpack.c.b16 %v1055, %v1055
      %v1118 = vpack.c.b16 %v1056, %v1056
      %v1119 = vpack.c.b16 %v1057, %v1057
      %v1120 = vpack.c.b16 %v1058, %v1058
      %v1121 = vpack.c.b16 %v1059, %v1059
      %v1122 = vpack.c.b16 %v1060, %v1060
      %v1123 = vpack.c.b16 %v1061, %v1061
      %v1124 = vpack.c.b16 %v1062, %v1062
      %v1125 = vpack.c.b16 %v1063, %v1063
      %v1126 = vpack.c.b16 %v1064, %v1064
      %v1127 = vpack.c.b16 %v1065, %v1065
      %vm1190 = vcmask 519168
      %1191 = vst.msk [vmem:[%s298] sm:$0xf] %vm1190, %v1066
      %1192 = vst.msk [vmem:[%s298 + $0x4] sm:$0xf] %vm1190, %v1067
      %1193 = vst.msk [vmem:[%s298 + $0x8] sm:$0xf] %vm1190, %v1068
      %1194 = vst.msk [vmem:[%s298 + $0xc] sm:$0xf] %vm1190, %v1069
      %1195 = vst.msk [vmem:[%s298 + $0x10] sm:$0xf] %vm1190, %v1070
      %1196 = vst.msk [vmem:[%s298 + $0x14] sm:$0xf] %vm1190, %v1071
      %1197 = vst.msk [vmem:[%s298 + $0x18] sm:$0xf] %vm1190, %v1072
      %1198 = vst.msk [vmem:[%s298 + $0x1c] sm:$0xf] %vm1190, %v1073
      %1199 = vst.msk [vmem:[%s298 + $0x20] sm:$0xf] %vm1190, %v1074
      %1200 = vst.msk [vmem:[%s298 + $0x24] sm:$0xf] %vm1190, %v1075
      %1201 = vst.msk [vmem:[%s298 + $0x28] sm:$0xf] %vm1190, %v1076
      %1202 = vst.msk [vmem:[%s298 + $0x2c] sm:$0xf] %vm1190, %v1077
      %1203 = vst.msk [vmem:[%s298 + $0x30] sm:$0xf] %vm1190, %v1078
      %1204 = vst.msk [vmem:[%s298 + $0x34] sm:$0xf] %vm1190, %v1079
      %1205 = vst.msk [vmem:[%s298 + $0x38] sm:$0xf] %vm1190, %v1080
      %1206 = vst.msk [vmem:[%s298 + $0x3c] sm:$0xf] %vm1190, %v1081
      %1207 = vst.msk [vmem:[%s298 + $0x40] sm:$0xf] %vm1190, %v1082
      %1208 = vst.msk [vmem:[%s298 + $0x44] sm:$0xf] %vm1190, %v1083
      %1209 = vst.msk [vmem:[%s298 + $0x48] sm:$0xf] %vm1190, %v1084
      %1210 = vst.msk [vmem:[%s298 + $0x4c] sm:$0xf] %vm1190, %v1085
      %1211 = vst.msk [vmem:[%s298 + $0x50] sm:$0xf] %vm1190, %v1086
      %1212 = vst.msk [vmem:[%s298 + $0x54] sm:$0xf] %vm1190, %v1087
      %1213 = vst.msk [vmem:[%s298 + $0x58] sm:$0xf] %vm1190, %v1088
      %1214 = vst.msk [vmem:[%s298 + $0x5c] sm:$0xf] %vm1190, %v1089
      %1215 = vst.msk [vmem:[%s298 + $0x60] sm:$0xf] %vm1190, %v1090
      %1216 = vst.msk [vmem:[%s298 + $0x64] sm:$0xf] %vm1190, %v1091
      %1217 = vst.msk [vmem:[%s298 + $0x68] sm:$0xf] %vm1190, %v1092
      %1218 = vst.msk [vmem:[%s298 + $0x6c] sm:$0xf] %vm1190, %v1093
      %1219 = vst.msk [vmem:[%s298 + $0x70] sm:$0xf] %vm1190, %v1094
      %1220 = vst.msk [vmem:[%s298 + $0x74] sm:$0xf] %vm1190, %v1095
      %1221 = vst.msk [vmem:[%s298 + $0x78] sm:$0xf] %vm1190, %v1096
      %1222 = vst.msk [vmem:[%s298 + $0x7c] sm:$0xf] %vm1190, %v1097
      %1223 = vst.msk [vmem:[%s298 + $0x80] sm:$0xf] %vm1190, %v1098
      %1224 = vst.msk [vmem:[%s298 + $0x84] sm:$0xf] %vm1190, %v1099
      %1225 = vst.msk [vmem:[%s298 + $0x88] sm:$0xf] %vm1190, %v1100
      %1226 = vst.msk [vmem:[%s298 + $0x8c] sm:$0xf] %vm1190, %v1101
      %1227 = vst.msk [vmem:[%s298 + $0x90] sm:$0xf] %vm1190, %v1102
      %1228 = vst.msk [vmem:[%s298 + $0x94] sm:$0xf] %vm1190, %v1103
      %1229 = vst.msk [vmem:[%s298 + $0x98] sm:$0xf] %vm1190, %v1104
      %1230 = vst.msk [vmem:[%s298 + $0x9c] sm:$0xf] %vm1190, %v1105
      %1231 = vst.msk [vmem:[%s298 + $0xa0] sm:$0xf] %vm1190, %v1106
      %1232 = vst.msk [vmem:[%s298 + $0xa4] sm:$0xf] %vm1190, %v1107
      %1233 = vst.msk [vmem:[%s298 + $0xa8] sm:$0xf] %vm1190, %v1108
      %1234 = vst.msk [vmem:[%s298 + $0xac] sm:$0xf] %vm1190, %v1109
      %1235 = vst.msk [vmem:[%s298 + $0xb0] sm:$0xf] %vm1190, %v1110
      %1236 = vst.msk [vmem:[%s298 + $0xb4] sm:$0xf] %vm1190, %v1111
      %1237 = vst.msk [vmem:[%s298 + $0xb8] sm:$0xf] %vm1190, %v1112
      %1238 = vst.msk [vmem:[%s298 + $0xbc] sm:$0xf] %vm1190, %v1113
      %1239 = vst.msk [vmem:[%s298 + $0xc0] sm:$0xf] %vm1190, %v1114
      %1240 = vst.msk [vmem:[%s298 + $0xc4] sm:$0xf] %vm1190, %v1115
      %1241 = vst.msk [vmem:[%s298 + $0xc8] sm:$0xf] %vm1190, %v1116
      %1242 = vst.msk [vmem:[%s298 + $0xcc] sm:$0xf] %vm1190, %v1117
      %1243 = vst.msk [vmem:[%s298 + $0xd0] sm:$0xf] %vm1190, %v1118
      %1244 = vst.msk [vmem:[%s298 + $0xd4] sm:$0xf] %vm1190, %v1119
      %1245 = vst.msk [vmem:[%s298 + $0xd8] sm:$0xf] %vm1190, %v1120
      %1246 = vst.msk [vmem:[%s298 + $0xdc] sm:$0xf] %vm1190, %v1121
      %1247 = vst.msk [vmem:[%s298 + $0xe0] sm:$0xf] %vm1190, %v1122
      %1248 = vst.msk [vmem:[%s298 + $0xe4] sm:$0xf] %vm1190, %v1123
      %1249 = vst.msk [vmem:[%s298 + $0xe8] sm:$0xf] %vm1190, %v1124
      %1250 = vst.msk [vmem:[%s298 + $0xec] sm:$0xf] %vm1190, %v1125
      %1251 = vst.msk [vmem:[%s298 + $0xf0] sm:$0xf] %vm1190, %v1126
      %1252 = vst.msk [vmem:[%s298 + $0xf4] sm:$0xf] %vm1190, %v1127
      %v1253 = vsel %vm567, %v696, 0.0
      %v1254 = vsel %vm567, %v699, 0.0
      %v1255 = vadd.f32 %v1253, %v1254
      %v1256 = vsel %vm567, %v704, 0.0
      %v1257 = vadd.f32 %v1255, %v1256
      %v1258 = vsel %vm567, %v707, 0.0
      %v1259 = vadd.f32 %v1257, %v1258
      %v1260 = vsel %vm567, %v712, 0.0
      %v1261 = vadd.f32 %v1259, %v1260
      %v1262 = vsel %vm567, %v715, 0.0
      %v1263 = vadd.f32 %v1261, %v1262
      %v1264 = vsel %vm567, %v720, 0.0
      %v1265 = vadd.f32 %v1263, %v1264
      %v1266 = vsel %vm567, %v723, 0.0
      %v1267 = vadd.f32 %v1265, %v1266
      %v1268 = vsel %vm567, %v728, 0.0
      %v1269 = vadd.f32 %v1267, %v1268
      %v1270 = vsel %vm567, %v731, 0.0
      %v1271 = vadd.f32 %v1269, %v1270
      %v1272 = vsel %vm567, %v736, 0.0
      %v1273 = vadd.f32 %v1271, %v1272
      %v1274 = vsel %vm567, %v739, 0.0
      %v1275 = vadd.f32 %v1273, %v1274
      %v1276 = vsel %vm567, %v744, 0.0
      %v1277 = vadd.f32 %v1275, %v1276
      %v1278 = vsel %vm567, %v747, 0.0
      %v1279 = vadd.f32 %v1277, %v1278
      %v1280 = vsel %vm567, %v752, 0.0
      %v1281 = vadd.f32 %v1279, %v1280
      %v1282 = vsel %vm567, %v755, 0.0
      %v1283 = vadd.f32 %v1281, %v1282
      %v1284 = vsel %vm567, %v760, 0.0
      %v1285 = vadd.f32 %v1283, %v1284
      %v1286 = vsel %vm567, %v763, 0.0
      %v1287 = vadd.f32 %v1285, %v1286
      %v1288 = vsel %vm567, %v768, 0.0
      %v1289 = vadd.f32 %v1287, %v1288
      %v1290 = vsel %vm567, %v771, 0.0
      %v1291 = vadd.f32 %v1289, %v1290
      %v1292 = vsel %vm567, %v776, 0.0
      %v1293 = vadd.f32 %v1291, %v1292
      %v1294 = vsel %vm567, %v779, 0.0
      %v1295 = vadd.f32 %v1293, %v1294
      %v1296 = vsel %vm567, %v784, 0.0
      %v1297 = vadd.f32 %v1295, %v1296
      %v1298 = vsel %vm567, %v787, 0.0
      %v1299 = vadd.f32 %v1297, %v1298
      %v1300 = vsel %vm567, %v792, 0.0
      %v1301 = vadd.f32 %v1299, %v1300
      %v1302 = vsel %vm567, %v795, 0.0
      %v1303 = vadd.f32 %v1301, %v1302
      %v1304 = vsel %vm567, %v800, 0.0
      %v1305 = vadd.f32 %v1303, %v1304
      %v1306 = vsel %vm567, %v803, 0.0
      %v1307 = vadd.f32 %v1305, %v1306
      %v1308 = vsel %vm567, %v808, 0.0
      %v1309 = vadd.f32 %v1307, %v1308
      %v1310 = vsel %vm567, %v811, 0.0
      %v1311 = vadd.f32 %v1309, %v1310
      %v1312 = vsel %vm567, %v816, 0.0
      %v1313 = vadd.f32 %v1311, %v1312
      %v1314 = vsel %vm567, %v819, 0.0
      %v1315 = vadd.f32 %v1313, %v1314
      %v1316 = vsel %vm567, %v824, 0.0
      %v1317 = vadd.f32 %v1315, %v1316
      %v1318 = vsel %vm567, %v827, 0.0
      %v1319 = vadd.f32 %v1317, %v1318
      %v1320 = vsel %vm567, %v832, 0.0
      %v1321 = vadd.f32 %v1319, %v1320
      %v1322 = vsel %vm567, %v835, 0.0
      %v1323 = vadd.f32 %v1321, %v1322
      %v1324 = vsel %vm567, %v840, 0.0
      %v1325 = vadd.f32 %v1323, %v1324
      %v1326 = vsel %vm567, %v843, 0.0
      %v1327 = vadd.f32 %v1325, %v1326
      %v1328 = vsel %vm567, %v848, 0.0
      %v1329 = vadd.f32 %v1327, %v1328
      %v1330 = vsel %vm567, %v851, 0.0
      %v1331 = vadd.f32 %v1329, %v1330
      %v1332 = vsel %vm567, %v856, 0.0
      %v1333 = vadd.f32 %v1331, %v1332
      %v1334 = vsel %vm567, %v859, 0.0
      %v1335 = vadd.f32 %v1333, %v1334
      %v1336 = vsel %vm567, %v864, 0.0
      %v1337 = vadd.f32 %v1335, %v1336
      %v1338 = vsel %vm567, %v867, 0.0
      %v1339 = vadd.f32 %v1337, %v1338
      %v1340 = vsel %vm567, %v872, 0.0
      %v1341 = vadd.f32 %v1339, %v1340
      %v1342 = vsel %vm567, %v875, 0.0
      %v1343 = vadd.f32 %v1341, %v1342
      %v1344 = vsel %vm567, %v880, 0.0
      %v1345 = vadd.f32 %v1343, %v1344
      %v1346 = vsel %vm567, %v883, 0.0
      %v1347 = vadd.f32 %v1345, %v1346
      %v1348 = vsel %vm567, %v888, 0.0
      %v1349 = vadd.f32 %v1347, %v1348
      %v1350 = vsel %vm567, %v891, 0.0
      %v1351 = vadd.f32 %v1349, %v1350
      %v1352 = vsel %vm567, %v896, 0.0
      %v1353 = vadd.f32 %v1351, %v1352
      %v1354 = vsel %vm567, %v899, 0.0
      %v1355 = vadd.f32 %v1353, %v1354
      %v1356 = vsel %vm567, %v904, 0.0
      %v1357 = vadd.f32 %v1355, %v1356
      %v1358 = vsel %vm567, %v907, 0.0
      %v1359 = vadd.f32 %v1357, %v1358
      %v1360 = vsel %vm567, %v912, 0.0
      %v1361 = vadd.f32 %v1359, %v1360
      %v1362 = vsel %vm567, %v915, 0.0
      %v1363 = vadd.f32 %v1361, %v1362
      %v1364 = vsel %vm567, %v920, 0.0
      %v1365 = vadd.f32 %v1363, %v1364
      %v1366 = vsel %vm567, %v923, 0.0
      %v1367 = vadd.f32 %v1365, %v1366
      %v1368 = vsel %vm567, %v928, 0.0
      %v1369 = vadd.f32 %v1367, %v1368
      %v1370 = vsel %vm567, %v931, 0.0
      %v1371 = vadd.f32 %v1369, %v1370
      %v1372 = vsel %vm567, %v936, 0.0
      %v1373 = vadd.f32 %v1371, %v1372
      %v1374 = vsel %vm567, %v939, 0.0
      %v1375 = vadd.f32 %v1373, %v1374
      %v1376 = vrot.slane %v1375, 4
      %v1377 = vadd.f32 %v1375, %v1376
      %v1378 = vrot.slane %v1377, 2
      %v1379 = vadd.f32 %v1377, %v1378
      %v1380 = vrot.slane %v1379, 1
      %v1381 = vadd.f32 %v1379, %v1380
      %vm1382 = vcmask 516096
      %1383 = vst.msk [vmem:[%s309] sm:$0x1] %vm1382, %v1381
      %v1384 = vmul.f32 %v696, %v696
      %v1385 = vmul.f32 %v699, %v699
      %v1386 = vmul.f32 %v704, %v704
      %v1387 = vmul.f32 %v707, %v707
      %v1388 = vmul.f32 %v712, %v712
      %v1389 = vmul.f32 %v715, %v715
      %v1390 = vmul.f32 %v720, %v720
      %v1391 = vmul.f32 %v723, %v723
      %v1392 = vmul.f32 %v728, %v728
      %v1393 = vmul.f32 %v731, %v731
      %v1394 = vmul.f32 %v736, %v736
      %v1395 = vmul.f32 %v739, %v739
      %v1396 = vmul.f32 %v744, %v744
      %v1397 = vmul.f32 %v747, %v747
      %v1398 = vmul.f32 %v752, %v752
      %v1399 = vmul.f32 %v755, %v755
      %v1400 = vmul.f32 %v760, %v760
      %v1401 = vmul.f32 %v763, %v763
      %v1402 = vmul.f32 %v768, %v768
      %v1403 = vmul.f32 %v771, %v771
      %v1404 = vmul.f32 %v776, %v776
      %v1405 = vmul.f32 %v779, %v779
      %v1406 = vmul.f32 %v784, %v784
      %v1407 = vmul.f32 %v787, %v787
      %v1408 = vmul.f32 %v792, %v792
      %v1409 = vmul.f32 %v795, %v795
      %v1410 = vmul.f32 %v800, %v800
      %v1411 = vmul.f32 %v803, %v803
      %v1412 = vmul.f32 %v808, %v808
      %v1413 = vmul.f32 %v811, %v811
      %v1414 = vmul.f32 %v816, %v816
      %v1415 = vmul.f32 %v819, %v819
      %v1416 = vmul.f32 %v824, %v824
      %v1417 = vmul.f32 %v827, %v827
      %v1418 = vmul.f32 %v832, %v832
      %v1419 = vmul.f32 %v835, %v835
      %v1420 = vmul.f32 %v840, %v840
      %v1421 = vmul.f32 %v843, %v843
      %v1422 = vmul.f32 %v848, %v848
      %v1423 = vmul.f32 %v851, %v851
      %v1424 = vmul.f32 %v856, %v856
      %v1425 = vmul.f32 %v859, %v859
      %v1426 = vmul.f32 %v864, %v864
      %v1427 = vmul.f32 %v867, %v867
      %v1428 = vmul.f32 %v872, %v872
      %v1429 = vmul.f32 %v875, %v875
      %v1430 = vmul.f32 %v880, %v880
      %v1431 = vmul.f32 %v883, %v883
      %v1432 = vmul.f32 %v888, %v888
      %v1433 = vmul.f32 %v891, %v891
      %v1434 = vmul.f32 %v896, %v896
      %v1435 = vmul.f32 %v899, %v899
      %v1436 = vmul.f32 %v904, %v904
      %v1437 = vmul.f32 %v907, %v907
      %v1438 = vmul.f32 %v912, %v912
      %v1439 = vmul.f32 %v915, %v915
      %v1440 = vmul.f32 %v920, %v920
      %v1441 = vmul.f32 %v923, %v923
      %v1442 = vmul.f32 %v928, %v928
      %v1443 = vmul.f32 %v931, %v931
      %v1444 = vmul.f32 %v936, %v936
      %v1445 = vmul.f32 %v939, %v939
      %v1446 = vsel %vm567, %v1384, 0.0
      %v1447 = vsel %vm567, %v1385, 0.0
      %v1448 = vadd.f32 %v1446, %v1447
      %v1449 = vsel %vm567, %v1386, 0.0
      %v1450 = vadd.f32 %v1448, %v1449
      %v1451 = vsel %vm567, %v1387, 0.0
      %v1452 = vadd.f32 %v1450, %v1451
      %v1453 = vsel %vm567, %v1388, 0.0
      %v1454 = vadd.f32 %v1452, %v1453
      %v1455 = vsel %vm567, %v1389, 0.0
      %v1456 = vadd.f32 %v1454, %v1455
      %v1457 = vsel %vm567, %v1390, 0.0
      %v1458 = vadd.f32 %v1456, %v1457
      %v1459 = vsel %vm567, %v1391, 0.0
      %v1460 = vadd.f32 %v1458, %v1459
      %v1461 = vsel %vm567, %v1392, 0.0
      %v1462 = vadd.f32 %v1460, %v1461
      %v1463 = vsel %vm567, %v1393, 0.0
      %v1464 = vadd.f32 %v1462, %v1463
      %v1465 = vsel %vm567, %v1394, 0.0
      %v1466 = vadd.f32 %v1464, %v1465
      %v1467 = vsel %vm567, %v1395, 0.0
      %v1468 = vadd.f32 %v1466, %v1467
      %v1469 = vsel %vm567, %v1396, 0.0
      %v1470 = vadd.f32 %v1468, %v1469
      %v1471 = vsel %vm567, %v1397, 0.0
      %v1472 = vadd.f32 %v1470, %v1471
      %v1473 = vsel %vm567, %v1398, 0.0
      %v1474 = vadd.f32 %v1472, %v1473
      %v1475 = vsel %vm567, %v1399, 0.0
      %v1476 = vadd.f32 %v1474, %v1475
      %v1477 = vsel %vm567, %v1400, 0.0
      %v1478 = vadd.f32 %v1476, %v1477
      %v1479 = vsel %vm567, %v1401, 0.0
      %v1480 = vadd.f32 %v1478, %v1479
      %v1481 = vsel %vm567, %v1402, 0.0
      %v1482 = vadd.f32 %v1480, %v1481
      %v1483 = vsel %vm567, %v1403, 0.0
      %v1484 = vadd.f32 %v1482, %v1483
      %v1485 = vsel %vm567, %v1404, 0.0
      %v1486 = vadd.f32 %v1484, %v1485
      %v1487 = vsel %vm567, %v1405, 0.0
      %v1488 = vadd.f32 %v1486, %v1487
      %v1489 = vsel %vm567, %v1406, 0.0
      %v1490 = vadd.f32 %v1488, %v1489
      %v1491 = vsel %vm567, %v1407, 0.0
      %v1492 = vadd.f32 %v1490, %v1491
      %v1493 = vsel %vm567, %v1408, 0.0
      %v1494 = vadd.f32 %v1492, %v1493
      %v1495 = vsel %vm567, %v1409, 0.0
      %v1496 = vadd.f32 %v1494, %v1495
      %v1497 = vsel %vm567, %v1410, 0.0
      %v1498 = vadd.f32 %v1496, %v1497
      %v1499 = vsel %vm567, %v1411, 0.0
      %v1500 = vadd.f32 %v1498, %v1499
      %v1501 = vsel %vm567, %v1412, 0.0
      %v1502 = vadd.f32 %v1500, %v1501
      %v1503 = vsel %vm567, %v1413, 0.0
      %v1504 = vadd.f32 %v1502, %v1503
      %v1505 = vsel %vm567, %v1414, 0.0
      %v1506 = vadd.f32 %v1504, %v1505
      %v1507 = vsel %vm567, %v1415, 0.0
      %v1508 = vadd.f32 %v1506, %v1507
      %v1509 = vsel %vm567, %v1416, 0.0
      %v1510 = vadd.f32 %v1508, %v1509
      %v1511 = vsel %vm567, %v1417, 0.0
      %v1512 = vadd.f32 %v1510, %v1511
      %v1513 = vsel %vm567, %v1418, 0.0
      %v1514 = vadd.f32 %v1512, %v1513
      %v1515 = vsel %vm567, %v1419, 0.0
      %v1516 = vadd.f32 %v1514, %v1515
      %v1517 = vsel %vm567, %v1420, 0.0
      %v1518 = vadd.f32 %v1516, %v1517
      %v1519 = vsel %vm567, %v1421, 0.0
      %v1520 = vadd.f32 %v1518, %v1519
      %v1521 = vsel %vm567, %v1422, 0.0
      %v1522 = vadd.f32 %v1520, %v1521
      %v1523 = vsel %vm567, %v1423, 0.0
      %v1524 = vadd.f32 %v1522, %v1523
      %v1525 = vsel %vm567, %v1424, 0.0
      %v1526 = vadd.f32 %v1524, %v1525
      %v1527 = vsel %vm567, %v1425, 0.0
      %v1528 = vadd.f32 %v1526, %v1527
      %v1529 = vsel %vm567, %v1426, 0.0
      %v1530 = vadd.f32 %v1528, %v1529
      %v1531 = vsel %vm567, %v1427, 0.0
      %v1532 = vadd.f32 %v1530, %v1531
      %v1533 = vsel %vm567, %v1428, 0.0
      %v1534 = vadd.f32 %v1532, %v1533
      %v1535 = vsel %vm567, %v1429, 0.0
      %v1536 = vadd.f32 %v1534, %v1535
      %v1537 = vsel %vm567, %v1430, 0.0
      %v1538 = vadd.f32 %v1536, %v1537
      %v1539 = vsel %vm567, %v1431, 0.0
      %v1540 = vadd.f32 %v1538, %v1539
      %v1541 = vsel %vm567, %v1432, 0.0
      %v1542 = vadd.f32 %v1540, %v1541
      %v1543 = vsel %vm567, %v1433, 0.0
      %v1544 = vadd.f32 %v1542, %v1543
      %v1545 = vsel %vm567, %v1434, 0.0
      %v1546 = vadd.f32 %v1544, %v1545
      %v1547 = vsel %vm567, %v1435, 0.0
      %v1548 = vadd.f32 %v1546, %v1547
      %v1549 = vsel %vm567, %v1436, 0.0
      %v1550 = vadd.f32 %v1548, %v1549
      %v1551 = vsel %vm567, %v1437, 0.0
      %v1552 = vadd.f32 %v1550, %v1551
      %v1553 = vsel %vm567, %v1438, 0.0
      %v1554 = vadd.f32 %v1552, %v1553
      %v1555 = vsel %vm567, %v1439, 0.0
      %v1556 = vadd.f32 %v1554, %v1555
      %v1557 = vsel %vm567, %v1440, 0.0
      %v1558 = vadd.f32 %v1556, %v1557
      %v1559 = vsel %vm567, %v1441, 0.0
      %v1560 = vadd.f32 %v1558, %v1559
      %v1561 = vsel %vm567, %v1442, 0.0
      %v1562 = vadd.f32 %v1560, %v1561
      %v1563 = vsel %vm567, %v1443, 0.0
      %v1564 = vadd.f32 %v1562, %v1563
      %v1565 = vsel %vm567, %v1444, 0.0
      %v1566 = vadd.f32 %v1564, %v1565
      %v1567 = vsel %vm567, %v1445, 0.0
      %v1568 = vadd.f32 %v1566, %v1567
      %v1569 = vrot.slane %v1568, 4
      %v1570 = vadd.f32 %v1568, %v1569
      %v1571 = vrot.slane %v1570, 2
      %v1572 = vadd.f32 %v1570, %v1571
      %v1573 = vrot.slane %v1572, 1
      %v1574 = vadd.f32 %v1572, %v1573
      %1575 = vst.msk [vmem:[%s309 + $0x1] sm:$0x1] %vm1382, %v1574
      %s1576 = smul.u32 62, %s22
      %p1577 = scmp.lt.s32.totalorder %s21, 1
      %s1578 = scalar_select %p1577, %s21, 1
      %p1579 = scmp.lt.s32.totalorder %s1576, 61
      %s1580 = scalar_select %p1579, %s1576, 61
      %p1581 = scmp.lt.s32.totalorder %s23, 0
      %s1582 = scalar_select %p1581, %s23, 0
      %s1583 = sadd.s32 %s1582, %s1580
      %s1584 = smul.addr %s1578, 62
      %s1585 = sadd.s32 %s1583, %s1584
      %s1586 = smul.addr %s1585, 4
      %s1587 = scalar_lea.vmem %s3, %s1586
      %p1588 = scmp.lt.s32.totalorder %s21, 1
      %s1589 = scalar_select %p1588, %s21, 1
      %p1590 = scmp.lt.s32.totalorder %s22, 0
      %s1591 = scalar_select %p1590, %s22, 0
      %p1592 = scmp.lt.s32.totalorder %s23, 0
      %s1593 = scalar_select %p1592, %s23, 0
      %s1594 = sadd.s32 %s1593, %s1591
      %s1595 = sadd.s32 %s1594, %s1589
      %s1596 = smul.addr %s1595, 2
      %s1597 = scalar_lea.vmem %s4, %s1596
      // Predicated region
      $region33: #{decoder_forward.7} parent=31 // pred_check
        %p1598 = pneg %p137
      $region34: #{decoder_forward.7} parent=31 // pred_check_branch
        %1600 = sbr.rel (%p1598) target = $region36
      $region35: #{decoder_forward.7} parent=31 // pred_region
        %s1601 = smul.u32 62, %s22
      $region36: #{decoder_forward.7} parent=31 // pred_fallthru
        _
      // Predicated region
      $region37: #{decoder_forward.7} parent=31 // pred_check
        %p1602 = pneg %p167
      $region38: #{decoder_forward.7} parent=31 // pred_check_branch
        %1604 = sbr.rel (%p1602) target = $region40
      $region39: #{decoder_forward.7} parent=31 // pred_region
        _
      $region40: #{decoder_forward.7} parent=31 // pred_fallthru
        _
    $region32: #{decoder_forward.7} parent=5 // pred_fallthru
      _
    %p1605 = scmp.le.s32.totalorder 2, %s11
    // Predicated region
    $region41: #{decoder_forward.7} parent=5 // pred_check
      %p1606 = pneg %p1605
    $region42: #{decoder_forward.7} parent=5 // pred_check_branch
      %1608 = sbr.rel (%p1606) target = $region44
    $region43: #{decoder_forward.7} parent=5 // pred_region
      %s1609 = ssub.s32 %s11, 2
      // Predicated region
      $region45: #{decoder_forward.7} parent=43 // pred_check
        %p1610 = pneg %p143
      $region46: #{decoder_forward.7} parent=43 // pred_check_branch
        %1612 = sbr.rel (%p1610) target = $region48
      $region47: #{decoder_forward.7} parent=43 // pred_region
        %s1613 = smul.u32 62, %s25
        %p1614 = scmp.lt.s32.totalorder %s24, 1
        %s1615 = scalar_select %p1614, %s24, 1
        %p1616 = scmp.lt.s32.totalorder %s1613, 61
        %s1617 = scalar_select %p1616, %s1613, 61
        %p1618 = scmp.lt.s32.totalorder %s26, 0
        %s1619 = scalar_select %p1618, %s26, 0
        %s1620 = sadd.s32 %s1619, %s1617
        %s1621 = smul.addr %s1615, 62
        %s1622 = sadd.s32 %s1620, %s1621
        %s1623 = smul.addr %s1622, 4
        %s1624 = scalar_lea.vmem %s3, %s1623
      $region48: #{decoder_forward.7} parent=43 // pred_fallthru
        _
      // Predicated region
      $region49: #{decoder_forward.7} parent=43 // pred_check
        %p1625 = pneg %p173
      $region50: #{decoder_forward.7} parent=43 // pred_check_branch
        %1627 = sbr.rel (%p1625) target = $region52
      $region51: #{decoder_forward.7} parent=43 // pred_region
        %p1628 = scmp.lt.s32.totalorder %s24, 1
        %s1629 = scalar_select %p1628, %s24, 1
        %p1630 = scmp.lt.s32.totalorder %s25, 0
        %s1631 = scalar_select %p1630, %s25, 0
        %p1632 = scmp.lt.s32.totalorder %s26, 0
        %s1633 = scalar_select %p1632, %s26, 0
        %s1634 = sadd.s32 %s1633, %s1631
        %s1635 = sadd.s32 %s1634, %s1629
        %s1636 = smul.addr %s1635, 2
        %s1637 = scalar_lea.vmem %s4, %s1636
      $region52: #{decoder_forward.7} parent=43 // pred_fallthru
        _
    $region44: #{decoder_forward.7} parent=5 // pred_fallthru
      _
  $region6: #{decoder_forward.7} parent=0 // loop_footer
    %s15 = sadd.s32 1, %s11
  $region7: #{decoder_forward.7} parent=0 // loop_footer_branch
    %10 = sbr.rel target = $region3
  $region8: #{decoder_forward.7} parent=0 // loop_exit
    _

// kernel: decoder_forward.8
$region0: #{decoder_forward.8}
  #allocation0 [shape = 'u32[]', space=smem, size = 0x4, offset = 0x4, fixed_abs, tag = 'smem constant byte address 0x4 - core index']
  #allocation1 [shape = 'u32[144,128]{1,0:T(1,128)}', space=vmem, size = 0x12000, scoped, tag = 'internal scratch']
  %s0 = inlined_call_operand.vmem [shape: bf16[2,4096,64], index: 0, kind: input, shape index: {}]
  %s1 = inlined_call_operand.vmem [shape: bf16[64,32], index: 1, kind: input, shape index: {}]
  %s2 = inlined_call_operand.vmem [shape: f32[1,32], index: 2, kind: input, shape index: {}]
  %s3 = inlined_call_operand.vmem [shape: bf16[2,4096,32], index: 3, kind: output, shape index: {0}]
  %s4 = inlined_call_operand.vmem [shape: f32[2,8,2,32], index: 4, kind: output, shape index: {1}]
  %5 = xla_tuple %s3, %s4
  %s6 = sld [smem:[#allocation0]]
  $region53: #{decoder_forward.8} parent=0
    _
  %s8 = ssub.s32 1, %s6
  %s9 = scalar_select 0, %s8, %s6
  loop: start=0, step=1, limit=18
  $region2: #{decoder_forward.8} parent=0 // loop_pre_header
    _
  $region3: #{decoder_forward.8} parent=0 // loop_header
    %s11 = sphi 0, %s15
    %p12 = scmp.ge.s32.totalorder %s11, 18
    %s18 = sphi 0, %s37
    %s19 = sphi 0, %s33
    %s20 = sphi 0, %s29
    %s21 = sphi 0, %s18
    %s22 = sphi 0, %s19
    %s23 = sphi 0, %s20
    %s24 = sphi 0, %s21
    %s25 = sphi 0, %s22
    %s26 = sphi 0, %s23
    %s42 = sphi 0, %s44
    %s45 = sphi 0, %s42
    %s46 = sphi 0, %s45
    %s62 = sphi 0, %s46
    %s68 = sphi 0, %s70
    %s71 = sphi 0, %s68
    %s72 = sphi 0, %s71
    %s88 = sphi 0, %s72
    %s94 = sphi 0, %s96
    %s97 = sphi 0, %s94
    %s98 = sphi 0, %s97
    %s114 = sphi 0, %s98
    %s124 = sphi 0, %s126
    %s127 = sphi 0, %s124
    %s128 = sphi 0, %s127
    %s144 = sphi 0, %s128
    %s154 = sphi 0, %s156
    %s157 = sphi 0, %s154
    %s158 = sphi 0, %s157
    %s174 = sphi 0, %s158
  $region4: #{decoder_forward.8} parent=0 // loop_header_branch
    %14 = sbr.rel (%p12) target = $region8
  $region5: #{decoder_forward.8} parent=0 // loop_body
    %s16 = ssub.s32 %s11, 1
    %s17 = ssub.s32 %s11, 2
    %s27 = sadd.s32 1, %s20
    %p28 = scmp.ge.s32.totalorder %s27, 1
    %s29 = scalar_select %p28, 0, %s27
    %s30 = sadd.s32 1, %s19
    %s31 = scalar_select %p28, %s30, %s19
    %p32 = scmp.ge.s32.totalorder %s31, 8
    %s33 = scalar_select %p32, 0, %s31
    %s34 = sadd.s32 1, %s18
    %s35 = scalar_select %p32, %s34, %s18
    %p36 = scmp.ge.s32.totalorder %s35, 2
    %s37 = scalar_select %p36, 0, %s35
    %s38 = ssub.s32 %s18, %s37
    %s39 = ssub.s32 %s19, %s33
    %s40 = sor.u32 %s38, %s39
    %p41 = scmp.eq.s32.totalorder %s40, 0
    %s43 = sadd.s32 %s42, 1
    %s44 = scalar_select %p41, %s42, %s43
    %p47 = pneg %p41
    %p48 = scmp.eq.s32.totalorder %s11, 15
    %p49 = por %p47, %p48
    %p50 = scmp.ne.s32.totalorder %s42, %s45
    %p51 = scmp.eq.s32.totalorder %s11, 0
    %p52 = por %p50, %p51
    %p53 = scmp.ne.s32.totalorder %s42, %s45
    %p54 = scmp.eq.s32.totalorder %s16, 15
    %p55 = por %p53, %p54
    %p56 = scmp.ne.s32.totalorder %s45, %s46
    %p57 = scmp.eq.s32.totalorder %s16, 0
    %p58 = por %p56, %p57
    %p59 = scmp.ne.s32.totalorder %s45, %s46
    %p60 = scmp.eq.s32.totalorder %s17, 15
    %p61 = por %p59, %p60
    %p63 = scmp.ne.s32.totalorder %s46, %s62
    %p64 = scmp.eq.s32.totalorder %s17, 0
    %p65 = por %p63, %p64
    %s66 = ssub.s32 %s20, %s29
    %p67 = scmp.eq.s32.totalorder %s66, 0
    %s69 = sadd.s32 %s68, 1
    %s70 = scalar_select %p67, %s68, %s69
    %p73 = pneg %p67
    %p74 = scmp.eq.s32.totalorder %s11, 15
    %p75 = por %p73, %p74
    %p76 = scmp.ne.s32.totalorder %s68, %s71
    %p77 = scmp.eq.s32.totalorder %s11, 0
    %p78 = por %p76, %p77
    %p79 = scmp.ne.s32.totalorder %s68, %s71
    %p80 = scmp.eq.s32.totalorder %s16, 15
    %p81 = por %p79, %p80
    %p82 = scmp.ne.s32.totalorder %s71, %s72
    %p83 = scmp.eq.s32.totalorder %s16, 0
    %p84 = por %p82, %p83
    %p85 = scmp.ne.s32.totalorder %s71, %s72
    %p86 = scmp.eq.s32.totalorder %s17, 15
    %p87 = por %p85, %p86
    %p89 = scmp.ne.s32.totalorder %s72, %s88
    %p90 = scmp.eq.s32.totalorder %s17, 0
    %p91 = por %p89, %p90
    %s92 = ssub.s32 %s20, %s29
    %p93 = scmp.eq.s32.totalorder %s92, 0
    %s95 = sadd.s32 %s94, 1
    %s96 = scalar_select %p93, %s94, %s95
    %p99 = pneg %p93
    %p100 = scmp.eq.s32.totalorder %s11, 15
    %p101 = por %p99, %p100
    %p102 = scmp.ne.s32.totalorder %s94, %s97
    %p103 = scmp.eq.s32.totalorder %s11, 0
    %p104 = por %p102, %p103
    %p105 = scmp.ne.s32.totalorder %s94, %s97
    %p106 = scmp.eq.s32.totalorder %s16, 15
    %p107 = por %p105, %p106
    %p108 = scmp.ne.s32.totalorder %s97, %s98
    %p109 = scmp.eq.s32.totalorder %s16, 0
    %p110 = por %p108, %p109
    %p111 = scmp.ne.s32.totalorder %s97, %s98
    %p112 = scmp.eq.s32.totalorder %s17, 15
    %p113 = por %p111, %p112
    %p115 = scmp.ne.s32.totalorder %s98, %s114
    %p116 = scmp.eq.s32.totalorder %s17, 0
    %p117 = por %p115, %p116
    %s118 = ssub.s32 %s18, %s37
    %s119 = ssub.s32 %s19, %s33
    %s120 = sor.u32 %s118, %s119
    %s121 = ssub.s32 %s20, %s29
    %s122 = sor.u32 %s120, %s121
    %p123 = scmp.eq.s32.totalorder %s122, 0
    %s125 = sadd.s32 %s124, 1
    %s126 = scalar_select %p123, %s124, %s125
    %p129 = pneg %p123
    %p130 = scmp.eq.s32.totalorder %s11, 15
    %p131 = por %p129, %p130
    %p132 = scmp.ne.s32.totalorder %s124, %s127
    %p133 = scmp.eq.s32.totalorder %s11, 0
    %p134 = por %p132, %p133
    %p135 = scmp.ne.s32.totalorder %s124, %s127
    %p136 = scmp.eq.s32.totalorder %s16, 15
    %p137 = por %p135, %p136
    %p138 = scmp.ne.s32.totalorder %s127, %s128
    %p139 = scmp.eq.s32.totalorder %s16, 0
    %p140 = por %p138, %p139
    %p141 = scmp.ne.s32.totalorder %s127, %s128
    %p142 = scmp.eq.s32.totalorder %s17, 15
    %p143 = por %p141, %p142
    %p145 = scmp.ne.s32.totalorder %s128, %s144
    %p146 = scmp.eq.s32.totalorder %s17, 0
    %p147 = por %p145, %p146
    %s148 = ssub.s32 %s18, %s37
    %s149 = ssub.s32 %s19, %s33
    %s150 = sor.u32 %s148, %s149
    %s151 = ssub.s32 %s20, %s29
    %s152 = sor.u32 %s150, %s151
    %p153 = scmp.eq.s32.totalorder %s152, 0
    %s155 = sadd.s32 %s154, 1
    %s156 = scalar_select %p153, %s154, %s155
    %p159 = pneg %p153
    %p160 = scmp.eq.s32.totalorder %s11, 15
    %p161 = por %p159, %p160
    %p162 = scmp.ne.s32.totalorder %s154, %s157
    %p163 = scmp.eq.s32.totalorder %s11, 0
    %p164 = por %p162, %p163
    %p165 = scmp.ne.s32.totalorder %s154, %s157
    %p166 = scmp.eq.s32.totalorder %s16, 15
    %p167 = por %p165, %p166
    %p168 = scmp.ne.s32.totalorder %s157, %s158
    %p169 = scmp.eq.s32.totalorder %s16, 0
    %p170 = por %p168, %p169
    %p171 = scmp.ne.s32.totalorder %s157, %s158
    %p172 = scmp.eq.s32.totalorder %s17, 15
    %p173 = por %p171, %p172
    %p175 = scmp.ne.s32.totalorder %s158, %s174
    %p176 = scmp.eq.s32.totalorder %s17, 0
    %p177 = por %p175, %p176
    %p178 = scmp.le.s32.totalorder 1, %s11
    %p179 = scmp.lt.s32.totalorder %s11, 17
    %p180 = pnand %p178, %p179
    %p181 = pneg %p180
    // Predicated region
    $region9: #{decoder_forward.8} parent=5 // pred_check
      _
    $region10: #{decoder_forward.8} parent=5 // pred_check_branch
      %183 = sbr.rel (%p180) target = $region12
    $region11: #{decoder_forward.8} parent=5 // pred_region
      %s184 = ssub.s32 %s11, 1
      // Predicated region
      $region13: #{decoder_forward.8} parent=11 // pred_check
        %p185 = pneg %p84
      $region14: #{decoder_forward.8} parent=11 // pred_check_branch
        %187 = sbr.rel (%p185) target = $region16
      $region15: #{decoder_forward.8} parent=11 // pred_region
        %p188 = scmp.lt.s32.totalorder %s23, 0
        %s189 = scalar_select %p188, %s23, 0
        %s190 = smul.addr %s189, 4
        %s191 = scalar_lea.vmem %s1, %s190
      $region16: #{decoder_forward.8} parent=11 // pred_fallthru
        _
      // Predicated region
      $region17: #{decoder_forward.8} parent=11 // pred_check
        %p192 = pneg %p110
      $region18: #{decoder_forward.8} parent=11 // pred_check_branch
        %194 = sbr.rel (%p192) target = $region20
      $region19: #{decoder_forward.8} parent=11 // pred_region
        %p195 = scmp.lt.s32.totalorder %s23, 0
        %s196 = scalar_select %p195, %s23, 0
        %s197 = scalar_lea.vmem %s2, %s196
      $region20: #{decoder_forward.8} parent=11 // pred_fallthru
        _
    $region12: #{decoder_forward.8} parent=5 // pred_fallthru
      _
    %p198 = scmp.lt.s32.totalorder %s11, 16
    // Predicated region
    $region21: #{decoder_forward.8} parent=5 // pred_check
      %p199 = pneg %p198
    $region22: #{decoder_forward.8} parent=5 // pred_check_branch
      %201 = sbr.rel (%p199) target = $region24
    $region23: #{decoder_forward.8} parent=5 // pred_region
      // Predicated region
      $region25: #{decoder_forward.8} parent=23 // pred_check
        %p202 = pneg %p52
      $region26: #{decoder_forward.8} parent=23 // pred_check_branch
        %204 = sbr.rel (%p202) target = $region28
      $region27: #{decoder_forward.8} parent=23 // pred_region
        %s205 = smul.u32 64, %s19
        %p206 = scmp.lt.s32.totalorder %s18, 1
        %s207 = scalar_select %p206, %s18, 1
        %p208 = scmp.lt.s32.totalorder %s205, 511
        %s209 = scalar_select %p208, %s205, 511
        %s210 = smul.addr %s207, 512
        %s211 = sadd.s32 %s209, %s210
        %s212 = smul.addr %s211, 4
        %s213 = scalar_lea.vmem %s0, %s212
        %s214 = smul.u32 64, %s19
      $region28: #{decoder_forward.8} parent=23 // pred_fallthru
        _
    $region24: #{decoder_forward.8} parent=5 // pred_fallthru
      _
    %p215 = scmp.le.s32.totalorder 1, %s11
    %p216 = scmp.lt.s32.totalorder %s11, 17
    %p217 = pnand %p215, %p216
    %p218 = pneg %p217
    // Predicated region
    $region29: #{decoder_forward.8} parent=5 // pred_check
      _
    $region30: #{decoder_forward.8} parent=5 // pred_check_branch
      %220 = sbr.rel (%p217) target = $region32
    $region31: #{decoder_forward.8} parent=5 // pred_region
      %s221 = ssub.s32 %s11, 1
      %s222 = smul.u32 64, %s22
      %p223 = scmp.lt.s32.totalorder %s21, 1
      %s224 = scalar_select %p223, %s21, 1
      %p225 = scmp.lt.s32.totalorder %s222, 511
      %s226 = scalar_select %p225, %s222, 511
      %s227 = smul.addr %s224, 512
      %s228 = sadd.s32 %s226, %s227
      %s229 = smul.addr %s228, 4
      %s230 = scalar_lea.vmem %s0, %s229
      %p231 = pneg %p58
      %p232 = pneg %p55
      %p233 = scmp.lt.s32.totalorder %s23, 0
      %s234 = scalar_select %p233, %s23, 0
      %s235 = smul.addr %s234, 4
      %s236 = scalar_lea.vmem %s1, %s235
      %p237 = pneg %p84
      %p238 = pneg %p81
      %p239 = scmp.lt.s32.totalorder %s23, 0
      %s240 = scalar_select %p239, %s23, 0
      %s241 = scalar_lea.vmem %s2, %s240
      %p242 = pneg %p110
      %p243 = pneg %p107
      %p244 = pneg %p140
      %p245 = pneg %p137
      %s246 = smul.u32 64, %s22
      %p247 = scmp.lt.s32.totalorder %s21, 1
      %s248 = scalar_select %p247, %s21, 1
      %p249 = scmp.lt.s32.totalorder %s246, 511
      %s250 = scalar_select %p249, %s246, 511
      %p251 = scmp.lt.s32.totalorder %s23, 0
      %s252 = scalar_select %p251, %s23, 0
      %s253 = sadd.s32 %s252, %s250
      %s254 = smul.addr %s248, 512
      %s255 = sadd.s32 %s253, %s254
      %s256 = smul.addr %s255, 4
      %s257 = scalar_lea.vmem %s3, %s256
      %p258 = pneg %p170
      %p259 = pneg %p167
      %p260 = scmp.lt.s32.totalorder %s21, 1
      %s261 = scalar_select %p260, %s21, 1
      %p262 = scmp.lt.s32.totalorder %s22, 7
      %s263 = scalar_select %p262, %s22, 7
      %p264 = scmp.lt.s32.totalorder %s23, 0
      %s265 = scalar_select %p264, %s23, 0
      %s266 = sadd.s32 %s265, %s263
      %s267 = smul.addr %s261, 8
      %s268 = sadd.s32 %s266, %s267
      %s269 = smul.addr %s268, 2
      %s270 = scalar_lea.vmem %s4, %s269
      %s271 = smul.u32 64, %s22
      %p272 = scmp.lt.s32.totalorder %s21, 1
      %s273 = scalar_select %p272, %s21, 1
      %p274 = scmp.lt.s32.totalorder %s271, 511
      %s275 = scalar_select %p274, %s271, 511
      %s276 = smul.addr %s273, 512
      %s277 = sadd.s32 %s275, %s276
      %s278 = smul.addr %s277, 4
      %s279 = scalar_lea.vmem %s0, %s278
      %s280 = smul.u32 64, %s22
      %p281 = scmp.lt.s32.totalorder %s23, 0
      %s282 = scalar_select %p281, %s23, 0
      %s283 = smul.addr %s282, 4
      %s284 = scalar_lea.vmem %s1, %s283
      %p285 = scmp.lt.s32.totalorder %s23, 0
      %s286 = scalar_select %p285, %s23, 0
      %s287 = scalar_lea.vmem %s2, %s286
      %s288 = smul.u32 64, %s22
      %p289 = scmp.lt.s32.totalorder %s21, 1
      %s290 = scalar_select %p289, %s21, 1
      %p291 = scmp.lt.s32.totalorder %s288, 511
      %s292 = scalar_select %p291, %s288, 511
      %p293 = scmp.lt.s32.totalorder %s23, 0
      %s294 = scalar_select %p293, %s23, 0
      %s295 = sadd.s32 %s294, %s292
      %s296 = smul.addr %s290, 512
      %s297 = sadd.s32 %s295, %s296
      %s298 = smul.addr %s297, 4
      %s299 = scalar_lea.vmem %s3, %s298
      %s300 = smul.u32 64, %s22
      %p301 = scmp.lt.s32.totalorder %s21, 1
      %s302 = scalar_select %p301, %s21, 1
      %p303 = scmp.lt.s32.totalorder %s22, 7
      %s304 = scalar_select %p303, %s22, 7
      %p305 = scmp.lt.s32.totalorder %s23, 0
      %s306 = scalar_select %p305, %s23, 0
      %s307 = sadd.s32 %s306, %s304
      %s308 = smul.addr %s302, 8
      %s309 = sadd.s32 %s307, %s308
      %s310 = smul.addr %s309, 2
      %s311 = scalar_lea.vmem %s4, %s310
      %v313 = vld [vmem:[%s279] sm:$0xf]
      %v314 = vld [vmem:[%s279 + $0x4] sm:$0xf]
      %v315 = vld [vmem:[%s279 + $0x8] sm:$0xf]
      %v316 = vld [vmem:[%s279 + $0xc] sm:$0xf]
      %v317 = vld [vmem:[%s279 + $0x10] sm:$0xf]
      %v318 = vld [vmem:[%s279 + $0x14] sm:$0xf]
      %v319 = vld [vmem:[%s279 + $0x18] sm:$0xf]
      %v320 = vld [vmem:[%s279 + $0x1c] sm:$0xf]
      %v321 = vld [vmem:[%s279 + $0x20] sm:$0xf]
      %v322 = vld [vmem:[%s279 + $0x24] sm:$0xf]
      %v323 = vld [vmem:[%s279 + $0x28] sm:$0xf]
      %v324 = vld [vmem:[%s279 + $0x2c] sm:$0xf]
      %v325 = vld [vmem:[%s279 + $0x30] sm:$0xf]
      %v326 = vld [vmem:[%s279 + $0x34] sm:$0xf]
      %v327 = vld [vmem:[%s279 + $0x38] sm:$0xf]
      %v328 = vld [vmem:[%s279 + $0x3c] sm:$0xf]
      %v329 = vld [vmem:[%s279 + $0x40] sm:$0xf]
      %v330 = vld [vmem:[%s279 + $0x44] sm:$0xf]
      %v331 = vld [vmem:[%s279 + $0x48] sm:$0xf]
      %v332 = vld [vmem:[%s279 + $0x4c] sm:$0xf]
      %v333 = vld [vmem:[%s279 + $0x50] sm:$0xf]
      %v334 = vld [vmem:[%s279 + $0x54] sm:$0xf]
      %v335 = vld [vmem:[%s279 + $0x58] sm:$0xf]
      %v336 = vld [vmem:[%s279 + $0x5c] sm:$0xf]
      %v337 = vld [vmem:[%s279 + $0x60] sm:$0xf]
      %v338 = vld [vmem:[%s279 + $0x64] sm:$0xf]
      %v339 = vld [vmem:[%s279 + $0x68] sm:$0xf]
      %v340 = vld [vmem:[%s279 + $0x6c] sm:$0xf]
      %v341 = vld [vmem:[%s279 + $0x70] sm:$0xf]
      %v342 = vld [vmem:[%s279 + $0x74] sm:$0xf]
      %v343 = vld [vmem:[%s279 + $0x78] sm:$0xf]
      %v344 = vld [vmem:[%s279 + $0x7c] sm:$0xf]
      %v345 = vld [vmem:[%s279 + $0x80] sm:$0xf]
      %v346 = vld [vmem:[%s279 + $0x84] sm:$0xf]
      %v347 = vld [vmem:[%s279 + $0x88] sm:$0xf]
      %v348 = vld [vmem:[%s279 + $0x8c] sm:$0xf]
      %v349 = vld [vmem:[%s279 + $0x90] sm:$0xf]
      %v350 = vld [vmem:[%s279 + $0x94] sm:$0xf]
      %v351 = vld [vmem:[%s279 + $0x98] sm:$0xf]
      %v352 = vld [vmem:[%s279 + $0x9c] sm:$0xf]
      %v353 = vld [vmem:[%s279 + $0xa0] sm:$0xf]
      %v354 = vld [vmem:[%s279 + $0xa4] sm:$0xf]
      %v355 = vld [vmem:[%s279 + $0xa8] sm:$0xf]
      %v356 = vld [vmem:[%s279 + $0xac] sm:$0xf]
      %v357 = vld [vmem:[%s279 + $0xb0] sm:$0xf]
      %v358 = vld [vmem:[%s279 + $0xb4] sm:$0xf]
      %v359 = vld [vmem:[%s279 + $0xb8] sm:$0xf]
      %v360 = vld [vmem:[%s279 + $0xbc] sm:$0xf]
      %v361 = vld [vmem:[%s279 + $0xc0] sm:$0xf]
      %v362 = vld [vmem:[%s279 + $0xc4] sm:$0xf]
      %v363 = vld [vmem:[%s279 + $0xc8] sm:$0xf]
      %v364 = vld [vmem:[%s279 + $0xcc] sm:$0xf]
      %v365 = vld [vmem:[%s279 + $0xd0] sm:$0xf]
      %v366 = vld [vmem:[%s279 + $0xd4] sm:$0xf]
      %v367 = vld [vmem:[%s279 + $0xd8] sm:$0xf]
      %v368 = vld [vmem:[%s279 + $0xdc] sm:$0xf]
      %v369 = vld [vmem:[%s279 + $0xe0] sm:$0xf]
      %v370 = vld [vmem:[%s279 + $0xe4] sm:$0xf]
      %v371 = vld [vmem:[%s279 + $0xe8] sm:$0xf]
      %v372 = vld [vmem:[%s279 + $0xec] sm:$0xf]
      %v373 = vld [vmem:[%s279 + $0xf0] sm:$0xf]
      %v374 = vld [vmem:[%s279 + $0xf4] sm:$0xf]
      %v375 = vld [vmem:[%s279 + $0xf8] sm:$0xf]
      %v376 = vld [vmem:[%s279 + $0xfc] sm:$0xf]
      %v377 = vld [vmem:[%s284] sm:$0xf]
      %v378 = vld [vmem:[%s284 + $0x4] sm:$0xf]
      %v379 = vld [vmem:[%s284 + $0x8] sm:$0xf]
      %v380 = vld [vmem:[%s284 + $0xc] sm:$0xf]
      %v381 = vld [vmem:[%s284 + $0x10] sm:$0xf]
      %v382 = vld [vmem:[%s284 + $0x14] sm:$0xf]
      %v383 = vld [vmem:[%s284 + $0x18] sm:$0xf]
      %v384 = vld [vmem:[%s284 + $0x1c] sm:$0xf]
      %v385 = vld [vmem:[%s287] sm:$0x1]
      %v387 = vlaneseq
      %v388 = vshrl.u32 %v387, 7
      %v389 = vsub.s32 0, %v388
      %v390 = vrot.slane %v385, %v389
      %v456 = vunpack.c.l.b16 %v313
      %v457 = vunpack.c.l.b16 %v314
      %v458 = vunpack.c.l.b16 %v315
      %v459 = vunpack.c.l.b16 %v316
      %v460 = vunpack.c.l.b16 %v317
      %v461 = vunpack.c.l.b16 %v318
      %v462 = vunpack.c.l.b16 %v319
      %v463 = vunpack.c.l.b16 %v320
      %v464 = vunpack.c.l.b16 %v321
      %v465 = vunpack.c.l.b16 %v322
      %v466 = vunpack.c.l.b16 %v323
      %v467 = vunpack.c.l.b16 %v324
      %v468 = vunpack.c.l.b16 %v325
      %v469 = vunpack.c.l.b16 %v326
      %v470 = vunpack.c.l.b16 %v327
      %v471 = vunpack.c.l.b16 %v328
      %v472 = vunpack.c.l.b16 %v329
      %v473 = vunpack.c.l.b16 %v330
      %v474 = vunpack.c.l.b16 %v331
      %v475 = vunpack.c.l.b16 %v332
      %v476 = vunpack.c.l.b16 %v333
      %v477 = vunpack.c.l.b16 %v334
      %v478 = vunpack.c.l.b16 %v335
      %v479 = vunpack.c.l.b16 %v336
      %v480 = vunpack.c.l.b16 %v337
      %v481 = vunpack.c.l.b16 %v338
      %v482 = vunpack.c.l.b16 %v339
      %v483 = vunpack.c.l.b16 %v340
      %v484 = vunpack.c.l.b16 %v341
      %v485 = vunpack.c.l.b16 %v342
      %v486 = vunpack.c.l.b16 %v343
      %v487 = vunpack.c.l.b16 %v344
      %v488 = vunpack.c.l.b16 %v345
      %v489 = vunpack.c.l.b16 %v346
      %v490 = vunpack.c.l.b16 %v347
      %v491 = vunpack.c.l.b16 %v348
      %v492 = vunpack.c.l.b16 %v349
      %v493 = vunpack.c.l.b16 %v350
      %v494 = vunpack.c.l.b16 %v351
      %v495 = vunpack.c.l.b16 %v352
      %v496 = vunpack.c.l.b16 %v353
      %v497 = vunpack.c.l.b16 %v354
      %v498 = vunpack.c.l.b16 %v355
      %v499 = vunpack.c.l.b16 %v356
      %v500 = vunpack.c.l.b16 %v357
      %v501 = vunpack.c.l.b16 %v358
      %v502 = vunpack.c.l.b16 %v359
      %v503 = vunpack.c.l.b16 %v360
      %v504 = vunpack.c.l.b16 %v361
      %v505 = vunpack.c.l.b16 %v362
      %v506 = vunpack.c.l.b16 %v363
      %v507 = vunpack.c.l.b16 %v364
      %v508 = vunpack.c.l.b16 %v365
      %v509 = vunpack.c.l.b16 %v366
      %v510 = vunpack.c.l.b16 %v367
      %v511 = vunpack.c.l.b16 %v368
      %v512 = vunpack.c.l.b16 %v369
      %v513 = vunpack.c.l.b16 %v370
      %v514 = vunpack.c.l.b16 %v371
      %v515 = vunpack.c.l.b16 %v372
      %v516 = vunpack.c.l.b16 %v373
      %v517 = vunpack.c.l.b16 %v374
      %v518 = vunpack.c.l.b16 %v375
      %v519 = vunpack.c.l.b16 %v376
      %v520 = vpack.c.b16 %v457, %v456
      %v521 = vpack.c.b16 %v459, %v458
      %v522 = vpack.c.b16 %v461, %v460
      %v523 = vpack.c.b16 %v463, %v462
      %v524 = vpack.c.b16 %v465, %v464
      %v525 = vpack.c.b16 %v467, %v466
      %v526 = vpack.c.b16 %v469, %v468
      %v527 = vpack.c.b16 %v471, %v470
      %v528 = vpack.c.b16 %v473, %v472
      %v529 = vpack.c.b16 %v475, %v474
      %v530 = vpack.c.b16 %v477, %v476
      %v531 = vpack.c.b16 %v479, %v478
      %v532 = vpack.c.b16 %v481, %v480
      %v533 = vpack.c.b16 %v483, %v482
      %v534 = vpack.c.b16 %v485, %v484
      %v535 = vpack.c.b16 %v487, %v486
      %v536 = vpack.c.b16 %v489, %v488
      %v537 = vpack.c.b16 %v491, %v490
      %v538 = vpack.c.b16 %v493, %v492
      %v539 = vpack.c.b16 %v495, %v494
      %v540 = vpack.c.b16 %v497, %v496
      %v541 = vpack.c.b16 %v499, %v498
      %v542 = vpack.c.b16 %v501, %v500
      %v543 = vpack.c.b16 %v503, %v502
      %v544 = vpack.c.b16 %v505, %v504
      %v545 = vpack.c.b16 %v507, %v506
      %v546 = vpack.c.b16 %v509, %v508
      %v547 = vpack.c.b16 %v511, %v510
      %v548 = vpack.c.b16 %v513, %v512
      %v549 = vpack.c.b16 %v515, %v514
      %v550 = vpack.c.b16 %v517, %v516
      %v551 = vpack.c.b16 %v519, %v518
      %v560 = vunpack.c.l.b16 %v377
      %v561 = vunpack.c.l.b16 %v378
      %v562 = vunpack.c.l.b16 %v379
      %v563 = vunpack.c.l.b16 %v380
      %v564 = vunpack.c.l.b16 %v381
      %v565 = vunpack.c.l.b16 %v382
      %v566 = vunpack.c.l.b16 %v383
      %v567 = vunpack.c.l.b16 %v384
      %v568 = vpack.c.b16 %v561, %v560
      %v569 = vpack.c.b16 %v563, %v562
      %v570 = vpack.c.b16 %v565, %v564
      %v571 = vpack.c.b16 %v567, %v566
      %vm576 = vcmask 523264
      %v578 = vsel %vm576, %v520, 0
      %v581 = vsel %vm576, %v521, 0
      %v584 = vsel %vm576, %v522, 0
      %v587 = vsel %vm576, %v523, 0
      %v590 = vsel %vm576, %v524, 0
      %v593 = vsel %vm576, %v525, 0
      %v596 = vsel %vm576, %v526, 0
      %v599 = vsel %vm576, %v527, 0
      %v602 = vsel %vm576, %v528, 0
      %v605 = vsel %vm576, %v529, 0
      %v608 = vsel %vm576, %v530, 0
      %v611 = vsel %vm576, %v531, 0
      %v614 = vsel %vm576, %v532, 0
      %v617 = vsel %vm576, %v533, 0
      %v620 = vsel %vm576, %v534, 0
      %v623 = vsel %vm576, %v535, 0
      %v626 = vsel %vm576, %v536, 0
      %v629 = vsel %vm576, %v537, 0
      %v632 = vsel %vm576, %v538, 0
      %v635 = vsel %vm576, %v539, 0
      %v638 = vsel %vm576, %v540, 0
      %v641 = vsel %vm576, %v541, 0
      %v644 = vsel %vm576, %v542, 0
      %v647 = vsel %vm576, %v543, 0
      %v650 = vsel %vm576, %v544, 0
      %v653 = vsel %vm576, %v545, 0
      %v656 = vsel %vm576, %v546, 0
      %v659 = vsel %vm576, %v547, 0
      %v662 = vsel %vm576, %v548, 0
      %v665 = vsel %vm576, %v549, 0
      %v668 = vsel %vm576, %v550, 0
      %v671 = vsel %vm576, %v551, 0
      %673 = vmatprep.subr.bf16.mxu0 0
      %674 = vmatpush1.bf16.msra.mxu0 0
      %675 = vmatprep.subr.bf16.mxu0 0
      %676 = vmatpush1.bf16.msra.mxu0 0
      %677 = vmatprep.subr.bf16.mxu0 0
      %678 = vmatpush1.bf16.msra.mxu0 0
      %679 = vmatprep.subr.bf16.mxu0 0
      %680 = vmatpush1.bf16.msra.mxu0 0
      %681 = vmatprep.subr.bf16.mxu0 0
      %682 = vmatpush1.bf16.msra.mxu0 %v571
      %683 = vmatprep.subr.bf16.mxu0 0
      %684 = vmatpush1.bf16.msra.mxu0 %v570
      %685 = vmatprep.subr.bf16.mxu0 0
      %686 = vmatpush1.bf16.msra.mxu0 %v569
      %687 = vmatprep.subr.bf16.mxu0 0
      %688 = vmatpush1.bf16.msra.mxu0 %v568
      %689 = vmatprep.subr.bf16.mxu0 0
      %690 = vmatpush2.bf16.msra.mxu0 0
      %691 = vmatprep.subr.bf16.mxu0 0
      %692 = vmatpush2.bf16.msra.mxu0 0
      %693 = vmatprep.subr.bf16.mxu0 0
      %694 = vmatpush2.bf16.msra.mxu0 0
      %695 = vmatprep.subr.bf16.mxu0 0
      %696 = vmatpush2.bf16.msra.mxu0 0
      %697 = vmatprep.subr.bf16.mxu0 0
      %698 = vmatpush2.bf16.msra.mxu0 0
      %699 = vmatprep.subr.bf16.mxu0 0
      %700 = vmatpush2.bf16.msra.mxu0 0
      %701 = vmatprep.subr.bf16.mxu0 0
      %702 = vmatpush2.bf16.msra.mxu0 0
      %703 = vmatprep.subr.bf16.mxu0 0
      %704 = vmatpush2.bf16.msra.mxu0 0
      %705 = vmatprep.mubr.bf16.mxu0 0
      %706 = vmatmul.mubr.bf16.gmra.mxu0 %v578
      %v707 = vpop.f32.mrf.mxu0
      %v708 = vadd.f32 %v390, %v707
      %v709 = vpop.f32.mrf.mxu0
      %v710 = vpop.f32.mrf.mxu0
      %v711 = vadd.f32 %v390, %v710
      %v712 = vpop.f32.mrf.mxu0
      %713 = vmatprep.mubr.bf16.mxu0 0
      %714 = vmatmul.mubr.bf16.gmra.mxu0 %v581
      %v715 = vpop.f32.mrf.mxu0
      %v716 = vadd.f32 %v390, %v715
      %v717 = vpop.f32.mrf.mxu0
      %v718 = vpop.f32.mrf.mxu0
      %v719 = vadd.f32 %v390, %v718
      %v720 = vpop.f32.mrf.mxu0
      %721 = vmatprep.mubr.bf16.mxu0 0
      %722 = vmatmul.mubr.bf16.gmra.mxu0 %v584
      %v723 = vpop.f32.mrf.mxu0
      %v724 = vadd.f32 %v390, %v723
      %v725 = vpop.f32.mrf.mxu0
      %v726 = vpop.f32.mrf.mxu0
      %v727 = vadd.f32 %v390, %v726
      %v728 = vpop.f32.mrf.mxu0
      %729 = vmatprep.mubr.bf16.mxu0 0
      %730 = vmatmul.mubr.bf16.gmra.mxu0 %v587
      %v731 = vpop.f32.mrf.mxu0
      %v732 = vadd.f32 %v390, %v731
      %v733 = vpop.f32.mrf.mxu0
      %v734 = vpop.f32.mrf.mxu0
      %v735 = vadd.f32 %v390, %v734
      %v736 = vpop.f32.mrf.mxu0
      %737 = vmatprep.mubr.bf16.mxu0 0
      %738 = vmatmul.mubr.bf16.gmra.mxu0 %v590
      %v739 = vpop.f32.mrf.mxu0
      %v740 = vadd.f32 %v390, %v739
      %v741 = vpop.f32.mrf.mxu0
      %v742 = vpop.f32.mrf.mxu0
      %v743 = vadd.f32 %v390, %v742
      %v744 = vpop.f32.mrf.mxu0
      %745 = vmatprep.mubr.bf16.mxu0 0
      %746 = vmatmul.mubr.bf16.gmra.mxu0 %v593
      %v747 = vpop.f32.mrf.mxu0
      %v748 = vadd.f32 %v390, %v747
      %v749 = vpop.f32.mrf.mxu0
      %v750 = vpop.f32.mrf.mxu0
      %v751 = vadd.f32 %v390, %v750
      %v752 = vpop.f32.mrf.mxu0
      %753 = vmatprep.mubr.bf16.mxu0 0
      %754 = vmatmul.mubr.bf16.gmra.mxu0 %v596
      %v755 = vpop.f32.mrf.mxu0
      %v756 = vadd.f32 %v390, %v755
      %v757 = vpop.f32.mrf.mxu0
      %v758 = vpop.f32.mrf.mxu0
      %v759 = vadd.f32 %v390, %v758
      %v760 = vpop.f32.mrf.mxu0
      %761 = vmatprep.mubr.bf16.mxu0 0
      %762 = vmatmul.mubr.bf16.gmra.mxu0 %v599
      %v763 = vpop.f32.mrf.mxu0
      %v764 = vadd.f32 %v390, %v763
      %v765 = vpop.f32.mrf.mxu0
      %v766 = vpop.f32.mrf.mxu0
      %v767 = vadd.f32 %v390, %v766
      %v768 = vpop.f32.mrf.mxu0
      %769 = vmatprep.mubr.bf16.mxu0 0
      %770 = vmatmul.mubr.bf16.gmra.mxu0 %v602
      %v771 = vpop.f32.mrf.mxu0
      %v772 = vadd.f32 %v390, %v771
      %v773 = vpop.f32.mrf.mxu0
      %v774 = vpop.f32.mrf.mxu0
      %v775 = vadd.f32 %v390, %v774
      %v776 = vpop.f32.mrf.mxu0
      %777 = vmatprep.mubr.bf16.mxu0 0
      %778 = vmatmul.mubr.bf16.gmra.mxu0 %v605
      %v779 = vpop.f32.mrf.mxu0
      %v780 = vadd.f32 %v390, %v779
      %v781 = vpop.f32.mrf.mxu0
      %v782 = vpop.f32.mrf.mxu0
      %v783 = vadd.f32 %v390, %v782
      %v784 = vpop.f32.mrf.mxu0
      %785 = vmatprep.mubr.bf16.mxu0 0
      %786 = vmatmul.mubr.bf16.gmra.mxu0 %v608
      %v787 = vpop.f32.mrf.mxu0
      %v788 = vadd.f32 %v390, %v787
      %v789 = vpop.f32.mrf.mxu0
      %v790 = vpop.f32.mrf.mxu0
      %v791 = vadd.f32 %v390, %v790
      %v792 = vpop.f32.mrf.mxu0
      %793 = vmatprep.mubr.bf16.mxu0 0
      %794 = vmatmul.mubr.bf16.gmra.mxu0 %v611
      %v795 = vpop.f32.mrf.mxu0
      %v796 = vadd.f32 %v390, %v795
      %v797 = vpop.f32.mrf.mxu0
      %v798 = vpop.f32.mrf.mxu0
      %v799 = vadd.f32 %v390, %v798
      %v800 = vpop.f32.mrf.mxu0
      %801 = vmatprep.mubr.bf16.mxu0 0
      %802 = vmatmul.mubr.bf16.gmra.mxu0 %v614
      %v803 = vpop.f32.mrf.mxu0
      %v804 = vadd.f32 %v390, %v803
      %v805 = vpop.f32.mrf.mxu0
      %v806 = vpop.f32.mrf.mxu0
      %v807 = vadd.f32 %v390, %v806
      %v808 = vpop.f32.mrf.mxu0
      %809 = vmatprep.mubr.bf16.mxu0 0
      %810 = vmatmul.mubr.bf16.gmra.mxu0 %v617
      %v811 = vpop.f32.mrf.mxu0
      %v812 = vadd.f32 %v390, %v811
      %v813 = vpop.f32.mrf.mxu0
      %v814 = vpop.f32.mrf.mxu0
      %v815 = vadd.f32 %v390, %v814
      %v816 = vpop.f32.mrf.mxu0
      %817 = vmatprep.mubr.bf16.mxu0 0
      %818 = vmatmul.mubr.bf16.gmra.mxu0 %v620
      %v819 = vpop.f32.mrf.mxu0
      %v820 = vadd.f32 %v390, %v819
      %v821 = vpop.f32.mrf.mxu0
      %v822 = vpop.f32.mrf.mxu0
      %v823 = vadd.f32 %v390, %v822
      %v824 = vpop.f32.mrf.mxu0
      %825 = vmatprep.mubr.bf16.mxu0 0
      %826 = vmatmul.mubr.bf16.gmra.mxu0 %v623
      %v827 = vpop.f32.mrf.mxu0
      %v828 = vadd.f32 %v390, %v827
      %v829 = vpop.f32.mrf.mxu0
      %v830 = vpop.f32.mrf.mxu0
      %v831 = vadd.f32 %v390, %v830
      %v832 = vpop.f32.mrf.mxu0
      %833 = vmatprep.mubr.bf16.mxu0 0
      %834 = vmatmul.mubr.bf16.gmra.mxu0 %v626
      %v835 = vpop.f32.mrf.mxu0
      %v836 = vadd.f32 %v390, %v835
      %v837 = vpop.f32.mrf.mxu0
      %v838 = vpop.f32.mrf.mxu0
      %v839 = vadd.f32 %v390, %v838
      %v840 = vpop.f32.mrf.mxu0
      %841 = vmatprep.mubr.bf16.mxu0 0
      %842 = vmatmul.mubr.bf16.gmra.mxu0 %v629
      %v843 = vpop.f32.mrf.mxu0
      %v844 = vadd.f32 %v390, %v843
      %v845 = vpop.f32.mrf.mxu0
      %v846 = vpop.f32.mrf.mxu0
      %v847 = vadd.f32 %v390, %v846
      %v848 = vpop.f32.mrf.mxu0
      %849 = vmatprep.mubr.bf16.mxu0 0
      %850 = vmatmul.mubr.bf16.gmra.mxu0 %v632
      %v851 = vpop.f32.mrf.mxu0
      %v852 = vadd.f32 %v390, %v851
      %v853 = vpop.f32.mrf.mxu0
      %v854 = vpop.f32.mrf.mxu0
      %v855 = vadd.f32 %v390, %v854
      %v856 = vpop.f32.mrf.mxu0
      %857 = vmatprep.mubr.bf16.mxu0 0
      %858 = vmatmul.mubr.bf16.gmra.mxu0 %v635
      %v859 = vpop.f32.mrf.mxu0
      %v860 = vadd.f32 %v390, %v859
      %v861 = vpop.f32.mrf.mxu0
      %v862 = vpop.f32.mrf.mxu0
      %v863 = vadd.f32 %v390, %v862
      %v864 = vpop.f32.mrf.mxu0
      %865 = vmatprep.mubr.bf16.mxu0 0
      %866 = vmatmul.mubr.bf16.gmra.mxu0 %v638
      %v867 = vpop.f32.mrf.mxu0
      %v868 = vadd.f32 %v390, %v867
      %v869 = vpop.f32.mrf.mxu0
      %v870 = vpop.f32.mrf.mxu0
      %v871 = vadd.f32 %v390, %v870
      %v872 = vpop.f32.mrf.mxu0
      %873 = vmatprep.mubr.bf16.mxu0 0
      %874 = vmatmul.mubr.bf16.gmra.mxu0 %v641
      %v875 = vpop.f32.mrf.mxu0
      %v876 = vadd.f32 %v390, %v875
      %v877 = vpop.f32.mrf.mxu0
      %v878 = vpop.f32.mrf.mxu0
      %v879 = vadd.f32 %v390, %v878
      %v880 = vpop.f32.mrf.mxu0
      %881 = vmatprep.mubr.bf16.mxu0 0
      %882 = vmatmul.mubr.bf16.gmra.mxu0 %v644
      %v883 = vpop.f32.mrf.mxu0
      %v884 = vadd.f32 %v390, %v883
      %v885 = vpop.f32.mrf.mxu0
      %v886 = vpop.f32.mrf.mxu0
      %v887 = vadd.f32 %v390, %v886
      %v888 = vpop.f32.mrf.mxu0
      %889 = vmatprep.mubr.bf16.mxu0 0
      %890 = vmatmul.mubr.bf16.gmra.mxu0 %v647
      %v891 = vpop.f32.mrf.mxu0
      %v892 = vadd.f32 %v390, %v891
      %v893 = vpop.f32.mrf.mxu0
      %v894 = vpop.f32.mrf.mxu0
      %v895 = vadd.f32 %v390, %v894
      %v896 = vpop.f32.mrf.mxu0
      %897 = vmatprep.mubr.bf16.mxu0 0
      %898 = vmatmul.mubr.bf16.gmra.mxu0 %v650
      %v899 = vpop.f32.mrf.mxu0
      %v900 = vadd.f32 %v390, %v899
      %v901 = vpop.f32.mrf.mxu0
      %v902 = vpop.f32.mrf.mxu0
      %v903 = vadd.f32 %v390, %v902
      %v904 = vpop.f32.mrf.mxu0
      %905 = vmatprep.mubr.bf16.mxu0 0
      %906 = vmatmul.mubr.bf16.gmra.mxu0 %v653
      %v907 = vpop.f32.mrf.mxu0
      %v908 = vadd.f32 %v390, %v907
      %v909 = vpop.f32.mrf.mxu0
      %v910 = vpop.f32.mrf.mxu0
      %v911 = vadd.f32 %v390, %v910
      %v912 = vpop.f32.mrf.mxu0
      %913 = vmatprep.mubr.bf16.mxu0 0
      %914 = vmatmul.mubr.bf16.gmra.mxu0 %v656
      %v915 = vpop.f32.mrf.mxu0
      %v916 = vadd.f32 %v390, %v915
      %v917 = vpop.f32.mrf.mxu0
      %v918 = vpop.f32.mrf.mxu0
      %v919 = vadd.f32 %v390, %v918
      %v920 = vpop.f32.mrf.mxu0
      %921 = vmatprep.mubr.bf16.mxu0 0
      %922 = vmatmul.mubr.bf16.gmra.mxu0 %v659
      %v923 = vpop.f32.mrf.mxu0
      %v924 = vadd.f32 %v390, %v923
      %v925 = vpop.f32.mrf.mxu0
      %v926 = vpop.f32.mrf.mxu0
      %v927 = vadd.f32 %v390, %v926
      %v928 = vpop.f32.mrf.mxu0
      %929 = vmatprep.mubr.bf16.mxu0 0
      %930 = vmatmul.mubr.bf16.gmra.mxu0 %v662
      %v931 = vpop.f32.mrf.mxu0
      %v932 = vadd.f32 %v390, %v931
      %v933 = vpop.f32.mrf.mxu0
      %v934 = vpop.f32.mrf.mxu0
      %v935 = vadd.f32 %v390, %v934
      %v936 = vpop.f32.mrf.mxu0
      %937 = vmatprep.mubr.bf16.mxu0 0
      %938 = vmatmul.mubr.bf16.gmra.mxu0 %v665
      %v939 = vpop.f32.mrf.mxu0
      %v940 = vadd.f32 %v390, %v939
      %v941 = vpop.f32.mrf.mxu0
      %v942 = vpop.f32.mrf.mxu0
      %v943 = vadd.f32 %v390, %v942
      %v944 = vpop.f32.mrf.mxu0
      %945 = vmatprep.mubr.bf16.mxu0 0
      %946 = vmatmul.mubr.bf16.gmra.mxu0 %v668
      %v947 = vpop.f32.mrf.mxu0
      %v948 = vadd.f32 %v390, %v947
      %v949 = vpop.f32.mrf.mxu0
      %v950 = vpop.f32.mrf.mxu0
      %v951 = vadd.f32 %v390, %v950
      %v952 = vpop.f32.mrf.mxu0
      %953 = vmatprep.mubr.bf16.mxu0 0
      %954 = vmatmul.mubr.bf16.gmra.mxu0 %v671
      %v955 = vpop.f32.mrf.mxu0
      %v956 = vadd.f32 %v390, %v955
      %v957 = vpop.f32.mrf.mxu0
      %v958 = vpop.f32.mrf.mxu0
      %v959 = vadd.f32 %v390, %v958
      %v960 = vpop.f32.mrf.mxu0
      %961 = vdwg.mxu0
      %v962 = vpack.c.bf16 %v711, %v708
      %v963 = vpack.c.bf16 %v719, %v716
      %v964 = vpack.c.bf16 %v727, %v724
      %v965 = vpack.c.bf16 %v735, %v732
      %v966 = vpack.c.bf16 %v743, %v740
      %v967 = vpack.c.bf16 %v751, %v748
      %v968 = vpack.c.bf16 %v759, %v756
      %v969 = vpack.c.bf16 %v767, %v764
      %v970 = vpack.c.bf16 %v775, %v772
      %v971 = vpack.c.bf16 %v783, %v780
      %v972 = vpack.c.bf16 %v791, %v788
      %v973 = vpack.c.bf16 %v799, %v796
      %v974 = vpack.c.bf16 %v807, %v804
      %v975 = vpack.c.bf16 %v815, %v812
      %v976 = vpack.c.bf16 %v823, %v820
      %v977 = vpack.c.bf16 %v831, %v828
      %v978 = vpack.c.bf16 %v839, %v836
      %v979 = vpack.c.bf16 %v847, %v844
      %v980 = vpack.c.bf16 %v855, %v852
      %v981 = vpack.c.bf16 %v863, %v860
      %v982 = vpack.c.bf16 %v871, %v868
      %v983 = vpack.c.bf16 %v879, %v876
      %v984 = vpack.c.bf16 %v887, %v884
      %v985 = vpack.c.bf16 %v895, %v892
      %v986 = vpack.c.bf16 %v903, %v900
      %v987 = vpack.c.bf16 %v911, %v908
      %v988 = vpack.c.bf16 %v919, %v916
      %v989 = vpack.c.bf16 %v927, %v924
      %v990 = vpack.c.bf16 %v935, %v932
      %v991 = vpack.c.bf16 %v943, %v940
      %v992 = vpack.c.bf16 %v951, %v948
      %v993 = vpack.c.bf16 %v959, %v956
      %v1026 = vunpack.c.l.b16 %v962
      %v1027 = vunpack.c.h.b16 %v962
      %v1028 = vunpack.c.l.b16 %v963
      %v1029 = vunpack.c.h.b16 %v963
      %v1030 = vunpack.c.l.b16 %v964
      %v1031 = vunpack.c.h.b16 %v964
      %v1032 = vunpack.c.l.b16 %v965
      %v1033 = vunpack.c.h.b16 %v965
      %v1034 = vunpack.c.l.b16 %v966
      %v1035 = vunpack.c.h.b16 %v966
      %v1036 = vunpack.c.l.b16 %v967
      %v1037 = vunpack.c.h.b16 %v967
      %v1038 = vunpack.c.l.b16 %v968
      %v1039 = vunpack.c.h.b16 %v968
      %v1040 = vunpack.c.l.b16 %v969
      %v1041 = vunpack.c.h.b16 %v969
      %v1042 = vunpack.c.l.b16 %v970
      %v1043 = vunpack.c.h.b16 %v970
      %v1044 = vunpack.c.l.b16 %v971
      %v1045 = vunpack.c.h.b16 %v971
      %v1046 = vunpack.c.l.b16 %v972
      %v1047 = vunpack.c.h.b16 %v972
      %v1048 = vunpack.c.l.b16 %v973
      %v1049 = vunpack.c.h.b16 %v973
      %v1050 = vunpack.c.l.b16 %v974
      %v1051 = vunpack.c.h.b16 %v974
      %v1052 = vunpack.c.l.b16 %v975
      %v1053 = vunpack.c.h.b16 %v975
      %v1054 = vunpack.c.l.b16 %v976
      %v1055 = vunpack.c.h.b16 %v976
      %v1056 = vunpack.c.l.b16 %v977
      %v1057 = vunpack.c.h.b16 %v977
      %v1058 = vunpack.c.l.b16 %v978
      %v1059 = vunpack.c.h.b16 %v978
      %v1060 = vunpack.c.l.b16 %v979
      %v1061 = vunpack.c.h.b16 %v979
      %v1062 = vunpack.c.l.b16 %v980
      %v1063 = vunpack.c.h.b16 %v980
      %v1064 = vunpack.c.l.b16 %v981
      %v1065 = vunpack.c.h.b16 %v981
      %v1066 = vunpack.c.l.b16 %v982
      %v1067 = vunpack.c.h.b16 %v982
      %v1068 = vunpack.c.l.b16 %v983
      %v1069 = vunpack.c.h.b16 %v983
      %v1070 = vunpack.c.l.b16 %v984
      %v1071 = vunpack.c.h.b16 %v984
      %v1072 = vunpack.c.l.b16 %v985
      %v1073 = vunpack.c.h.b16 %v985
      %v1074 = vunpack.c.l.b16 %v986
      %v1075 = vunpack.c.h.b16 %v986
      %v1076 = vunpack.c.l.b16 %v987
      %v1077 = vunpack.c.h.b16 %v987
      %v1078 = vunpack.c.l.b16 %v988
      %v1079 = vunpack.c.h.b16 %v988
      %v1080 = vunpack.c.l.b16 %v989
      %v1081 = vunpack.c.h.b16 %v989
      %v1082 = vunpack.c.l.b16 %v990
      %v1083 = vunpack.c.h.b16 %v990
      %v1084 = vunpack.c.l.b16 %v991
      %v1085 = vunpack.c.h.b16 %v991
      %v1086 = vunpack.c.l.b16 %v992
      %v1087 = vunpack.c.h.b16 %v992
      %v1088 = vunpack.c.l.b16 %v993
      %v1089 = vunpack.c.h.b16 %v993
      %v1090 = vpack.c.b16 %v1026, %v1026
      %v1091 = vpack.c.b16 %v1027, %v1027
      %v1092 = vpack.c.b16 %v1028, %v1028
      %v1093 = vpack.c.b16 %v1029, %v1029
      %v1094 = vpack.c.b16 %v1030, %v1030
      %v1095 = vpack.c.b16 %v1031, %v1031
      %v1096 = vpack.c.b16 %v1032, %v1032
      %v1097 = vpack.c.b16 %v1033, %v1033
      %v1098 = vpack.c.b16 %v1034, %v1034
      %v1099 = vpack.c.b16 %v1035, %v1035
      %v1100 = vpack.c.b16 %v1036, %v1036
      %v1101 = vpack.c.b16 %v1037, %v1037
      %v1102 = vpack.c.b16 %v1038, %v1038
      %v1103 = vpack.c.b16 %v1039, %v1039
      %v1104 = vpack.c.b16 %v1040, %v1040
      %v1105 = vpack.c.b16 %v1041, %v1041
      %v1106 = vpack.c.b16 %v1042, %v1042
      %v1107 = vpack.c.b16 %v1043, %v1043
      %v1108 = vpack.c.b16 %v1044, %v1044
      %v1109 = vpack.c.b16 %v1045, %v1045
      %v1110 = vpack.c.b16 %v1046, %v1046
      %v1111 = vpack.c.b16 %v1047, %v1047
      %v1112 = vpack.c.b16 %v1048, %v1048
      %v1113 = vpack.c.b16 %v1049, %v1049
      %v1114 = vpack.c.b16 %v1050, %v1050
      %v1115 = vpack.c.b16 %v1051, %v1051
      %v1116 = vpack.c.b16 %v1052, %v1052
      %v1117 = vpack.c.b16 %v1053, %v1053
      %v1118 = vpack.c.b16 %v1054, %v1054
      %v1119 = vpack.c.b16 %v1055, %v1055
      %v1120 = vpack.c.b16 %v1056, %v1056
      %v1121 = vpack.c.b16 %v1057, %v1057
      %v1122 = vpack.c.b16 %v1058, %v1058
      %v1123 = vpack.c.b16 %v1059, %v1059
      %v1124 = vpack.c.b16 %v1060, %v1060
      %v1125 = vpack.c.b16 %v1061, %v1061
      %v1126 = vpack.c.b16 %v1062, %v1062
      %v1127 = vpack.c.b16 %v1063, %v1063
      %v1128 = vpack.c.b16 %v1064, %v1064
      %v1129 = vpack.c.b16 %v1065, %v1065
      %v1130 = vpack.c.b16 %v1066, %v1066
      %v1131 = vpack.c.b16 %v1067, %v1067
      %v1132 = vpack.c.b16 %v1068, %v1068
      %v1133 = vpack.c.b16 %v1069, %v1069
      %v1134 = vpack.c.b16 %v1070, %v1070
      %v1135 = vpack.c.b16 %v1071, %v1071
      %v1136 = vpack.c.b16 %v1072, %v1072
      %v1137 = vpack.c.b16 %v1073, %v1073
      %v1138 = vpack.c.b16 %v1074, %v1074
      %v1139 = vpack.c.b16 %v1075, %v1075
      %v1140 = vpack.c.b16 %v1076, %v1076
      %v1141 = vpack.c.b16 %v1077, %v1077
      %v1142 = vpack.c.b16 %v1078, %v1078
      %v1143 = vpack.c.b16 %v1079, %v1079
      %v1144 = vpack.c.b16 %v1080, %v1080
      %v1145 = vpack.c.b16 %v1081, %v1081
      %v1146 = vpack.c.b16 %v1082, %v1082
      %v1147 = vpack.c.b16 %v1083, %v1083
      %v1148 = vpack.c.b16 %v1084, %v1084
      %v1149 = vpack.c.b16 %v1085, %v1085
      %v1150 = vpack.c.b16 %v1086, %v1086
      %v1151 = vpack.c.b16 %v1087, %v1087
      %v1152 = vpack.c.b16 %v1088, %v1088
      %v1153 = vpack.c.b16 %v1089, %v1089
      %vm1218 = vcmask 257024
      %1219 = vst.msk [vmem:[%s299] sm:$0xf] %vm1218, %v1090
      %1220 = vst.msk [vmem:[%s299 + $0x4] sm:$0xf] %vm1218, %v1091
      %1221 = vst.msk [vmem:[%s299 + $0x8] sm:$0xf] %vm1218, %v1092
      %1222 = vst.msk [vmem:[%s299 + $0xc] sm:$0xf] %vm1218, %v1093
      %1223 = vst.msk [vmem:[%s299 + $0x10] sm:$0xf] %vm1218, %v1094
      %1224 = vst.msk [vmem:[%s299 + $0x14] sm:$0xf] %vm1218, %v1095
      %1225 = vst.msk [vmem:[%s299 + $0x18] sm:$0xf] %vm1218, %v1096
      %1226 = vst.msk [vmem:[%s299 + $0x1c] sm:$0xf] %vm1218, %v1097
      %1227 = vst.msk [vmem:[%s299 + $0x20] sm:$0xf] %vm1218, %v1098
      %1228 = vst.msk [vmem:[%s299 + $0x24] sm:$0xf] %vm1218, %v1099
      %1229 = vst.msk [vmem:[%s299 + $0x28] sm:$0xf] %vm1218, %v1100
      %1230 = vst.msk [vmem:[%s299 + $0x2c] sm:$0xf] %vm1218, %v1101
      %1231 = vst.msk [vmem:[%s299 + $0x30] sm:$0xf] %vm1218, %v1102
      %1232 = vst.msk [vmem:[%s299 + $0x34] sm:$0xf] %vm1218, %v1103
      %1233 = vst.msk [vmem:[%s299 + $0x38] sm:$0xf] %vm1218, %v1104
      %1234 = vst.msk [vmem:[%s299 + $0x3c] sm:$0xf] %vm1218, %v1105
      %1235 = vst.msk [vmem:[%s299 + $0x40] sm:$0xf] %vm1218, %v1106
      %1236 = vst.msk [vmem:[%s299 + $0x44] sm:$0xf] %vm1218, %v1107
      %1237 = vst.msk [vmem:[%s299 + $0x48] sm:$0xf] %vm1218, %v1108
      %1238 = vst.msk [vmem:[%s299 + $0x4c] sm:$0xf] %vm1218, %v1109
      %1239 = vst.msk [vmem:[%s299 + $0x50] sm:$0xf] %vm1218, %v1110
      %1240 = vst.msk [vmem:[%s299 + $0x54] sm:$0xf] %vm1218, %v1111
      %1241 = vst.msk [vmem:[%s299 + $0x58] sm:$0xf] %vm1218, %v1112
      %1242 = vst.msk [vmem:[%s299 + $0x5c] sm:$0xf] %vm1218, %v1113
      %1243 = vst.msk [vmem:[%s299 + $0x60] sm:$0xf] %vm1218, %v1114
      %1244 = vst.msk [vmem:[%s299 + $0x64] sm:$0xf] %vm1218, %v1115
      %1245 = vst.msk [vmem:[%s299 + $0x68] sm:$0xf] %vm1218, %v1116
      %1246 = vst.msk [vmem:[%s299 + $0x6c] sm:$0xf] %vm1218, %v1117
      %1247 = vst.msk [vmem:[%s299 + $0x70] sm:$0xf] %vm1218, %v1118
      %1248 = vst.msk [vmem:[%s299 + $0x74] sm:$0xf] %vm1218, %v1119
      %1249 = vst.msk [vmem:[%s299 + $0x78] sm:$0xf] %vm1218, %v1120
      %1250 = vst.msk [vmem:[%s299 + $0x7c] sm:$0xf] %vm1218, %v1121
      %1251 = vst.msk [vmem:[%s299 + $0x80] sm:$0xf] %vm1218, %v1122
      %1252 = vst.msk [vmem:[%s299 + $0x84] sm:$0xf] %vm1218, %v1123
      %1253 = vst.msk [vmem:[%s299 + $0x88] sm:$0xf] %vm1218, %v1124
      %1254 = vst.msk [vmem:[%s299 + $0x8c] sm:$0xf] %vm1218, %v1125
      %1255 = vst.msk [vmem:[%s299 + $0x90] sm:$0xf] %vm1218, %v1126
      %1256 = vst.msk [vmem:[%s299 + $0x94] sm:$0xf] %vm1218, %v1127
      %1257 = vst.msk [vmem:[%s299 + $0x98] sm:$0xf] %vm1218, %v1128
      %1258 = vst.msk [vmem:[%s299 + $0x9c] sm:$0xf] %vm1218, %v1129
      %1259 = vst.msk [vmem:[%s299 + $0xa0] sm:$0xf] %vm1218, %v1130
      %1260 = vst.msk [vmem:[%s299 + $0xa4] sm:$0xf] %vm1218, %v1131
      %1261 = vst.msk [vmem:[%s299 + $0xa8] sm:$0xf] %vm1218, %v1132
      %1262 = vst.msk [vmem:[%s299 + $0xac] sm:$0xf] %vm1218, %v1133
      %1263 = vst.msk [vmem:[%s299 + $0xb0] sm:$0xf] %vm1218, %v1134
      %1264 = vst.msk [vmem:[%s299 + $0xb4] sm:$0xf] %vm1218, %v1135
      %1265 = vst.msk [vmem:[%s299 + $0xb8] sm:$0xf] %vm1218, %v1136
      %1266 = vst.msk [vmem:[%s299 + $0xbc] sm:$0xf] %vm1218, %v1137
      %1267 = vst.msk [vmem:[%s299 + $0xc0] sm:$0xf] %vm1218, %v1138
      %1268 = vst.msk [vmem:[%s299 + $0xc4] sm:$0xf] %vm1218, %v1139
      %1269 = vst.msk [vmem:[%s299 + $0xc8] sm:$0xf] %vm1218, %v1140
      %1270 = vst.msk [vmem:[%s299 + $0xcc] sm:$0xf] %vm1218, %v1141
      %1271 = vst.msk [vmem:[%s299 + $0xd0] sm:$0xf] %vm1218, %v1142
      %1272 = vst.msk [vmem:[%s299 + $0xd4] sm:$0xf] %vm1218, %v1143
      %1273 = vst.msk [vmem:[%s299 + $0xd8] sm:$0xf] %vm1218, %v1144
      %1274 = vst.msk [vmem:[%s299 + $0xdc] sm:$0xf] %vm1218, %v1145
      %1275 = vst.msk [vmem:[%s299 + $0xe0] sm:$0xf] %vm1218, %v1146
      %1276 = vst.msk [vmem:[%s299 + $0xe4] sm:$0xf] %vm1218, %v1147
      %1277 = vst.msk [vmem:[%s299 + $0xe8] sm:$0xf] %vm1218, %v1148
      %1278 = vst.msk [vmem:[%s299 + $0xec] sm:$0xf] %vm1218, %v1149
      %1279 = vst.msk [vmem:[%s299 + $0xf0] sm:$0xf] %vm1218, %v1150
      %1280 = vst.msk [vmem:[%s299 + $0xf4] sm:$0xf] %vm1218, %v1151
      %1281 = vst.msk [vmem:[%s299 + $0xf8] sm:$0xf] %vm1218, %v1152
      %1282 = vst.msk [vmem:[%s299 + $0xfc] sm:$0xf] %vm1218, %v1153
      %vm1283 = vcmask 261120
      %v1284 = vsel %vm1283, %v708, 0.0
      %v1285 = vsel %vm1283, %v711, 0.0
      %v1286 = vadd.f32 %v1284, %v1285
      %v1287 = vsel %vm1283, %v716, 0.0
      %v1288 = vadd.f32 %v1286, %v1287
      %v1289 = vsel %vm1283, %v719, 0.0
      %v1290 = vadd.f32 %v1288, %v1289
      %v1291 = vsel %vm1283, %v724, 0.0
      %v1292 = vadd.f32 %v1290, %v1291
      %v1293 = vsel %vm1283, %v727, 0.0
      %v1294 = vadd.f32 %v1292, %v1293
      %v1295 = vsel %vm1283, %v732, 0.0
      %v1296 = vadd.f32 %v1294, %v1295
      %v1297 = vsel %vm1283, %v735, 0.0
      %v1298 = vadd.f32 %v1296, %v1297
      %v1299 = vsel %vm1283, %v740, 0.0
      %v1300 = vadd.f32 %v1298, %v1299
      %v1301 = vsel %vm1283, %v743, 0.0
      %v1302 = vadd.f32 %v1300, %v1301
      %v1303 = vsel %vm1283, %v748, 0.0
      %v1304 = vadd.f32 %v1302, %v1303
      %v1305 = vsel %vm1283, %v751, 0.0
      %v1306 = vadd.f32 %v1304, %v1305
      %v1307 = vsel %vm1283, %v756, 0.0
      %v1308 = vadd.f32 %v1306, %v1307
      %v1309 = vsel %vm1283, %v759, 0.0
      %v1310 = vadd.f32 %v1308, %v1309
      %v1311 = vsel %vm1283, %v764, 0.0
      %v1312 = vadd.f32 %v1310, %v1311
      %v1313 = vsel %vm1283, %v767, 0.0
      %v1314 = vadd.f32 %v1312, %v1313
      %v1315 = vsel %vm1283, %v772, 0.0
      %v1316 = vadd.f32 %v1314, %v1315
      %v1317 = vsel %vm1283, %v775, 0.0
      %v1318 = vadd.f32 %v1316, %v1317
      %v1319 = vsel %vm1283, %v780, 0.0
      %v1320 = vadd.f32 %v1318, %v1319
      %v1321 = vsel %vm1283, %v783, 0.0
      %v1322 = vadd.f32 %v1320, %v1321
      %v1323 = vsel %vm1283, %v788, 0.0
      %v1324 = vadd.f32 %v1322, %v1323
      %v1325 = vsel %vm1283, %v791, 0.0
      %v1326 = vadd.f32 %v1324, %v1325
      %v1327 = vsel %vm1283, %v796, 0.0
      %v1328 = vadd.f32 %v1326, %v1327
      %v1329 = vsel %vm1283, %v799, 0.0
      %v1330 = vadd.f32 %v1328, %v1329
      %v1331 = vsel %vm1283, %v804, 0.0
      %v1332 = vadd.f32 %v1330, %v1331
      %v1333 = vsel %vm1283, %v807, 0.0
      %v1334 = vadd.f32 %v1332, %v1333
      %v1335 = vsel %vm1283, %v812, 0.0
      %v1336 = vadd.f32 %v1334, %v1335
      %v1337 = vsel %vm1283, %v815, 0.0
      %v1338 = vadd.f32 %v1336, %v1337
      %v1339 = vsel %vm1283, %v820, 0.0
      %v1340 = vadd.f32 %v1338, %v1339
      %v1341 = vsel %vm1283, %v823, 0.0
      %v1342 = vadd.f32 %v1340, %v1341
      %v1343 = vsel %vm1283, %v828, 0.0
      %v1344 = vadd.f32 %v1342, %v1343
      %v1345 = vsel %vm1283, %v831, 0.0
      %v1346 = vadd.f32 %v1344, %v1345
      %v1347 = vsel %vm1283, %v836, 0.0
      %v1348 = vadd.f32 %v1346, %v1347
      %v1349 = vsel %vm1283, %v839, 0.0
      %v1350 = vadd.f32 %v1348, %v1349
      %v1351 = vsel %vm1283, %v844, 0.0
      %v1352 = vadd.f32 %v1350, %v1351
      %v1353 = vsel %vm1283, %v847, 0.0
      %v1354 = vadd.f32 %v1352, %v1353
      %v1355 = vsel %vm1283, %v852, 0.0
      %v1356 = vadd.f32 %v1354, %v1355
      %v1357 = vsel %vm1283, %v855, 0.0
      %v1358 = vadd.f32 %v1356, %v1357
      %v1359 = vsel %vm1283, %v860, 0.0
      %v1360 = vadd.f32 %v1358, %v1359
      %v1361 = vsel %vm1283, %v863, 0.0
      %v1362 = vadd.f32 %v1360, %v1361
      %v1363 = vsel %vm1283, %v868, 0.0
      %v1364 = vadd.f32 %v1362, %v1363
      %v1365 = vsel %vm1283, %v871, 0.0
      %v1366 = vadd.f32 %v1364, %v1365
      %v1367 = vsel %vm1283, %v876, 0.0
      %v1368 = vadd.f32 %v1366, %v1367
      %v1369 = vsel %vm1283, %v879, 0.0
      %v1370 = vadd.f32 %v1368, %v1369
      %v1371 = vsel %vm1283, %v884, 0.0
      %v1372 = vadd.f32 %v1370, %v1371
      %v1373 = vsel %vm1283, %v887, 0.0
      %v1374 = vadd.f32 %v1372, %v1373
      %v1375 = vsel %vm1283, %v892, 0.0
      %v1376 = vadd.f32 %v1374, %v1375
      %v1377 = vsel %vm1283, %v895, 0.0
      %v1378 = vadd.f32 %v1376, %v1377
      %v1379 = vsel %vm1283, %v900, 0.0
      %v1380 = vadd.f32 %v1378, %v1379
      %v1381 = vsel %vm1283, %v903, 0.0
      %v1382 = vadd.f32 %v1380, %v1381
      %v1383 = vsel %vm1283, %v908, 0.0
      %v1384 = vadd.f32 %v1382, %v1383
      %v1385 = vsel %vm1283, %v911, 0.0
      %v1386 = vadd.f32 %v1384, %v1385
      %v1387 = vsel %vm1283, %v916, 0.0
      %v1388 = vadd.f32 %v1386, %v1387
      %v1389 = vsel %vm1283, %v919, 0.0
      %v1390 = vadd.f32 %v1388, %v1389
      %v1391 = vsel %vm1283, %v924, 0.0
      %v1392 = vadd.f32 %v1390, %v1391
      %v1393 = vsel %vm1283, %v927, 0.0
      %v1394 = vadd.f32 %v1392, %v1393
      %v1395 = vsel %vm1283, %v932, 0.0
      %v1396 = vadd.f32 %v1394, %v1395
      %v1397 = vsel %vm1283, %v935, 0.0
      %v1398 = vadd.f32 %v1396, %v1397
      %v1399 = vsel %vm1283, %v940, 0.0
      %v1400 = vadd.f32 %v1398, %v1399
      %v1401 = vsel %vm1283, %v943, 0.0
      %v1402 = vadd.f32 %v1400, %v1401
      %v1403 = vsel %vm1283, %v948, 0.0
      %v1404 = vadd.f32 %v1402, %v1403
      %v1405 = vsel %vm1283, %v951, 0.0
      %v1406 = vadd.f32 %v1404, %v1405
      %v1407 = vsel %vm1283, %v956, 0.0
      %v1408 = vadd.f32 %v1406, %v1407
      %v1409 = vsel %vm1283, %v959, 0.0
      %v1410 = vadd.f32 %v1408, %v1409
      %v1411 = vrot.slane %v1410, 4
      %v1412 = vadd.f32 %v1410, %v1411
      %v1413 = vrot.slane %v1412, 2
      %v1414 = vadd.f32 %v1412, %v1413
      %v1415 = vrot.slane %v1414, 1
      %v1416 = vadd.f32 %v1414, %v1415
      %vm1417 = vcmask 253952
      %1418 = vst.msk [vmem:[%s311] sm:$0x1] %vm1417, %v1416
      %v1419 = vmul.f32 %v708, %v708
      %v1420 = vmul.f32 %v711, %v711
      %v1421 = vmul.f32 %v716, %v716
      %v1422 = vmul.f32 %v719, %v719
      %v1423 = vmul.f32 %v724, %v724
      %v1424 = vmul.f32 %v727, %v727
      %v1425 = vmul.f32 %v732, %v732
      %v1426 = vmul.f32 %v735, %v735
      %v1427 = vmul.f32 %v740, %v740
      %v1428 = vmul.f32 %v743, %v743
      %v1429 = vmul.f32 %v748, %v748
      %v1430 = vmul.f32 %v751, %v751
      %v1431 = vmul.f32 %v756, %v756
      %v1432 = vmul.f32 %v759, %v759
      %v1433 = vmul.f32 %v764, %v764
      %v1434 = vmul.f32 %v767, %v767
      %v1435 = vmul.f32 %v772, %v772
      %v1436 = vmul.f32 %v775, %v775
      %v1437 = vmul.f32 %v780, %v780
      %v1438 = vmul.f32 %v783, %v783
      %v1439 = vmul.f32 %v788, %v788
      %v1440 = vmul.f32 %v791, %v791
      %v1441 = vmul.f32 %v796, %v796
      %v1442 = vmul.f32 %v799, %v799
      %v1443 = vmul.f32 %v804, %v804
      %v1444 = vmul.f32 %v807, %v807
      %v1445 = vmul.f32 %v812, %v812
      %v1446 = vmul.f32 %v815, %v815
      %v1447 = vmul.f32 %v820, %v820
      %v1448 = vmul.f32 %v823, %v823
      %v1449 = vmul.f32 %v828, %v828
      %v1450 = vmul.f32 %v831, %v831
      %v1451 = vmul.f32 %v836, %v836
      %v1452 = vmul.f32 %v839, %v839
      %v1453 = vmul.f32 %v844, %v844
      %v1454 = vmul.f32 %v847, %v847
      %v1455 = vmul.f32 %v852, %v852
      %v1456 = vmul.f32 %v855, %v855
      %v1457 = vmul.f32 %v860, %v860
      %v1458 = vmul.f32 %v863, %v863
      %v1459 = vmul.f32 %v868, %v868
      %v1460 = vmul.f32 %v871, %v871
      %v1461 = vmul.f32 %v876, %v876
      %v1462 = vmul.f32 %v879, %v879
      %v1463 = vmul.f32 %v884, %v884
      %v1464 = vmul.f32 %v887, %v887
      %v1465 = vmul.f32 %v892, %v892
      %v1466 = vmul.f32 %v895, %v895
      %v1467 = vmul.f32 %v900, %v900
      %v1468 = vmul.f32 %v903, %v903
      %v1469 = vmul.f32 %v908, %v908
      %v1470 = vmul.f32 %v911, %v911
      %v1471 = vmul.f32 %v916, %v916
      %v1472 = vmul.f32 %v919, %v919
      %v1473 = vmul.f32 %v924, %v924
      %v1474 = vmul.f32 %v927, %v927
      %v1475 = vmul.f32 %v932, %v932
      %v1476 = vmul.f32 %v935, %v935
      %v1477 = vmul.f32 %v940, %v940
      %v1478 = vmul.f32 %v943, %v943
      %v1479 = vmul.f32 %v948, %v948
      %v1480 = vmul.f32 %v951, %v951
      %v1481 = vmul.f32 %v956, %v956
      %v1482 = vmul.f32 %v959, %v959
      %v1483 = vsel %vm1283, %v1419, 0.0
      %v1484 = vsel %vm1283, %v1420, 0.0
      %v1485 = vadd.f32 %v1483, %v1484
      %v1486 = vsel %vm1283, %v1421, 0.0
      %v1487 = vadd.f32 %v1485, %v1486
      %v1488 = vsel %vm1283, %v1422, 0.0
      %v1489 = vadd.f32 %v1487, %v1488
      %v1490 = vsel %vm1283, %v1423, 0.0
      %v1491 = vadd.f32 %v1489, %v1490
      %v1492 = vsel %vm1283, %v1424, 0.0
      %v1493 = vadd.f32 %v1491, %v1492
      %v1494 = vsel %vm1283, %v1425, 0.0
      %v1495 = vadd.f32 %v1493, %v1494
      %v1496 = vsel %vm1283, %v1426, 0.0
      %v1497 = vadd.f32 %v1495, %v1496
      %v1498 = vsel %vm1283, %v1427, 0.0
      %v1499 = vadd.f32 %v1497, %v1498
      %v1500 = vsel %vm1283, %v1428, 0.0
      %v1501 = vadd.f32 %v1499, %v1500
      %v1502 = vsel %vm1283, %v1429, 0.0
      %v1503 = vadd.f32 %v1501, %v1502
      %v1504 = vsel %vm1283, %v1430, 0.0
      %v1505 = vadd.f32 %v1503, %v1504
      %v1506 = vsel %vm1283, %v1431, 0.0
      %v1507 = vadd.f32 %v1505, %v1506
      %v1508 = vsel %vm1283, %v1432, 0.0
      %v1509 = vadd.f32 %v1507, %v1508
      %v1510 = vsel %vm1283, %v1433, 0.0
      %v1511 = vadd.f32 %v1509, %v1510
      %v1512 = vsel %vm1283, %v1434, 0.0
      %v1513 = vadd.f32 %v1511, %v1512
      %v1514 = vsel %vm1283, %v1435, 0.0
      %v1515 = vadd.f32 %v1513, %v1514
      %v1516 = vsel %vm1283, %v1436, 0.0
      %v1517 = vadd.f32 %v1515, %v1516
      %v1518 = vsel %vm1283, %v1437, 0.0
      %v1519 = vadd.f32 %v1517, %v1518
      %v1520 = vsel %vm1283, %v1438, 0.0
      %v1521 = vadd.f32 %v1519, %v1520
      %v1522 = vsel %vm1283, %v1439, 0.0
      %v1523 = vadd.f32 %v1521, %v1522
      %v1524 = vsel %vm1283, %v1440, 0.0
      %v1525 = vadd.f32 %v1523, %v1524
      %v1526 = vsel %vm1283, %v1441, 0.0
      %v1527 = vadd.f32 %v1525, %v1526
      %v1528 = vsel %vm1283, %v1442, 0.0
      %v1529 = vadd.f32 %v1527, %v1528
      %v1530 = vsel %vm1283, %v1443, 0.0
      %v1531 = vadd.f32 %v1529, %v1530
      %v1532 = vsel %vm1283, %v1444, 0.0
      %v1533 = vadd.f32 %v1531, %v1532
      %v1534 = vsel %vm1283, %v1445, 0.0
      %v1535 = vadd.f32 %v1533, %v1534
      %v1536 = vsel %vm1283, %v1446, 0.0
      %v1537 = vadd.f32 %v1535, %v1536
      %v1538 = vsel %vm1283, %v1447, 0.0
      %v1539 = vadd.f32 %v1537, %v1538
      %v1540 = vsel %vm1283, %v1448, 0.0
      %v1541 = vadd.f32 %v1539, %v1540
      %v1542 = vsel %vm1283, %v1449, 0.0
      %v1543 = vadd.f32 %v1541, %v1542
      %v1544 = vsel %vm1283, %v1450, 0.0
      %v1545 = vadd.f32 %v1543, %v1544
      %v1546 = vsel %vm1283, %v1451, 0.0
      %v1547 = vadd.f32 %v1545, %v1546
      %v1548 = vsel %vm1283, %v1452, 0.0
      %v1549 = vadd.f32 %v1547, %v1548
      %v1550 = vsel %vm1283, %v1453, 0.0
      %v1551 = vadd.f32 %v1549, %v1550
      %v1552 = vsel %vm1283, %v1454, 0.0
      %v1553 = vadd.f32 %v1551, %v1552
      %v1554 = vsel %vm1283, %v1455, 0.0
      %v1555 = vadd.f32 %v1553, %v1554
      %v1556 = vsel %vm1283, %v1456, 0.0
      %v1557 = vadd.f32 %v1555, %v1556
      %v1558 = vsel %vm1283, %v1457, 0.0
      %v1559 = vadd.f32 %v1557, %v1558
      %v1560 = vsel %vm1283, %v1458, 0.0
      %v1561 = vadd.f32 %v1559, %v1560
      %v1562 = vsel %vm1283, %v1459, 0.0
      %v1563 = vadd.f32 %v1561, %v1562
      %v1564 = vsel %vm1283, %v1460, 0.0
      %v1565 = vadd.f32 %v1563, %v1564
      %v1566 = vsel %vm1283, %v1461, 0.0
      %v1567 = vadd.f32 %v1565, %v1566
      %v1568 = vsel %vm1283, %v1462, 0.0
      %v1569 = vadd.f32 %v1567, %v1568
      %v1570 = vsel %vm1283, %v1463, 0.0
      %v1571 = vadd.f32 %v1569, %v1570
      %v1572 = vsel %vm1283, %v1464, 0.0
      %v1573 = vadd.f32 %v1571, %v1572
      %v1574 = vsel %vm1283, %v1465, 0.0
      %v1575 = vadd.f32 %v1573, %v1574
      %v1576 = vsel %vm1283, %v1466, 0.0
      %v1577 = vadd.f32 %v1575, %v1576
      %v1578 = vsel %vm1283, %v1467, 0.0
      %v1579 = vadd.f32 %v1577, %v1578
      %v1580 = vsel %vm1283, %v1468, 0.0
      %v1581 = vadd.f32 %v1579, %v1580
      %v1582 = vsel %vm1283, %v1469, 0.0
      %v1583 = vadd.f32 %v1581, %v1582
      %v1584 = vsel %vm1283, %v1470, 0.0
      %v1585 = vadd.f32 %v1583, %v1584
      %v1586 = vsel %vm1283, %v1471, 0.0
      %v1587 = vadd.f32 %v1585, %v1586
      %v1588 = vsel %vm1283, %v1472, 0.0
      %v1589 = vadd.f32 %v1587, %v1588
      %v1590 = vsel %vm1283, %v1473, 0.0
      %v1591 = vadd.f32 %v1589, %v1590
      %v1592 = vsel %vm1283, %v1474, 0.0
      %v1593 = vadd.f32 %v1591, %v1592
      %v1594 = vsel %vm1283, %v1475, 0.0
      %v1595 = vadd.f32 %v1593, %v1594
      %v1596 = vsel %vm1283, %v1476, 0.0
      %v1597 = vadd.f32 %v1595, %v1596
      %v1598 = vsel %vm1283, %v1477, 0.0
      %v1599 = vadd.f32 %v1597, %v1598
      %v1600 = vsel %vm1283, %v1478, 0.0
      %v1601 = vadd.f32 %v1599, %v1600
      %v1602 = vsel %vm1283, %v1479, 0.0
      %v1603 = vadd.f32 %v1601, %v1602
      %v1604 = vsel %vm1283, %v1480, 0.0
      %v1605 = vadd.f32 %v1603, %v1604
      %v1606 = vsel %vm1283, %v1481, 0.0
      %v1607 = vadd.f32 %v1605, %v1606
      %v1608 = vsel %vm1283, %v1482, 0.0
      %v1609 = vadd.f32 %v1607, %v1608
      %v1610 = vrot.slane %v1609, 4
      %v1611 = vadd.f32 %v1609, %v1610
      %v1612 = vrot.slane %v1611, 2
      %v1613 = vadd.f32 %v1611, %v1612
      %v1614 = vrot.slane %v1613, 1
      %v1615 = vadd.f32 %v1613, %v1614
      %1616 = vst.msk [vmem:[%s311 + $0x1] sm:$0x1] %vm1417, %v1615
      %s1617 = smul.u32 64, %s22
      %p1618 = scmp.lt.s32.totalorder %s21, 1
      %s1619 = scalar_select %p1618, %s21, 1
      %p1620 = scmp.lt.s32.totalorder %s1617, 511
      %s1621 = scalar_select %p1620, %s1617, 511
      %p1622 = scmp.lt.s32.totalorder %s23, 0
      %s1623 = scalar_select %p1622, %s23, 0
      %s1624 = sadd.s32 %s1623, %s1621
      %s1625 = smul.addr %s1619, 512
      %s1626 = sadd.s32 %s1624, %s1625
      %s1627 = smul.addr %s1626, 4
      %s1628 = scalar_lea.vmem %s3, %s1627
      %p1629 = scmp.lt.s32.totalorder %s21, 1
      %s1630 = scalar_select %p1629, %s21, 1
      %p1631 = scmp.lt.s32.totalorder %s22, 7
      %s1632 = scalar_select %p1631, %s22, 7
      %p1633 = scmp.lt.s32.totalorder %s23, 0
      %s1634 = scalar_select %p1633, %s23, 0
      %s1635 = sadd.s32 %s1634, %s1632
      %s1636 = smul.addr %s1630, 8
      %s1637 = sadd.s32 %s1635, %s1636
      %s1638 = smul.addr %s1637, 2
      %s1639 = scalar_lea.vmem %s4, %s1638
      // Predicated region
      $region33: #{decoder_forward.8} parent=31 // pred_check
        %p1640 = pneg %p137
      $region34: #{decoder_forward.8} parent=31 // pred_check_branch
        %1642 = sbr.rel (%p1640) target = $region36
      $region35: #{decoder_forward.8} parent=31 // pred_region
        %s1643 = smul.u32 64, %s22
      $region36: #{decoder_forward.8} parent=31 // pred_fallthru
        _
      // Predicated region
      $region37: #{decoder_forward.8} parent=31 // pred_check
        %p1644 = pneg %p167
      $region38: #{decoder_forward.8} parent=31 // pred_check_branch
        %1646 = sbr.rel (%p1644) target = $region40
      $region39: #{decoder_forward.8} parent=31 // pred_region
        _
      $region40: #{decoder_forward.8} parent=31 // pred_fallthru
        _
    $region32: #{decoder_forward.8} parent=5 // pred_fallthru
      _
    %p1647 = scmp.le.s32.totalorder 2, %s11
    // Predicated region
    $region41: #{decoder_forward.8} parent=5 // pred_check
      %p1648 = pneg %p1647
    $region42: #{decoder_forward.8} parent=5 // pred_check_branch
      %1650 = sbr.rel (%p1648) target = $region44
    $region43: #{decoder_forward.8} parent=5 // pred_region
      %s1651 = ssub.s32 %s11, 2
      // Predicated region
      $region45: #{decoder_forward.8} parent=43 // pred_check
        %p1652 = pneg %p143
      $region46: #{decoder_forward.8} parent=43 // pred_check_branch
        %1654 = sbr.rel (%p1652) target = $region48
      $region47: #{decoder_forward.8} parent=43 // pred_region
        %s1655 = smul.u32 64, %s25
        %p1656 = scmp.lt.s32.totalorder %s24, 1
        %s1657 = scalar_select %p1656, %s24, 1
        %p1658 = scmp.lt.s32.totalorder %s1655, 511
        %s1659 = scalar_select %p1658, %s1655, 511
        %p1660 = scmp.lt.s32.totalorder %s26, 0
        %s1661 = scalar_select %p1660, %s26, 0
        %s1662 = sadd.s32 %s1661, %s1659
        %s1663 = smul.addr %s1657, 512
        %s1664 = sadd.s32 %s1662, %s1663
        %s1665 = smul.addr %s1664, 4
        %s1666 = scalar_lea.vmem %s3, %s1665
      $region48: #{decoder_forward.8} parent=43 // pred_fallthru
        _
      // Predicated region
      $region49: #{decoder_forward.8} parent=43 // pred_check
        %p1667 = pneg %p173
      $region50: #{decoder_forward.8} parent=43 // pred_check_branch
        %1669 = sbr.rel (%p1667) target = $region52
      $region51: #{decoder_forward.8} parent=43 // pred_region
        %p1670 = scmp.lt.s32.totalorder %s24, 1
        %s1671 = scalar_select %p1670, %s24, 1
        %p1672 = scmp.lt.s32.totalorder %s25, 7
        %s1673 = scalar_select %p1672, %s25, 7
        %p1674 = scmp.lt.s32.totalorder %s26, 0
        %s1675 = scalar_select %p1674, %s26, 0
        %s1676 = sadd.s32 %s1675, %s1673
        %s1677 = smul.addr %s1671, 8
        %s1678 = sadd.s32 %s1676, %s1677
        %s1679 = smul.addr %s1678, 2
        %s1680 = scalar_lea.vmem %s4, %s1679
      $region52: #{decoder_forward.8} parent=43 // pred_fallthru
        _
    $region44: #{decoder_forward.8} parent=5 // pred_fallthru
      _
  $region6: #{decoder_forward.8} parent=0 // loop_footer
    %s15 = sadd.s32 1, %s11
  $region7: #{decoder_forward.8} parent=0 // loop_footer_branch
    %10 = sbr.rel target = $region3
  $region8: #{decoder_forward.8} parent=0 // loop_exit
    _

// kernel: decoder_forward.9
$region0: #{decoder_forward.9}
  #allocation0 [shape = 'u32[]', space=smem, size = 0x4, offset = 0x4, fixed_abs, tag = 'smem constant byte address 0x4 - core index']
  #allocation1 [shape = 'u32[144,128]{1,0:T(1,128)}', space=vmem, size = 0x12000, scoped, tag = 'internal scratch']
  %s0 = inlined_call_operand.vmem [shape: bf16[2,34816,32], index: 0, kind: input, shape index: {}]
  %s1 = inlined_call_operand.vmem [shape: bf16[32,8], index: 1, kind: input, shape index: {}]
  %s2 = inlined_call_operand.vmem [shape: f32[1,8], index: 2, kind: input, shape index: {}]
  %s3 = inlined_call_operand.vmem [shape: f32[2,34816,8], index: 3, kind: output, shape index: {}]
  %s4 = sld [smem:[#allocation0]]
  $region45: #{decoder_forward.9} parent=0
    _
  %s6 = ssub.s32 1, %s4
  %s7 = scalar_select 0, %s6, %s4
  loop: start=0, step=1, limit=138
  $region2: #{decoder_forward.9} parent=0 // loop_pre_header
    _
  $region3: #{decoder_forward.9} parent=0 // loop_header
    %s9 = sphi 0, %s13
    %p10 = scmp.ge.s32.totalorder %s9, 138
    %s16 = sphi 0, %s35
    %s17 = sphi 0, %s31
    %s18 = sphi 0, %s27
    %s19 = sphi 0, %s16
    %s20 = sphi 0, %s17
    %s21 = sphi 0, %s18
    %s22 = sphi 0, %s19
    %s23 = sphi 0, %s20
    %s24 = sphi 0, %s21
    %s40 = sphi 0, %s42
    %s43 = sphi 0, %s40
    %s44 = sphi 0, %s43
    %s60 = sphi 0, %s44
    %s66 = sphi 0, %s68
    %s69 = sphi 0, %s66
    %s70 = sphi 0, %s69
    %s86 = sphi 0, %s70
    %s92 = sphi 0, %s94
    %s95 = sphi 0, %s92
    %s96 = sphi 0, %s95
    %s112 = sphi 0, %s96
    %s122 = sphi 0, %s124
    %s125 = sphi 0, %s122
    %s126 = sphi 0, %s125
    %s142 = sphi 0, %s126
  $region4: #{decoder_forward.9} parent=0 // loop_header_branch
    %12 = sbr.rel (%p10) target = $region8
  $region5: #{decoder_forward.9} parent=0 // loop_body
    %s14 = ssub.s32 %s9, 1
    %s15 = ssub.s32 %s9, 2
    %s25 = sadd.s32 1, %s18
    %p26 = scmp.ge.s32.totalorder %s25, 1
    %s27 = scalar_select %p26, 0, %s25
    %s28 = sadd.s32 1, %s17
    %s29 = scalar_select %p26, %s28, %s17
    %p30 = scmp.ge.s32.totalorder %s29, 68
    %s31 = scalar_select %p30, 0, %s29
    %s32 = sadd.s32 1, %s16
    %s33 = scalar_select %p30, %s32, %s16
    %p34 = scmp.ge.s32.totalorder %s33, 2
    %s35 = scalar_select %p34, 0, %s33
    %s36 = ssub.s32 %s16, %s35
    %s37 = ssub.s32 %s17, %s31
    %s38 = sor.u32 %s36, %s37
    %p39 = scmp.eq.s32.totalorder %s38, 0
    %s41 = sadd.s32 %s40, 1
    %s42 = scalar_select %p39, %s40, %s41
    %p45 = pneg %p39
    %p46 = scmp.eq.s32.totalorder %s9, 135
    %p47 = por %p45, %p46
    %p48 = scmp.ne.s32.totalorder %s40, %s43
    %p49 = scmp.eq.s32.totalorder %s9, 0
    %p50 = por %p48, %p49
    %p51 = scmp.ne.s32.totalorder %s40, %s43
    %p52 = scmp.eq.s32.totalorder %s14, 135
    %p53 = por %p51, %p52
    %p54 = scmp.ne.s32.totalorder %s43, %s44
    %p55 = scmp.eq.s32.totalorder %s14, 0
    %p56 = por %p54, %p55
    %p57 = scmp.ne.s32.totalorder %s43, %s44
    %p58 = scmp.eq.s32.totalorder %s15, 135
    %p59 = por %p57, %p58
    %p61 = scmp.ne.s32.totalorder %s44, %s60
    %p62 = scmp.eq.s32.totalorder %s15, 0
    %p63 = por %p61, %p62
    %s64 = ssub.s32 %s18, %s27
    %p65 = scmp.eq.s32.totalorder %s64, 0
    %s67 = sadd.s32 %s66, 1
    %s68 = scalar_select %p65, %s66, %s67
    %p71 = pneg %p65
    %p72 = scmp.eq.s32.totalorder %s9, 135
    %p73 = por %p71, %p72
    %p74 = scmp.ne.s32.totalorder %s66, %s69
    %p75 = scmp.eq.s32.totalorder %s9, 0
    %p76 = por %p74, %p75
    %p77 = scmp.ne.s32.totalorder %s66, %s69
    %p78 = scmp.eq.s32.totalorder %s14, 135
    %p79 = por %p77, %p78
    %p80 = scmp.ne.s32.totalorder %s69, %s70
    %p81 = scmp.eq.s32.totalorder %s14, 0
    %p82 = por %p80, %p81
    %p83 = scmp.ne.s32.totalorder %s69, %s70
    %p84 = scmp.eq.s32.totalorder %s15, 135
    %p85 = por %p83, %p84
    %p87 = scmp.ne.s32.totalorder %s70, %s86
    %p88 = scmp.eq.s32.totalorder %s15, 0
    %p89 = por %p87, %p88
    %s90 = ssub.s32 %s18, %s27
    %p91 = scmp.eq.s32.totalorder %s90, 0
    %s93 = sadd.s32 %s92, 1
    %s94 = scalar_select %p91, %s92, %s93
    %p97 = pneg %p91
    %p98 = scmp.eq.s32.totalorder %s9, 135
    %p99 = por %p97, %p98
    %p100 = scmp.ne.s32.totalorder %s92, %s95
    %p101 = scmp.eq.s32.totalorder %s9, 0
    %p102 = por %p100, %p101
    %p103 = scmp.ne.s32.totalorder %s92, %s95
    %p104 = scmp.eq.s32.totalorder %s14, 135
    %p105 = por %p103, %p104
    %p106 = scmp.ne.s32.totalorder %s95, %s96
    %p107 = scmp.eq.s32.totalorder %s14, 0
    %p108 = por %p106, %p107
    %p109 = scmp.ne.s32.totalorder %s95, %s96
    %p110 = scmp.eq.s32.totalorder %s15, 135
    %p111 = por %p109, %p110
    %p113 = scmp.ne.s32.totalorder %s96, %s112
    %p114 = scmp.eq.s32.totalorder %s15, 0
    %p115 = por %p113, %p114
    %s116 = ssub.s32 %s16, %s35
    %s117 = ssub.s32 %s17, %s31
    %s118 = sor.u32 %s116, %s117
    %s119 = ssub.s32 %s18, %s27
    %s120 = sor.u32 %s118, %s119
    %p121 = scmp.eq.s32.totalorder %s120, 0
    %s123 = sadd.s32 %s122, 1
    %s124 = scalar_select %p121, %s122, %s123
    %p127 = pneg %p121
    %p128 = scmp.eq.s32.totalorder %s9, 135
    %p129 = por %p127, %p128
    %p130 = scmp.ne.s32.totalorder %s122, %s125
    %p131 = scmp.eq.s32.totalorder %s9, 0
    %p132 = por %p130, %p131
    %p133 = scmp.ne.s32.totalorder %s122, %s125
    %p134 = scmp.eq.s32.totalorder %s14, 135
    %p135 = por %p133, %p134
    %p136 = scmp.ne.s32.totalorder %s125, %s126
    %p137 = scmp.eq.s32.totalorder %s14, 0
    %p138 = por %p136, %p137
    %p139 = scmp.ne.s32.totalorder %s125, %s126
    %p140 = scmp.eq.s32.totalorder %s15, 135
    %p141 = por %p139, %p140
    %p143 = scmp.ne.s32.totalorder %s126, %s142
    %p144 = scmp.eq.s32.totalorder %s15, 0
    %p145 = por %p143, %p144
    %p146 = scmp.le.s32.totalorder 1, %s9
    %p147 = scmp.lt.s32.totalorder %s9, 137
    %p148 = pnand %p146, %p147
    %p149 = pneg %p148
    // Predicated region
    $region9: #{decoder_forward.9} parent=5 // pred_check
      _
    $region10: #{decoder_forward.9} parent=5 // pred_check_branch
      %151 = sbr.rel (%p148) target = $region12
    $region11: #{decoder_forward.9} parent=5 // pred_region
      %s152 = ssub.s32 %s9, 1
      // Predicated region
      $region13: #{decoder_forward.9} parent=11 // pred_check
        %p153 = pneg %p82
      $region14: #{decoder_forward.9} parent=11 // pred_check_branch
        %155 = sbr.rel (%p153) target = $region16
      $region15: #{decoder_forward.9} parent=11 // pred_region
        %p156 = scmp.lt.s32.totalorder %s21, 0
        %s157 = scalar_select %p156, %s21, 0
        %s158 = smul.addr %s157, 4
        %s159 = scalar_lea.vmem %s1, %s158
      $region16: #{decoder_forward.9} parent=11 // pred_fallthru
        _
      // Predicated region
      $region17: #{decoder_forward.9} parent=11 // pred_check
        %p160 = pneg %p108
      $region18: #{decoder_forward.9} parent=11 // pred_check_branch
        %162 = sbr.rel (%p160) target = $region20
      $region19: #{decoder_forward.9} parent=11 // pred_region
        %p163 = scmp.lt.s32.totalorder %s21, 0
        %s164 = scalar_select %p163, %s21, 0
        %s165 = scalar_lea.vmem %s2, %s164
      $region20: #{decoder_forward.9} parent=11 // pred_fallthru
        _
    $region12: #{decoder_forward.9} parent=5 // pred_fallthru
      _
    %p166 = scmp.lt.s32.totalorder %s9, 136
    // Predicated region
    $region21: #{decoder_forward.9} parent=5 // pred_check
      %p167 = pneg %p166
    $region22: #{decoder_forward.9} parent=5 // pred_check_branch
      %169 = sbr.rel (%p167) target = $region24
    $region23: #{decoder_forward.9} parent=5 // pred_region
      // Predicated region
      $region25: #{decoder_forward.9} parent=23 // pred_check
        %p170 = pneg %p50
      $region26: #{decoder_forward.9} parent=23 // pred_check_branch
        %172 = sbr.rel (%p170) target = $region28
      $region27: #{decoder_forward.9} parent=23 // pred_region
        %s173 = smul.u32 64, %s17
        %p174 = scmp.lt.s32.totalorder %s16, 1
        %s175 = scalar_select %p174, %s16, 1
        %p176 = scmp.lt.s32.totalorder %s173, 4351
        %s177 = scalar_select %p176, %s173, 4351
        %s178 = smul.addr %s175, 4352
        %s179 = sadd.s32 %s177, %s178
        %s180 = smul.addr %s179, 4
        %s181 = scalar_lea.vmem %s0, %s180
        %s182 = smul.u32 64, %s17
      $region28: #{decoder_forward.9} parent=23 // pred_fallthru
        _
    $region24: #{decoder_forward.9} parent=5 // pred_fallthru
      _
    %p183 = scmp.le.s32.totalorder 1, %s9
    %p184 = scmp.lt.s32.totalorder %s9, 137
    %p185 = pnand %p183, %p184
    %p186 = pneg %p185
    // Predicated region
    $region29: #{decoder_forward.9} parent=5 // pred_check
      _
    $region30: #{decoder_forward.9} parent=5 // pred_check_branch
      %188 = sbr.rel (%p185) target = $region32
    $region31: #{decoder_forward.9} parent=5 // pred_region
      %s189 = ssub.s32 %s9, 1
      %s190 = smul.u32 64, %s20
      %p191 = scmp.lt.s32.totalorder %s19, 1
      %s192 = scalar_select %p191, %s19, 1
      %p193 = scmp.lt.s32.totalorder %s190, 4351
      %s194 = scalar_select %p193, %s190, 4351
      %s195 = smul.addr %s192, 4352
      %s196 = sadd.s32 %s194, %s195
      %s197 = smul.addr %s196, 4
      %s198 = scalar_lea.vmem %s0, %s197
      %p199 = pneg %p56
      %p200 = pneg %p53
      %p201 = scmp.lt.s32.totalorder %s21, 0
      %s202 = scalar_select %p201, %s21, 0
      %s203 = smul.addr %s202, 4
      %s204 = scalar_lea.vmem %s1, %s203
      %p205 = pneg %p82
      %p206 = pneg %p79
      %p207 = scmp.lt.s32.totalorder %s21, 0
      %s208 = scalar_select %p207, %s21, 0
      %s209 = scalar_lea.vmem %s2, %s208
      %p210 = pneg %p108
      %p211 = pneg %p105
      %p212 = pneg %p138
      %p213 = pneg %p135
      %s214 = smul.u32 64, %s20
      %p215 = scmp.lt.s32.totalorder %s19, 1
      %s216 = scalar_select %p215, %s19, 1
      %p217 = scmp.lt.s32.totalorder %s214, 4351
      %s218 = scalar_select %p217, %s214, 4351
      %p219 = scmp.lt.s32.totalorder %s21, 0
      %s220 = scalar_select %p219, %s21, 0
      %s221 = sadd.s32 %s220, %s218
      %s222 = smul.addr %s216, 4352
      %s223 = sadd.s32 %s221, %s222
      %s224 = smul.addr %s223, 8
      %s225 = scalar_lea.vmem %s3, %s224
      %s226 = smul.u32 64, %s20
      %p227 = scmp.lt.s32.totalorder %s19, 1
      %s228 = scalar_select %p227, %s19, 1
      %p229 = scmp.lt.s32.totalorder %s226, 4351
      %s230 = scalar_select %p229, %s226, 4351
      %s231 = smul.addr %s228, 4352
      %s232 = sadd.s32 %s230, %s231
      %s233 = smul.addr %s232, 4
      %s234 = scalar_lea.vmem %s0, %s233
      %s235 = smul.u32 64, %s20
      %p236 = scmp.lt.s32.totalorder %s21, 0
      %s237 = scalar_select %p236, %s21, 0
      %s238 = smul.addr %s237, 4
      %s239 = scalar_lea.vmem %s1, %s238
      %p240 = scmp.lt.s32.totalorder %s21, 0
      %s241 = scalar_select %p240, %s21, 0
      %s242 = scalar_lea.vmem %s2, %s241
      %s243 = smul.u32 64, %s20
      %p244 = scmp.lt.s32.totalorder %s19, 1
      %s245 = scalar_select %p244, %s19, 1
      %p246 = scmp.lt.s32.totalorder %s243, 4351
      %s247 = scalar_select %p246, %s243, 4351
      %p248 = scmp.lt.s32.totalorder %s21, 0
      %s249 = scalar_select %p248, %s21, 0
      %s250 = sadd.s32 %s249, %s247
      %s251 = smul.addr %s245, 4352
      %s252 = sadd.s32 %s250, %s251
      %s253 = smul.addr %s252, 8
      %s254 = scalar_lea.vmem %s3, %s253
      %s255 = smul.u32 64, %s20
      %v257 = vld [vmem:[%s234] sm:$0xf]
      %v258 = vld [vmem:[%s234 + $0x4] sm:$0xf]
      %v259 = vld [vmem:[%s234 + $0x8] sm:$0xf]
      %v260 = vld [vmem:[%s234 + $0xc] sm:$0xf]
      %v261 = vld [vmem:[%s234 + $0x10] sm:$0xf]
      %v262 = vld [vmem:[%s234 + $0x14] sm:$0xf]
      %v263 = vld [vmem:[%s234 + $0x18] sm:$0xf]
      %v264 = vld [vmem:[%s234 + $0x1c] sm:$0xf]
      %v265 = vld [vmem:[%s234 + $0x20] sm:$0xf]
      %v266 = vld [vmem:[%s234 + $0x24] sm:$0xf]
      %v267 = vld [vmem:[%s234 + $0x28] sm:$0xf]
      %v268 = vld [vmem:[%s234 + $0x2c] sm:$0xf]
      %v269 = vld [vmem:[%s234 + $0x30] sm:$0xf]
      %v270 = vld [vmem:[%s234 + $0x34] sm:$0xf]
      %v271 = vld [vmem:[%s234 + $0x38] sm:$0xf]
      %v272 = vld [vmem:[%s234 + $0x3c] sm:$0xf]
      %v273 = vld [vmem:[%s234 + $0x40] sm:$0xf]
      %v274 = vld [vmem:[%s234 + $0x44] sm:$0xf]
      %v275 = vld [vmem:[%s234 + $0x48] sm:$0xf]
      %v276 = vld [vmem:[%s234 + $0x4c] sm:$0xf]
      %v277 = vld [vmem:[%s234 + $0x50] sm:$0xf]
      %v278 = vld [vmem:[%s234 + $0x54] sm:$0xf]
      %v279 = vld [vmem:[%s234 + $0x58] sm:$0xf]
      %v280 = vld [vmem:[%s234 + $0x5c] sm:$0xf]
      %v281 = vld [vmem:[%s234 + $0x60] sm:$0xf]
      %v282 = vld [vmem:[%s234 + $0x64] sm:$0xf]
      %v283 = vld [vmem:[%s234 + $0x68] sm:$0xf]
      %v284 = vld [vmem:[%s234 + $0x6c] sm:$0xf]
      %v285 = vld [vmem:[%s234 + $0x70] sm:$0xf]
      %v286 = vld [vmem:[%s234 + $0x74] sm:$0xf]
      %v287 = vld [vmem:[%s234 + $0x78] sm:$0xf]
      %v288 = vld [vmem:[%s234 + $0x7c] sm:$0xf]
      %v289 = vld [vmem:[%s234 + $0x80] sm:$0xf]
      %v290 = vld [vmem:[%s234 + $0x84] sm:$0xf]
      %v291 = vld [vmem:[%s234 + $0x88] sm:$0xf]
      %v292 = vld [vmem:[%s234 + $0x8c] sm:$0xf]
      %v293 = vld [vmem:[%s234 + $0x90] sm:$0xf]
      %v294 = vld [vmem:[%s234 + $0x94] sm:$0xf]
      %v295 = vld [vmem:[%s234 + $0x98] sm:$0xf]
      %v296 = vld [vmem:[%s234 + $0x9c] sm:$0xf]
      %v297 = vld [vmem:[%s234 + $0xa0] sm:$0xf]
      %v298 = vld [vmem:[%s234 + $0xa4] sm:$0xf]
      %v299 = vld [vmem:[%s234 + $0xa8] sm:$0xf]
      %v300 = vld [vmem:[%s234 + $0xac] sm:$0xf]
      %v301 = vld [vmem:[%s234 + $0xb0] sm:$0xf]
      %v302 = vld [vmem:[%s234 + $0xb4] sm:$0xf]
      %v303 = vld [vmem:[%s234 + $0xb8] sm:$0xf]
      %v304 = vld [vmem:[%s234 + $0xbc] sm:$0xf]
      %v305 = vld [vmem:[%s234 + $0xc0] sm:$0xf]
      %v306 = vld [vmem:[%s234 + $0xc4] sm:$0xf]
      %v307 = vld [vmem:[%s234 + $0xc8] sm:$0xf]
      %v308 = vld [vmem:[%s234 + $0xcc] sm:$0xf]
      %v309 = vld [vmem:[%s234 + $0xd0] sm:$0xf]
      %v310 = vld [vmem:[%s234 + $0xd4] sm:$0xf]
      %v311 = vld [vmem:[%s234 + $0xd8] sm:$0xf]
      %v312 = vld [vmem:[%s234 + $0xdc] sm:$0xf]
      %v313 = vld [vmem:[%s234 + $0xe0] sm:$0xf]
      %v314 = vld [vmem:[%s234 + $0xe4] sm:$0xf]
      %v315 = vld [vmem:[%s234 + $0xe8] sm:$0xf]
      %v316 = vld [vmem:[%s234 + $0xec] sm:$0xf]
      %v317 = vld [vmem:[%s234 + $0xf0] sm:$0xf]
      %v318 = vld [vmem:[%s234 + $0xf4] sm:$0xf]
      %v319 = vld [vmem:[%s234 + $0xf8] sm:$0xf]
      %v320 = vld [vmem:[%s234 + $0xfc] sm:$0xf]
      %v321 = vld [vmem:[%s239] sm:$0xf]
      %v322 = vld [vmem:[%s239 + $0x4] sm:$0xf]
      %v323 = vld [vmem:[%s239 + $0x8] sm:$0xf]
      %v324 = vld [vmem:[%s239 + $0xc] sm:$0xf]
      %v325 = vld [vmem:[%s242] sm:$0x1]
      %v327 = vlaneseq
      %v328 = vshrl.u32 %v327, 7
      %v329 = vsub.s32 0, %v328
      %v330 = vrot.slane %v325, %v329
      %v396 = vunpack.c.l.b16 %v257
      %v397 = vunpack.c.l.b16 %v258
      %v398 = vunpack.c.l.b16 %v259
      %v399 = vunpack.c.l.b16 %v260
      %v400 = vunpack.c.l.b16 %v261
      %v401 = vunpack.c.l.b16 %v262
      %v402 = vunpack.c.l.b16 %v263
      %v403 = vunpack.c.l.b16 %v264
      %v404 = vunpack.c.l.b16 %v265
      %v405 = vunpack.c.l.b16 %v266
      %v406 = vunpack.c.l.b16 %v267
      %v407 = vunpack.c.l.b16 %v268
      %v408 = vunpack.c.l.b16 %v269
      %v409 = vunpack.c.l.b16 %v270
      %v410 = vunpack.c.l.b16 %v271
      %v411 = vunpack.c.l.b16 %v272
      %v412 = vunpack.c.l.b16 %v273
      %v413 = vunpack.c.l.b16 %v274
      %v414 = vunpack.c.l.b16 %v275
      %v415 = vunpack.c.l.b16 %v276
      %v416 = vunpack.c.l.b16 %v277
      %v417 = vunpack.c.l.b16 %v278
      %v418 = vunpack.c.l.b16 %v279
      %v419 = vunpack.c.l.b16 %v280
      %v420 = vunpack.c.l.b16 %v281
      %v421 = vunpack.c.l.b16 %v282
      %v422 = vunpack.c.l.b16 %v283
      %v423 = vunpack.c.l.b16 %v284
      %v424 = vunpack.c.l.b16 %v285
      %v425 = vunpack.c.l.b16 %v286
      %v426 = vunpack.c.l.b16 %v287
      %v427 = vunpack.c.l.b16 %v288
      %v428 = vunpack.c.l.b16 %v289
      %v429 = vunpack.c.l.b16 %v290
      %v430 = vunpack.c.l.b16 %v291
      %v431 = vunpack.c.l.b16 %v292
      %v432 = vunpack.c.l.b16 %v293
      %v433 = vunpack.c.l.b16 %v294
      %v434 = vunpack.c.l.b16 %v295
      %v435 = vunpack.c.l.b16 %v296
      %v436 = vunpack.c.l.b16 %v297
      %v437 = vunpack.c.l.b16 %v298
      %v438 = vunpack.c.l.b16 %v299
      %v439 = vunpack.c.l.b16 %v300
      %v440 = vunpack.c.l.b16 %v301
      %v441 = vunpack.c.l.b16 %v302
      %v442 = vunpack.c.l.b16 %v303
      %v443 = vunpack.c.l.b16 %v304
      %v444 = vunpack.c.l.b16 %v305
      %v445 = vunpack.c.l.b16 %v306
      %v446 = vunpack.c.l.b16 %v307
      %v447 = vunpack.c.l.b16 %v308
      %v448 = vunpack.c.l.b16 %v309
      %v449 = vunpack.c.l.b16 %v310
      %v450 = vunpack.c.l.b16 %v311
      %v451 = vunpack.c.l.b16 %v312
      %v452 = vunpack.c.l.b16 %v313
      %v453 = vunpack.c.l.b16 %v314
      %v454 = vunpack.c.l.b16 %v315
      %v455 = vunpack.c.l.b16 %v316
      %v456 = vunpack.c.l.b16 %v317
      %v457 = vunpack.c.l.b16 %v318
      %v458 = vunpack.c.l.b16 %v319
      %v459 = vunpack.c.l.b16 %v320
      %v460 = vpack.c.b16 %v397, %v396
      %v461 = vpack.c.b16 %v399, %v398
      %v462 = vpack.c.b16 %v401, %v400
      %v463 = vpack.c.b16 %v403, %v402
      %v464 = vpack.c.b16 %v405, %v404
      %v465 = vpack.c.b16 %v407, %v406
      %v466 = vpack.c.b16 %v409, %v408
      %v467 = vpack.c.b16 %v411, %v410
      %v468 = vpack.c.b16 %v413, %v412
      %v469 = vpack.c.b16 %v415, %v414
      %v470 = vpack.c.b16 %v417, %v416
      %v471 = vpack.c.b16 %v419, %v418
      %v472 = vpack.c.b16 %v421, %v420
      %v473 = vpack.c.b16 %v423, %v422
      %v474 = vpack.c.b16 %v425, %v424
      %v475 = vpack.c.b16 %v427, %v426
      %v476 = vpack.c.b16 %v429, %v428
      %v477 = vpack.c.b16 %v431, %v430
      %v478 = vpack.c.b16 %v433, %v432
      %v479 = vpack.c.b16 %v435, %v434
      %v480 = vpack.c.b16 %v437, %v436
      %v481 = vpack.c.b16 %v439, %v438
      %v482 = vpack.c.b16 %v441, %v440
      %v483 = vpack.c.b16 %v443, %v442
      %v484 = vpack.c.b16 %v445, %v444
      %v485 = vpack.c.b16 %v447, %v446
      %v486 = vpack.c.b16 %v449, %v448
      %v487 = vpack.c.b16 %v451, %v450
      %v488 = vpack.c.b16 %v453, %v452
      %v489 = vpack.c.b16 %v455, %v454
      %v490 = vpack.c.b16 %v457, %v456
      %v491 = vpack.c.b16 %v459, %v458
      %v496 = vunpack.c.l.b16 %v321
      %v497 = vunpack.c.l.b16 %v322
      %v498 = vunpack.c.l.b16 %v323
      %v499 = vunpack.c.l.b16 %v324
      %v500 = vpack.c.b16 %v497, %v496
      %v501 = vpack.c.b16 %v499, %v498
      %vm504 = vcmask 261120
      %v506 = vsel %vm504, %v460, 0
      %v509 = vsel %vm504, %v461, 0
      %v512 = vsel %vm504, %v462, 0
      %v515 = vsel %vm504, %v463, 0
      %v518 = vsel %vm504, %v464, 0
      %v521 = vsel %vm504, %v465, 0
      %v524 = vsel %vm504, %v466, 0
      %v527 = vsel %vm504, %v467, 0
      %v530 = vsel %vm504, %v468, 0
      %v533 = vsel %vm504, %v469, 0
      %v536 = vsel %vm504, %v470, 0
      %v539 = vsel %vm504, %v471, 0
      %v542 = vsel %vm504, %v472, 0
      %v545 = vsel %vm504, %v473, 0
      %v548 = vsel %vm504, %v474, 0
      %v551 = vsel %vm504, %v475, 0
      %v554 = vsel %vm504, %v476, 0
      %v557 = vsel %vm504, %v477, 0
      %v560 = vsel %vm504, %v478, 0
      %v563 = vsel %vm504, %v479, 0
      %v566 = vsel %vm504, %v480, 0
      %v569 = vsel %vm504, %v481, 0
      %v572 = vsel %vm504, %v482, 0
      %v575 = vsel %vm504, %v483, 0
      %v578 = vsel %vm504, %v484, 0
      %v581 = vsel %vm504, %v485, 0
      %v584 = vsel %vm504, %v486, 0
      %v587 = vsel %vm504, %v487, 0
      %v590 = vsel %vm504, %v488, 0
      %v593 = vsel %vm504, %v489, 0
      %v596 = vsel %vm504, %v490, 0
      %v599 = vsel %vm504, %v491, 0
      %601 = vmatprep.subr.bf16.mxu0 0
      %602 = vmatpush1.bf16.msra.mxu0 0
      %603 = vmatprep.subr.bf16.mxu0 0
      %604 = vmatpush1.bf16.msra.mxu0 0
      %605 = vmatprep.subr.bf16.mxu0 0
      %606 = vmatpush1.bf16.msra.mxu0 0
      %607 = vmatprep.subr.bf16.mxu0 0
      %608 = vmatpush1.bf16.msra.mxu0 0
      %609 = vmatprep.subr.bf16.mxu0 0
      %610 = vmatpush1.bf16.msra.mxu0 0
      %611 = vmatprep.subr.bf16.mxu0 0
      %612 = vmatpush1.bf16.msra.mxu0 0
      %613 = vmatprep.subr.bf16.mxu0 0
      %614 = vmatpush1.bf16.msra.mxu0 %v501
      %615 = vmatprep.subr.bf16.mxu0 0
      %616 = vmatpush1.bf16.msra.mxu0 %v500
      %617 = vmatprep.subr.bf16.mxu0 0
      %618 = vmatpush2.bf16.msra.mxu0 0
      %619 = vmatprep.subr.bf16.mxu0 0
      %620 = vmatpush2.bf16.msra.mxu0 0
      %621 = vmatprep.subr.bf16.mxu0 0
      %622 = vmatpush2.bf16.msra.mxu0 0
      %623 = vmatprep.subr.bf16.mxu0 0
      %624 = vmatpush2.bf16.msra.mxu0 0
      %625 = vmatprep.subr.bf16.mxu0 0
      %626 = vmatpush2.bf16.msra.mxu0 0
      %627 = vmatprep.subr.bf16.mxu0 0
      %628 = vmatpush2.bf16.msra.mxu0 0
      %629 = vmatprep.subr.bf16.mxu0 0
      %630 = vmatpush2.bf16.msra.mxu0 0
      %631 = vmatprep.subr.bf16.mxu0 0
      %632 = vmatpush2.bf16.msra.mxu0 0
      %633 = vmatprep.mubr.bf16.mxu0 0
      %634 = vmatmul.mubr.bf16.gmra.mxu0 %v506
      %v635 = vpop.f32.mrf.mxu0
      %v636 = vadd.f32 %v330, %v635
      %v637 = vpop.f32.mrf.mxu0
      %v638 = vpop.f32.mrf.mxu0
      %v639 = vadd.f32 %v330, %v638
      %v640 = vpop.f32.mrf.mxu0
      %641 = vmatprep.mubr.bf16.mxu0 0
      %642 = vmatmul.mubr.bf16.gmra.mxu0 %v509
      %v643 = vpop.f32.mrf.mxu0
      %v644 = vadd.f32 %v330, %v643
      %v645 = vpop.f32.mrf.mxu0
      %v646 = vpop.f32.mrf.mxu0
      %v647 = vadd.f32 %v330, %v646
      %v648 = vpop.f32.mrf.mxu0
      %649 = vmatprep.mubr.bf16.mxu0 0
      %650 = vmatmul.mubr.bf16.gmra.mxu0 %v512
      %v651 = vpop.f32.mrf.mxu0
      %v652 = vadd.f32 %v330, %v651
      %v653 = vpop.f32.mrf.mxu0
      %v654 = vpop.f32.mrf.mxu0
      %v655 = vadd.f32 %v330, %v654
      %v656 = vpop.f32.mrf.mxu0
      %657 = vmatprep.mubr.bf16.mxu0 0
      %658 = vmatmul.mubr.bf16.gmra.mxu0 %v515
      %v659 = vpop.f32.mrf.mxu0
      %v660 = vadd.f32 %v330, %v659
      %v661 = vpop.f32.mrf.mxu0
      %v662 = vpop.f32.mrf.mxu0
      %v663 = vadd.f32 %v330, %v662
      %v664 = vpop.f32.mrf.mxu0
      %665 = vmatprep.mubr.bf16.mxu0 0
      %666 = vmatmul.mubr.bf16.gmra.mxu0 %v518
      %v667 = vpop.f32.mrf.mxu0
      %v668 = vadd.f32 %v330, %v667
      %v669 = vpop.f32.mrf.mxu0
      %v670 = vpop.f32.mrf.mxu0
      %v671 = vadd.f32 %v330, %v670
      %v672 = vpop.f32.mrf.mxu0
      %673 = vmatprep.mubr.bf16.mxu0 0
      %674 = vmatmul.mubr.bf16.gmra.mxu0 %v521
      %v675 = vpop.f32.mrf.mxu0
      %v676 = vadd.f32 %v330, %v675
      %v677 = vpop.f32.mrf.mxu0
      %v678 = vpop.f32.mrf.mxu0
      %v679 = vadd.f32 %v330, %v678
      %v680 = vpop.f32.mrf.mxu0
      %681 = vmatprep.mubr.bf16.mxu0 0
      %682 = vmatmul.mubr.bf16.gmra.mxu0 %v524
      %v683 = vpop.f32.mrf.mxu0
      %v684 = vadd.f32 %v330, %v683
      %v685 = vpop.f32.mrf.mxu0
      %v686 = vpop.f32.mrf.mxu0
      %v687 = vadd.f32 %v330, %v686
      %v688 = vpop.f32.mrf.mxu0
      %689 = vmatprep.mubr.bf16.mxu0 0
      %690 = vmatmul.mubr.bf16.gmra.mxu0 %v527
      %v691 = vpop.f32.mrf.mxu0
      %v692 = vadd.f32 %v330, %v691
      %v693 = vpop.f32.mrf.mxu0
      %v694 = vpop.f32.mrf.mxu0
      %v695 = vadd.f32 %v330, %v694
      %v696 = vpop.f32.mrf.mxu0
      %697 = vmatprep.mubr.bf16.mxu0 0
      %698 = vmatmul.mubr.bf16.gmra.mxu0 %v530
      %v699 = vpop.f32.mrf.mxu0
      %v700 = vadd.f32 %v330, %v699
      %v701 = vpop.f32.mrf.mxu0
      %v702 = vpop.f32.mrf.mxu0
      %v703 = vadd.f32 %v330, %v702
      %v704 = vpop.f32.mrf.mxu0
      %705 = vmatprep.mubr.bf16.mxu0 0
      %706 = vmatmul.mubr.bf16.gmra.mxu0 %v533
      %v707 = vpop.f32.mrf.mxu0
      %v708 = vadd.f32 %v330, %v707
      %v709 = vpop.f32.mrf.mxu0
      %v710 = vpop.f32.mrf.mxu0
      %v711 = vadd.f32 %v330, %v710
      %v712 = vpop.f32.mrf.mxu0
      %713 = vmatprep.mubr.bf16.mxu0 0
      %714 = vmatmul.mubr.bf16.gmra.mxu0 %v536
      %v715 = vpop.f32.mrf.mxu0
      %v716 = vadd.f32 %v330, %v715
      %v717 = vpop.f32.mrf.mxu0
      %v718 = vpop.f32.mrf.mxu0
      %v719 = vadd.f32 %v330, %v718
      %v720 = vpop.f32.mrf.mxu0
      %721 = vmatprep.mubr.bf16.mxu0 0
      %722 = vmatmul.mubr.bf16.gmra.mxu0 %v539
      %v723 = vpop.f32.mrf.mxu0
      %v724 = vadd.f32 %v330, %v723
      %v725 = vpop.f32.mrf.mxu0
      %v726 = vpop.f32.mrf.mxu0
      %v727 = vadd.f32 %v330, %v726
      %v728 = vpop.f32.mrf.mxu0
      %729 = vmatprep.mubr.bf16.mxu0 0
      %730 = vmatmul.mubr.bf16.gmra.mxu0 %v542
      %v731 = vpop.f32.mrf.mxu0
      %v732 = vadd.f32 %v330, %v731
      %v733 = vpop.f32.mrf.mxu0
      %v734 = vpop.f32.mrf.mxu0
      %v735 = vadd.f32 %v330, %v734
      %v736 = vpop.f32.mrf.mxu0
      %737 = vmatprep.mubr.bf16.mxu0 0
      %738 = vmatmul.mubr.bf16.gmra.mxu0 %v545
      %v739 = vpop.f32.mrf.mxu0
      %v740 = vadd.f32 %v330, %v739
      %v741 = vpop.f32.mrf.mxu0
      %v742 = vpop.f32.mrf.mxu0
      %v743 = vadd.f32 %v330, %v742
      %v744 = vpop.f32.mrf.mxu0
      %745 = vmatprep.mubr.bf16.mxu0 0
      %746 = vmatmul.mubr.bf16.gmra.mxu0 %v548
      %v747 = vpop.f32.mrf.mxu0
      %v748 = vadd.f32 %v330, %v747
      %v749 = vpop.f32.mrf.mxu0
      %v750 = vpop.f32.mrf.mxu0
      %v751 = vadd.f32 %v330, %v750
      %v752 = vpop.f32.mrf.mxu0
      %753 = vmatprep.mubr.bf16.mxu0 0
      %754 = vmatmul.mubr.bf16.gmra.mxu0 %v551
      %v755 = vpop.f32.mrf.mxu0
      %v756 = vadd.f32 %v330, %v755
      %v757 = vpop.f32.mrf.mxu0
      %v758 = vpop.f32.mrf.mxu0
      %v759 = vadd.f32 %v330, %v758
      %v760 = vpop.f32.mrf.mxu0
      %761 = vmatprep.mubr.bf16.mxu0 0
      %762 = vmatmul.mubr.bf16.gmra.mxu0 %v554
      %v763 = vpop.f32.mrf.mxu0
      %v764 = vadd.f32 %v330, %v763
      %v765 = vpop.f32.mrf.mxu0
      %v766 = vpop.f32.mrf.mxu0
      %v767 = vadd.f32 %v330, %v766
      %v768 = vpop.f32.mrf.mxu0
      %769 = vmatprep.mubr.bf16.mxu0 0
      %770 = vmatmul.mubr.bf16.gmra.mxu0 %v557
      %v771 = vpop.f32.mrf.mxu0
      %v772 = vadd.f32 %v330, %v771
      %v773 = vpop.f32.mrf.mxu0
      %v774 = vpop.f32.mrf.mxu0
      %v775 = vadd.f32 %v330, %v774
      %v776 = vpop.f32.mrf.mxu0
      %777 = vmatprep.mubr.bf16.mxu0 0
      %778 = vmatmul.mubr.bf16.gmra.mxu0 %v560
      %v779 = vpop.f32.mrf.mxu0
      %v780 = vadd.f32 %v330, %v779
      %v781 = vpop.f32.mrf.mxu0
      %v782 = vpop.f32.mrf.mxu0
      %v783 = vadd.f32 %v330, %v782
      %v784 = vpop.f32.mrf.mxu0
      %785 = vmatprep.mubr.bf16.mxu0 0
      %786 = vmatmul.mubr.bf16.gmra.mxu0 %v563
      %v787 = vpop.f32.mrf.mxu0
      %v788 = vadd.f32 %v330, %v787
      %v789 = vpop.f32.mrf.mxu0
      %v790 = vpop.f32.mrf.mxu0
      %v791 = vadd.f32 %v330, %v790
      %v792 = vpop.f32.mrf.mxu0
      %793 = vmatprep.mubr.bf16.mxu0 0
      %794 = vmatmul.mubr.bf16.gmra.mxu0 %v566
      %v795 = vpop.f32.mrf.mxu0
      %v796 = vadd.f32 %v330, %v795
      %v797 = vpop.f32.mrf.mxu0
      %v798 = vpop.f32.mrf.mxu0
      %v799 = vadd.f32 %v330, %v798
      %v800 = vpop.f32.mrf.mxu0
      %801 = vmatprep.mubr.bf16.mxu0 0
      %802 = vmatmul.mubr.bf16.gmra.mxu0 %v569
      %v803 = vpop.f32.mrf.mxu0
      %v804 = vadd.f32 %v330, %v803
      %v805 = vpop.f32.mrf.mxu0
      %v806 = vpop.f32.mrf.mxu0
      %v807 = vadd.f32 %v330, %v806
      %v808 = vpop.f32.mrf.mxu0
      %809 = vmatprep.mubr.bf16.mxu0 0
      %810 = vmatmul.mubr.bf16.gmra.mxu0 %v572
      %v811 = vpop.f32.mrf.mxu0
      %v812 = vadd.f32 %v330, %v811
      %v813 = vpop.f32.mrf.mxu0
      %v814 = vpop.f32.mrf.mxu0
      %v815 = vadd.f32 %v330, %v814
      %v816 = vpop.f32.mrf.mxu0
      %817 = vmatprep.mubr.bf16.mxu0 0
      %818 = vmatmul.mubr.bf16.gmra.mxu0 %v575
      %v819 = vpop.f32.mrf.mxu0
      %v820 = vadd.f32 %v330, %v819
      %v821 = vpop.f32.mrf.mxu0
      %v822 = vpop.f32.mrf.mxu0
      %v823 = vadd.f32 %v330, %v822
      %v824 = vpop.f32.mrf.mxu0
      %825 = vmatprep.mubr.bf16.mxu0 0
      %826 = vmatmul.mubr.bf16.gmra.mxu0 %v578
      %v827 = vpop.f32.mrf.mxu0
      %v828 = vadd.f32 %v330, %v827
      %v829 = vpop.f32.mrf.mxu0
      %v830 = vpop.f32.mrf.mxu0
      %v831 = vadd.f32 %v330, %v830
      %v832 = vpop.f32.mrf.mxu0
      %833 = vmatprep.mubr.bf16.mxu0 0
      %834 = vmatmul.mubr.bf16.gmra.mxu0 %v581
      %v835 = vpop.f32.mrf.mxu0
      %v836 = vadd.f32 %v330, %v835
      %v837 = vpop.f32.mrf.mxu0
      %v838 = vpop.f32.mrf.mxu0
      %v839 = vadd.f32 %v330, %v838
      %v840 = vpop.f32.mrf.mxu0
      %841 = vmatprep.mubr.bf16.mxu0 0
      %842 = vmatmul.mubr.bf16.gmra.mxu0 %v584
      %v843 = vpop.f32.mrf.mxu0
      %v844 = vadd.f32 %v330, %v843
      %v845 = vpop.f32.mrf.mxu0
      %v846 = vpop.f32.mrf.mxu0
      %v847 = vadd.f32 %v330, %v846
      %v848 = vpop.f32.mrf.mxu0
      %849 = vmatprep.mubr.bf16.mxu0 0
      %850 = vmatmul.mubr.bf16.gmra.mxu0 %v587
      %v851 = vpop.f32.mrf.mxu0
      %v852 = vadd.f32 %v330, %v851
      %v853 = vpop.f32.mrf.mxu0
      %v854 = vpop.f32.mrf.mxu0
      %v855 = vadd.f32 %v330, %v854
      %v856 = vpop.f32.mrf.mxu0
      %857 = vmatprep.mubr.bf16.mxu0 0
      %858 = vmatmul.mubr.bf16.gmra.mxu0 %v590
      %v859 = vpop.f32.mrf.mxu0
      %v860 = vadd.f32 %v330, %v859
      %v861 = vpop.f32.mrf.mxu0
      %v862 = vpop.f32.mrf.mxu0
      %v863 = vadd.f32 %v330, %v862
      %v864 = vpop.f32.mrf.mxu0
      %865 = vmatprep.mubr.bf16.mxu0 0
      %866 = vmatmul.mubr.bf16.gmra.mxu0 %v593
      %v867 = vpop.f32.mrf.mxu0
      %v868 = vadd.f32 %v330, %v867
      %v869 = vpop.f32.mrf.mxu0
      %v870 = vpop.f32.mrf.mxu0
      %v871 = vadd.f32 %v330, %v870
      %v872 = vpop.f32.mrf.mxu0
      %873 = vmatprep.mubr.bf16.mxu0 0
      %874 = vmatmul.mubr.bf16.gmra.mxu0 %v596
      %v875 = vpop.f32.mrf.mxu0
      %v876 = vadd.f32 %v330, %v875
      %v877 = vpop.f32.mrf.mxu0
      %v878 = vpop.f32.mrf.mxu0
      %v879 = vadd.f32 %v330, %v878
      %v880 = vpop.f32.mrf.mxu0
      %881 = vmatprep.mubr.bf16.mxu0 0
      %882 = vmatmul.mubr.bf16.gmra.mxu0 %v599
      %v883 = vpop.f32.mrf.mxu0
      %v884 = vadd.f32 %v330, %v883
      %v885 = vpop.f32.mrf.mxu0
      %v886 = vpop.f32.mrf.mxu0
      %v887 = vadd.f32 %v330, %v886
      %v888 = vpop.f32.mrf.mxu0
      %889 = vdwg.mxu0
      %v890 = vtanh.pop %v636
      %v891 = vtanh.pop %v639
      %v892 = vtanh.pop %v644
      %v893 = vtanh.pop %v647
      %v894 = vtanh.pop %v652
      %v895 = vtanh.pop %v655
      %v896 = vtanh.pop %v660
      %v897 = vtanh.pop %v663
      %v898 = vtanh.pop %v668
      %v899 = vtanh.pop %v671
      %v900 = vtanh.pop %v676
      %v901 = vtanh.pop %v679
      %v902 = vtanh.pop %v684
      %v903 = vtanh.pop %v687
      %v904 = vtanh.pop %v692
      %v905 = vtanh.pop %v695
      %v906 = vtanh.pop %v700
      %v907 = vtanh.pop %v703
      %v908 = vtanh.pop %v708
      %v909 = vtanh.pop %v711
      %v910 = vtanh.pop %v716
      %v911 = vtanh.pop %v719
      %v912 = vtanh.pop %v724
      %v913 = vtanh.pop %v727
      %v914 = vtanh.pop %v732
      %v915 = vtanh.pop %v735
      %v916 = vtanh.pop %v740
      %v917 = vtanh.pop %v743
      %v918 = vtanh.pop %v748
      %v919 = vtanh.pop %v751
      %v920 = vtanh.pop %v756
      %v921 = vtanh.pop %v759
      %v922 = vtanh.pop %v764
      %v923 = vtanh.pop %v767
      %v924 = vtanh.pop %v772
      %v925 = vtanh.pop %v775
      %v926 = vtanh.pop %v780
      %v927 = vtanh.pop %v783
      %v928 = vtanh.pop %v788
      %v929 = vtanh.pop %v791
      %v930 = vtanh.pop %v796
      %v931 = vtanh.pop %v799
      %v932 = vtanh.pop %v804
      %v933 = vtanh.pop %v807
      %v934 = vtanh.pop %v812
      %v935 = vtanh.pop %v815
      %v936 = vtanh.pop %v820
      %v937 = vtanh.pop %v823
      %v938 = vtanh.pop %v828
      %v939 = vtanh.pop %v831
      %v940 = vtanh.pop %v836
      %v941 = vtanh.pop %v839
      %v942 = vtanh.pop %v844
      %v943 = vtanh.pop %v847
      %v944 = vtanh.pop %v852
      %v945 = vtanh.pop %v855
      %v946 = vtanh.pop %v860
      %v947 = vtanh.pop %v863
      %v948 = vtanh.pop %v868
      %v949 = vtanh.pop %v871
      %v950 = vtanh.pop %v876
      %v951 = vtanh.pop %v879
      %v952 = vtanh.pop %v884
      %v953 = vtanh.pop %v887
      %vm954 = vcmask 64512
      %955 = vst.msk [vmem:[%s254] sm:$0xff] %vm954, %v890
      %956 = vst.msk [vmem:[%s254 + $0x8] sm:$0xff] %vm954, %v891
      %957 = vst.msk [vmem:[%s254 + $0x10] sm:$0xff] %vm954, %v892
      %958 = vst.msk [vmem:[%s254 + $0x18] sm:$0xff] %vm954, %v893
      %959 = vst.msk [vmem:[%s254 + $0x20] sm:$0xff] %vm954, %v894
      %960 = vst.msk [vmem:[%s254 + $0x28] sm:$0xff] %vm954, %v895
      %961 = vst.msk [vmem:[%s254 + $0x30] sm:$0xff] %vm954, %v896
      %962 = vst.msk [vmem:[%s254 + $0x38] sm:$0xff] %vm954, %v897
      %963 = vst.msk [vmem:[%s254 + $0x40] sm:$0xff] %vm954, %v898
      %964 = vst.msk [vmem:[%s254 + $0x48] sm:$0xff] %vm954, %v899
      %965 = vst.msk [vmem:[%s254 + $0x50] sm:$0xff] %vm954, %v900
      %966 = vst.msk [vmem:[%s254 + $0x58] sm:$0xff] %vm954, %v901
      %967 = vst.msk [vmem:[%s254 + $0x60] sm:$0xff] %vm954, %v902
      %968 = vst.msk [vmem:[%s254 + $0x68] sm:$0xff] %vm954, %v903
      %969 = vst.msk [vmem:[%s254 + $0x70] sm:$0xff] %vm954, %v904
      %970 = vst.msk [vmem:[%s254 + $0x78] sm:$0xff] %vm954, %v905
      %971 = vst.msk [vmem:[%s254 + $0x80] sm:$0xff] %vm954, %v906
      %972 = vst.msk [vmem:[%s254 + $0x88] sm:$0xff] %vm954, %v907
      %973 = vst.msk [vmem:[%s254 + $0x90] sm:$0xff] %vm954, %v908
      %974 = vst.msk [vmem:[%s254 + $0x98] sm:$0xff] %vm954, %v909
      %975 = vst.msk [vmem:[%s254 + $0xa0] sm:$0xff] %vm954, %v910
      %976 = vst.msk [vmem:[%s254 + $0xa8] sm:$0xff] %vm954, %v911
      %977 = vst.msk [vmem:[%s254 + $0xb0] sm:$0xff] %vm954, %v912
      %978 = vst.msk [vmem:[%s254 + $0xb8] sm:$0xff] %vm954, %v913
      %979 = vst.msk [vmem:[%s254 + $0xc0] sm:$0xff] %vm954, %v914
      %980 = vst.msk [vmem:[%s254 + $0xc8] sm:$0xff] %vm954, %v915
      %981 = vst.msk [vmem:[%s254 + $0xd0] sm:$0xff] %vm954, %v916
      %982 = vst.msk [vmem:[%s254 + $0xd8] sm:$0xff] %vm954, %v917
      %983 = vst.msk [vmem:[%s254 + $0xe0] sm:$0xff] %vm954, %v918
      %984 = vst.msk [vmem:[%s254 + $0xe8] sm:$0xff] %vm954, %v919
      %985 = vst.msk [vmem:[%s254 + $0xf0] sm:$0xff] %vm954, %v920
      %986 = vst.msk [vmem:[%s254 + $0xf8] sm:$0xff] %vm954, %v921
      %987 = vst.msk [vmem:[%s254 + $0x100] sm:$0xff] %vm954, %v922
      %988 = vst.msk [vmem:[%s254 + $0x108] sm:$0xff] %vm954, %v923
      %989 = vst.msk [vmem:[%s254 + $0x110] sm:$0xff] %vm954, %v924
      %990 = vst.msk [vmem:[%s254 + $0x118] sm:$0xff] %vm954, %v925
      %991 = vst.msk [vmem:[%s254 + $0x120] sm:$0xff] %vm954, %v926
      %992 = vst.msk [vmem:[%s254 + $0x128] sm:$0xff] %vm954, %v927
      %993 = vst.msk [vmem:[%s254 + $0x130] sm:$0xff] %vm954, %v928
      %994 = vst.msk [vmem:[%s254 + $0x138] sm:$0xff] %vm954, %v929
      %995 = vst.msk [vmem:[%s254 + $0x140] sm:$0xff] %vm954, %v930
      %996 = vst.msk [vmem:[%s254 + $0x148] sm:$0xff] %vm954, %v931
      %997 = vst.msk [vmem:[%s254 + $0x150] sm:$0xff] %vm954, %v932
      %998 = vst.msk [vmem:[%s254 + $0x158] sm:$0xff] %vm954, %v933
      %999 = vst.msk [vmem:[%s254 + $0x160] sm:$0xff] %vm954, %v934
      %1000 = vst.msk [vmem:[%s254 + $0x168] sm:$0xff] %vm954, %v935
      %1001 = vst.msk [vmem:[%s254 + $0x170] sm:$0xff] %vm954, %v936
      %1002 = vst.msk [vmem:[%s254 + $0x178] sm:$0xff] %vm954, %v937
      %1003 = vst.msk [vmem:[%s254 + $0x180] sm:$0xff] %vm954, %v938
      %1004 = vst.msk [vmem:[%s254 + $0x188] sm:$0xff] %vm954, %v939
      %1005 = vst.msk [vmem:[%s254 + $0x190] sm:$0xff] %vm954, %v940
      %1006 = vst.msk [vmem:[%s254 + $0x198] sm:$0xff] %vm954, %v941
      %1007 = vst.msk [vmem:[%s254 + $0x1a0] sm:$0xff] %vm954, %v942
      %1008 = vst.msk [vmem:[%s254 + $0x1a8] sm:$0xff] %vm954, %v943
      %1009 = vst.msk [vmem:[%s254 + $0x1b0] sm:$0xff] %vm954, %v944
      %1010 = vst.msk [vmem:[%s254 + $0x1b8] sm:$0xff] %vm954, %v945
      %1011 = vst.msk [vmem:[%s254 + $0x1c0] sm:$0xff] %vm954, %v946
      %1012 = vst.msk [vmem:[%s254 + $0x1c8] sm:$0xff] %vm954, %v947
      %1013 = vst.msk [vmem:[%s254 + $0x1d0] sm:$0xff] %vm954, %v948
      %1014 = vst.msk [vmem:[%s254 + $0x1d8] sm:$0xff] %vm954, %v949
      %1015 = vst.msk [vmem:[%s254 + $0x1e0] sm:$0xff] %vm954, %v950
      %1016 = vst.msk [vmem:[%s254 + $0x1e8] sm:$0xff] %vm954, %v951
      %1017 = vst.msk [vmem:[%s254 + $0x1f0] sm:$0xff] %vm954, %v952
      %1018 = vst.msk [vmem:[%s254 + $0x1f8] sm:$0xff] %vm954, %v953
      %s1019 = smul.u32 64, %s20
      %p1020 = scmp.lt.s32.totalorder %s19, 1
      %s1021 = scalar_select %p1020, %s19, 1
      %p1022 = scmp.lt.s32.totalorder %s1019, 4351
      %s1023 = scalar_select %p1022, %s1019, 4351
      %p1024 = scmp.lt.s32.totalorder %s21, 0
      %s1025 = scalar_select %p1024, %s21, 0
      %s1026 = sadd.s32 %s1025, %s1023
      %s1027 = smul.addr %s1021, 4352
      %s1028 = sadd.s32 %s1026, %s1027
      %s1029 = smul.addr %s1028, 8
      %s1030 = scalar_lea.vmem %s3, %s1029
      // Predicated region
      $region33: #{decoder_forward.9} parent=31 // pred_check
        %p1031 = pneg %p135
      $region34: #{decoder_forward.9} parent=31 // pred_check_branch
        %1033 = sbr.rel (%p1031) target = $region36
      $region35: #{decoder_forward.9} parent=31 // pred_region
        %s1034 = smul.u32 64, %s20
      $region36: #{decoder_forward.9} parent=31 // pred_fallthru
        _
    $region32: #{decoder_forward.9} parent=5 // pred_fallthru
      _
    %p1035 = scmp.le.s32.totalorder 2, %s9
    // Predicated region
    $region37: #{decoder_forward.9} parent=5 // pred_check
      %p1036 = pneg %p1035
    $region38: #{decoder_forward.9} parent=5 // pred_check_branch
      %1038 = sbr.rel (%p1036) target = $region40
    $region39: #{decoder_forward.9} parent=5 // pred_region
      %s1039 = ssub.s32 %s9, 2
      // Predicated region
      $region41: #{decoder_forward.9} parent=39 // pred_check
        %p1040 = pneg %p141
      $region42: #{decoder_forward.9} parent=39 // pred_check_branch
        %1042 = sbr.rel (%p1040) target = $region44
      $region43: #{decoder_forward.9} parent=39 // pred_region
        %s1043 = smul.u32 64, %s23
        %p1044 = scmp.lt.s32.totalorder %s22, 1
        %s1045 = scalar_select %p1044, %s22, 1
        %p1046 = scmp.lt.s32.totalorder %s1043, 4351
        %s1047 = scalar_select %p1046, %s1043, 4351
        %p1048 = scmp.lt.s32.totalorder %s24, 0
        %s1049 = scalar_select %p1048, %s24, 0
        %s1050 = sadd.s32 %s1049, %s1047
        %s1051 = smul.addr %s1045, 4352
        %s1052 = sadd.s32 %s1050, %s1051
        %s1053 = smul.addr %s1052, 8
        %s1054 = scalar_lea.vmem %s3, %s1053
      $region44: #{decoder_forward.9} parent=39 // pred_fallthru
        _
    $region40: #{decoder_forward.9} parent=5 // pred_fallthru
      _
  $region6: #{decoder_forward.9} parent=0 // loop_footer
    %s13 = sadd.s32 1, %s9
  $region7: #{decoder_forward.9} parent=0 // loop_footer_branch
    %8 = sbr.rel target = $region3
  $region8: #{decoder_forward.9} parent=0 // loop_exit
    _

</llo_original>
